<compile_context>
chip_gen: v7x
topology: tpu7x:2x2x1
jax: 0.10.0
libtpu: 0.0.40
codegen_flags: <defaults>
</compile_context>

<pallas_src>
import jax
import jax.numpy as jnp
from jax.experimental import pallas as pl
from jax.experimental.pallas import tpu as pltpu

# ----------------------- small synthetic PixArt config -----------------------
B = 2                     # batch (number of prompts)
C = 4                     # latent channels
H = W = 16                # latent spatial size
P = 4                     # patch size
T = (H // P) * (W // P)   # 16 image tokens
PD = P * P * C            # 64  patch dim (== conv patch-embed im2col width)
PD_PAD = 128              # lane-dense padded width of patch tokens / final proj
D = 128                   # transformer hidden size
NH = 2                    # attention heads
HD = D // NH              # 64  head dim
L = 8                     # text tokens
DM = 256                  # MLP hidden
VOCAB = 97
FREQ = 128                # timestep sinusoidal embedding dim
EPS = 1e-6

# packed (K = D) weight-slab column offsets
OFF_WQKV, OFF_WPROJ, OFF_WQ = 0, 3 * D, 4 * D
OFF_WKV, OFF_WCO, OFF_W1, OFF_WF = 5 * D, 7 * D, 8 * D, 10 * D
WD_TOTAL = 11 * D          # 1408

# packed bias-slab offsets
OFF_BPE, OFF_BQKV, OFF_BPROJ, OFF_BQ = 0, D, 4 * D, 5 * D
OFF_BKV, OFF_BCO, OFF_B1, OFF_B2, OFF_BF = 6 * D, 8 * D, 9 * D, 11 * D, 12 * D
BIAS_TOTAL = 13 * D        # 1664


# ------------------------------ in-kernel helpers ----------------------------
def _ln(x):
    """LayerNorm (no affine), eps=1e-6, over last axis.

    Variance from uncentered moments so the two cross-lane reductions are
    independent (shorter dependency chain) instead of center-then-reduce.
    """
    mu = jnp.mean(x, axis=-1, keepdims=True)
    mu2 = jnp.mean(x * x, axis=-1, keepdims=True)
    var = jnp.maximum(mu2 - mu * mu, 0.0)
    return (x - mu) * jax.lax.rsqrt(var + EPS)


def _softmax_rows(s):
    s = s - jnp.max(s, axis=-1, keepdims=True)
    p = jnp.exp(s)
    return p * pl.reciprocal(jnp.sum(p, axis=-1, keepdims=True), approx=True)


def _mha_fold_proj(q, k, v, wd_ref, w_off):
    """Multi-head attention (NH=2, statically unrolled; the two heads' chains
    are independent so the scheduler overlaps them) with bf16 MXU operands,
    f32 accumulation, and a single K=128 output-projection matmul over the
    lane-concatenated head outputs.  q:(B,Tq,D) k,v:(B,Tk,D) f32."""
    bf16 = jnp.bfloat16
    bq, tq, _ = q.shape
    scale = 1.0 / (HD ** 0.5)
    heads = []
    for h in range(NH):
        sl = slice(h * HD, (h + 1) * HD)
        qh = (q[:, :, sl] * scale).astype(bf16)
        kh = k[:, :, sl].astype(bf16)
        vh = v[:, :, sl].astype(bf16)
        s = jnp.einsum("bqd,bkd->bqk", qh, kh,
                       preferred_element_type=jnp.float32)
        p = _softmax_rows(s)                                        # f32 math
        oh = jnp.einsum("bqk,bkd->bqd", p.astype(bf16), vh,
                        preferred_element_type=jnp.float32)         # (B,Tq,HD)
        heads.append(oh)
    # lane-axis concat of head outputs -> one full-width (K=128) projection
    o = jnp.concatenate(heads, axis=-1).reshape(bq * tq, D)
    wp = wd_ref[:, w_off:w_off + D]                                  # (D,D) bf16
    return jnp.dot(o.astype(bf16), wp,
                   preferred_element_type=jnp.float32).reshape(bq, tq, D)


# ----------------------------- fused DiT kernel -------------------------------
def _pixart_dit_kernel(xp_ref, pos_ref, ctx_ref, mod6_ref, mod2_ref,
                       wpe_ref, wd_ref, w2_ref, bias_ref, o_ref):
    bf16 = jnp.bfloat16
    f32 = jnp.float32

    def wslab(off, width):                       # (D, width) bf16
        return wd_ref[:, off:off + width]

    def bvec(off, width):                        # (1, width) f32
        return bias_ref[:, off:off + width]

    def lin(x2d, w_off, width, b_off):
        y = jnp.dot(x2d.astype(bf16), wslab(w_off, width),
                    preferred_element_type=f32)
        return y + bvec(b_off, width)

    # ---- patch embed (4x4 stride-4 conv as matmul, K padded to 128) ----
    xp2 = xp_ref[...].reshape(B * T, PD_PAD).astype(bf16)
    x2 = jnp.dot(xp2, wpe_ref[...], preferred_element_type=f32) + bvec(OFF_BPE, D)
    x = x2.reshape(B, T, D) + pos_ref[...]                          # (B,T,D) f32

    mod6 = mod6_ref[...]                                            # (B,6,D)
    shift_msa, scale_msa, gate_msa = mod6[:, 0:1, :], mod6[:, 1:2, :], mod6[:, 2:3, :]
    shift_mlp, scale_mlp, gate_mlp = mod6[:, 3:4, :], mod6[:, 4:5, :], mod6[:, 5:6, :]

    # ---- self-attention with adaLN modulation ----
    xn = _ln(x) * (1.0 + scale_msa) + shift_msa
    qkv = lin(xn.reshape(B * T, D), OFF_WQKV, 3 * D, OFF_BQKV)      # (B*T, 3D)
    q = qkv[:, 0:D].reshape(B, T, D)
    k = qkv[:, D:2 * D].reshape(B, T, D)
    v = qkv[:, 2 * D:3 * D].reshape(B, T, D)
    attn = _mha_fold_proj(q, k, v, wd_ref, OFF_WPROJ)
    x = x + gate_msa * (attn + bvec(OFF_BPROJ, D))

    # ---- cross-attention to text context ----
    # TODO(synk): cross-attn residual is ungated (x + xatt + bco), matching
    # PixArt's design; confirm against the reference module.
    ctx = ctx_ref[...]                                              # (B,L,D)
    q2 = lin(x.reshape(B * T, D), OFF_WQ, D, OFF_BQ).reshape(B, T, D)
    kv = lin(ctx.reshape(B * L, D), OFF_WKV, 2 * D, OFF_BKV)        # (B*L, 2D)
    k2 = kv[:, 0:D].reshape(B, L, D)
    v2 = kv[:, D:2 * D].reshape(B, L, D)
    xatt = _mha_fold_proj(q2, k2, v2, wd_ref, OFF_WCO)
    x = x + xatt + bvec(OFF_BCO, D)

    # ---- MLP with adaLN modulation ----
    xn2 = _ln(x) * (1.0 + scale_mlp) + shift_mlp
    hh = lin(xn2.reshape(B * T, D), OFF_W1, DM, OFF_B1)
    hh = jax.nn.gelu(hh, approximate=True)
    y = jnp.dot(hh.astype(bf16), w2_ref[...],
                preferred_element_type=f32) + bvec(OFF_B2, D)
    x = x + gate_mlp * y.reshape(B, T, D)

    # ---- final adaLN + projection (padded to 128 lanes -> unmasked store) ----
    mod2 = mod2_ref[...]                                            # (B,2,D)
    xnf = _ln(x) * (1.0 + mod2[:, 1:2, :]) + mod2[:, 0:1, :]
    out = lin(xnf.reshape(B * T, D), OFF_WF, PD_PAD, OFF_BF)        # (B*T, 128)
    o_ref[...] = out.reshape(B, T, PD_PAD)


def _pack_weights(p):
    """Pack the 17 DiT weights/biases into lane-dense slabs (bf16 weights)."""
    wpe = jnp.pad(p["wpe"], ((0, PD_PAD - PD), (0, 0))).astype(jnp.bfloat16)  # (128, D)
    wd = jnp.concatenate(
        [p["wqkv"], p["wproj"], p["wq"], p["wkv"], p["wco"], p["w1"],
         jnp.pad(p["wf"], ((0, 0), (0, PD_PAD - PD)))],
        axis=1).astype(jnp.bfloat16)                                 # (D, 1408)
    bias = jnp.concatenate(
        [p["bpe"], p["bqkv"], p["bproj"], p["bq"], p["bkv"], p["bco"],
         p["b1"], p["b2"], jnp.pad(p["bf"], (0, PD_PAD - PD))]
    ).reshape(1, BIAS_TOTAL)                                         # (1, 1664) f32
    return wpe, wd, p["w2"].astype(jnp.bfloat16), bias


def pixart_dit(xp, pos, ctx, mod6, mod2, params):
    """Single fused pallas_call: patch-embed -> DiT block -> final layer."""
    wpe, wd, w2, bias = _pack_weights(params)
    cost = pl.CostEstimate(flops=15_000_000, transcendentals=10_000,
                           bytes_accessed=600_000)
    # One grid step with the batch folded into M = B*T rows (best for the
    # single-TensorCore v5e/v6e parts).  Resident footprint ~0.5 MiB, so no
    # VMEM tiling is needed on any generation.
    return pl.pallas_call(
        _pixart_dit_kernel,
        out_shape=jax.ShapeDtypeStruct((B, T, PD_PAD), jnp.float32),
        grid=(1,),
        in_specs=[
            pl.BlockSpec((B, T, PD_PAD), lambda i: (0, 0, 0)),
            pl.BlockSpec((T, D), lambda i: (0, 0)),
            pl.BlockSpec((B, L, D), lambda i: (0, 0, 0)),
            pl.BlockSpec((B, 6, D), lambda i: (0, 0, 0)),
            pl.BlockSpec((B, 2, D), lambda i: (0, 0, 0)),
            pl.BlockSpec((PD_PAD, D), lambda i: (0, 0)),
            pl.BlockSpec((D, WD_TOTAL), lambda i: (0, 0)),
            pl.BlockSpec((DM, D), lambda i: (0, 0)),
            pl.BlockSpec((1, BIAS_TOTAL), lambda i: (0, 0)),
        ],
        out_specs=pl.BlockSpec((B, T, PD_PAD), lambda i: (0, 0, 0)),
        compiler_params=pltpu.CompilerParams(dimension_semantics=("arbitrary",)),
        cost_estimate=cost,
    )(xp, pos, ctx, mod6, mod2, wpe, wd, w2, bias)


# ----------------------------------- glue ------------------------------------
def patchify(lat):  # (B, C, H, W) -> (B, T, PD_PAD) lane-dense patch tokens
    x = lat.reshape(B, C, H // P, P, W // P, P)
    x = jnp.einsum("bchpwq->bhwpqc", x)
    x = x.reshape(B, T, PD)
    return jnp.pad(x, ((0, 0), (0, 0), (0, PD_PAD - PD)))


def unpatchify(x):  # (B, T, P*P*C) -> (B, C, H, W)
    x = x.reshape(B, H // P, W // P, P, P, C)
    x = jnp.einsum("bhwpqc->bchpwq", x)
    return x.reshape(B, C, H, W)


def timestep_embedding(t):  # (B,) -> (B, FREQ)
    half = FREQ // 2
    freqs = jnp.exp(-jnp.log(10000.0) * jnp.arange(half, dtype=jnp.float32) / half)
    args = t[:, None] * freqs[None, :]
    return jnp.concatenate([jnp.cos(args), jnp.sin(args)], axis=-1)


def tokenize(prompt):
    # TODO(synk): the real pipeline uses a pretrained T5 tokenizer/encoder.
    ids = [(ord(c) * 31 + i * 7) % VOCAB for i, c in enumerate(prompt)][:L]
    ids = ids + [0] * (L - len(ids))
    return jnp.array(ids, dtype=jnp.int32)


def init_params(key):
    s = 0.02
    keys = iter(jax.random.split(key, 32))
    n = lambda shape: jax.random.normal(next(keys), shape, jnp.float32) * s
    z = lambda shape: jnp.zeros(shape, jnp.float32)
    return {
        # text embedding / caption projection
        "tok_emb": n((VOCAB, D)), "wcap": n((D, D)), "bcap": z((D,)),
        # timestep MLP + adaLN heads
        "wt1": n((FREQ, D)), "bt1": z((D,)),
        "wt2": n((D, D)), "bt2": z((D,)),
        "wada": n((D, 6 * D)), "bada": z((6 * D,)),
        "wfmod": n((D, 2 * D)), "bfmod": z((2 * D,)),
        # patch embed (== 4x4 stride-4 conv as matmul) + positional embedding
        "wpe": n((PD, D)), "bpe": z((D,)), "pos": n((T, D)),
        # DiT block
        "wqkv": n((D, 3 * D)), "bqkv": z((3 * D,)),
        "wproj": n((D, D)), "bproj": z((D,)),
        "wq": n((D, D)), "bq": z((D,)),
        "wkv": n((D, 2 * D)), "bkv": z((2 * D,)),
        "wco": n((D, D)), "bco": z((D,)),
        "w1": n((D, DM)), "b1": z((DM,)),
        "w2": n((DM, D)), "b2": z((D,)),
        # final layer
        "wf": n((D, PD)), "bf": z((PD,)),
    }


@jax.jit
def _pixart_denoise(ids, params, key):
    # --- text "encoder" (synthetic) + caption projection: tiny, plain XLA ---
    ctx = params["tok_emb"][ids]                                   # (B, L, D)
    ctx = jnp.dot(ctx, params["wcap"]) + params["bcap"]

    # --- initial latents (the pipeline starts from Gaussian noise) ---
    lat = jax.random.normal(key, (B, C, H, W), jnp.float32)        # NCHW

    # --- timestep conditioning -> adaLN modulation ((B,128) matmuls: XLA) ---
    # TODO(synk): real pipeline runs an iterative scheduler loop; we run one
    # denoiser (DiT) forward pass, which is the compute hot path.
    t = jnp.full((B,), 500.0, jnp.float32)
    temb = jnp.dot(timestep_embedding(t), params["wt1"]) + params["bt1"]
    temb = jnp.dot(jax.nn.silu(temb), params["wt2"]) + params["bt2"]
    cond = jax.nn.silu(temb)
    mod6 = (jnp.dot(cond, params["wada"]) + params["bada"]).reshape(B, 6, D)
    mod2 = (jnp.dot(cond, params["wfmod"]) + params["bfmod"]).reshape(B, 2, D)

    # --- fused DiT denoiser (single Pallas kernel) ---
    out = pixart_dit(patchify(lat), params["pos"], ctx, mod6, mod2, params)
    out = out[:, :, :PD]                                            # drop lane padding

    # --- unpatchify to image-shaped output ---
    # TODO(synk): real pipeline decodes latents with a pretrained VAE and
    # converts to a PIL image; we return the denoiser output in NCHW.
    return unpatchify(out)                                          # (B, C, H, W)


def pixart_forward(prompts, params, key):
    ids = jnp.stack([tokenize(p) for p in prompts])                 # (B, L)
    return _pixart_denoise(ids, params, key)


if __name__ == "__main__":
    key = jax.random.PRNGKey(0)
    pkey, nkey = jax.random.split(key)
    params = init_params(pkey)
    prompts = ["a photo of an astronaut riding a horse",
               "a small red fox standing in the snow"]
    image = pixart_forward(prompts, params, nkey)
    image = jax.block_until_ready(image)
    assert image.shape == (B, C, H, W)
    assert bool(jnp.all(jnp.isfinite(image)))
    print("KERNEL_OK")
</pallas_src>

<mosaic_0001>
module attributes {stable_mosaic.version = 11 : i64} {
  func.func @_pixart_dit_kernel(%arg0: i32, %arg1: memref<2x16x128xf32, #tpu.memory_space<vmem>>, %arg2: memref<16x128xf32, #tpu.memory_space<vmem>>, %arg3: memref<2x8x128xf32, #tpu.memory_space<vmem>>, %arg4: memref<2x6x128xf32, #tpu.memory_space<vmem>>, %arg5: memref<2x2x128xf32, #tpu.memory_space<vmem>>, %arg6: memref<128x128xbf16, #tpu.memory_space<vmem>>, %arg7: memref<128x1408xbf16, #tpu.memory_space<vmem>>, %arg8: memref<256x128xbf16, #tpu.memory_space<vmem>>, %arg9: memref<1x1664xf32, #tpu.memory_space<vmem>>, %arg10: memref<2x16x128xf32, #tpu.memory_space<vmem>>) attributes {dimension_semantics = [#tpu.dimension_semantics<arbitrary>], iteration_bounds = array<i64: 1>, scalar_prefetch = 0 : i64, scratch_operands = 0 : i64, tpu.core_type = #tpu.core_type<tc>, window_params = [{pipeline_mode = #tpu.pipeline_mode<synchronous>, transform_indices = @transform_0, window_bounds = array<i64: 2, 16, 128>}, {pipeline_mode = #tpu.pipeline_mode<synchronous>, transform_indices = @transform_1, window_bounds = array<i64: 16, 128>}, {pipeline_mode = #tpu.pipeline_mode<synchronous>, transform_indices = @transform_2, window_bounds = array<i64: 2, 8, 128>}, {pipeline_mode = #tpu.pipeline_mode<synchronous>, transform_indices = @transform_3, window_bounds = array<i64: 2, 6, 128>}, {pipeline_mode = #tpu.pipeline_mode<synchronous>, transform_indices = @transform_4, window_bounds = array<i64: 2, 2, 128>}, {pipeline_mode = #tpu.pipeline_mode<synchronous>, transform_indices = @transform_5, window_bounds = array<i64: 128, 128>}, {pipeline_mode = #tpu.pipeline_mode<synchronous>, transform_indices = @transform_6, window_bounds = array<i64: 128, 1408>}, {pipeline_mode = #tpu.pipeline_mode<synchronous>, transform_indices = @transform_7, window_bounds = array<i64: 256, 128>}, {pipeline_mode = #tpu.pipeline_mode<synchronous>, transform_indices = @transform_8, window_bounds = array<i64: 1, 1664>}, {pipeline_mode = #tpu.pipeline_mode<synchronous>, transform_indices = @transform_9, window_bounds = array<i64: 2, 16, 128>}]} {
    %c0 = arith.constant 0 : index
    %c0_0 = arith.constant 0 : index
    %c0_1 = arith.constant 0 : index
    %0 = vector.load %arg1[%c0, %c0_0, %c0_1] : memref<2x16x128xf32, #tpu.memory_space<vmem>>, vector<2x16x128xf32>
    %1 = vector.shape_cast %0 : vector<2x16x128xf32> to vector<32x128xf32>
    %2 = arith.truncf %1 : vector<32x128xf32> to vector<32x128xbf16>
    %c0_2 = arith.constant 0 : index
    %c0_3 = arith.constant 0 : index
    %3 = vector.load %arg6[%c0_2, %c0_3] : memref<128x128xbf16, #tpu.memory_space<vmem>>, vector<128x128xbf16>
    %cst = arith.constant dense<0.000000e+00> : vector<32x128xf32>
    %4 = tpu.matmul %2, %3, %cst {dimension_numbers = #tpu.dot_dimension_numbers<[1], [0], [0], [1], [0, 0, 1, 1], [], []>} : vector<32x128xbf16>, vector<128x128xbf16>, vector<32x128xf32> -> vector<32x128xf32>
    %c0_4 = arith.constant 0 : index
    %c0_5 = arith.constant 0 : index
    %5 = vector.load %arg9[%c0_4, %c0_5] : memref<1x1664xf32, #tpu.memory_space<vmem>>, vector<1x128xf32>
    %6 = vector.broadcast %5 : vector<1x128xf32> to vector<32x128xf32>
    %7 = arith.addf %4, %6 : vector<32x128xf32>
    %8 = vector.shape_cast %7 : vector<32x128xf32> to vector<2x16x128xf32>
    %c0_6 = arith.constant 0 : index
    %c0_7 = arith.constant 0 : index
    %9 = vector.load %arg2[%c0_6, %c0_7] : memref<16x128xf32, #tpu.memory_space<vmem>>, vector<16x128xf32>
    %10 = vector.shape_cast %9 : vector<16x128xf32> to vector<1x16x128xf32>
    %11 = vector.broadcast %10 : vector<1x16x128xf32> to vector<2x16x128xf32>
    %12 = arith.addf %8, %11 : vector<2x16x128xf32>
    %c0_8 = arith.constant 0 : index
    %c0_9 = arith.constant 0 : index
    %c0_10 = arith.constant 0 : index
    %13 = vector.load %arg4[%c0_8, %c0_9, %c0_10] : memref<2x6x128xf32, #tpu.memory_space<vmem>>, vector<2x6x128xf32>
    %14 = vector.extract_strided_slice %13 {offsets = [0, 0, 0], sizes = [2, 1, 128], strides = [1, 1, 1]} : vector<2x6x128xf32> to vector<2x1x128xf32>
    %15 = vector.extract_strided_slice %13 {offsets = [0, 1, 0], sizes = [2, 1, 128], strides = [1, 1, 1]} : vector<2x6x128xf32> to vector<2x1x128xf32>
    %16 = vector.extract_strided_slice %13 {offsets = [0, 2, 0], sizes = [2, 1, 128], strides = [1, 1, 1]} : vector<2x6x128xf32> to vector<2x1x128xf32>
    %17 = vector.extract_strided_slice %13 {offsets = [0, 3, 0], sizes = [2, 1, 128], strides = [1, 1, 1]} : vector<2x6x128xf32> to vector<2x1x128xf32>
    %18 = vector.extract_strided_slice %13 {offsets = [0, 4, 0], sizes = [2, 1, 128], strides = [1, 1, 1]} : vector<2x6x128xf32> to vector<2x1x128xf32>
    %19 = vector.extract_strided_slice %13 {offsets = [0, 5, 0], sizes = [2, 1, 128], strides = [1, 1, 1]} : vector<2x6x128xf32> to vector<2x1x128xf32>
    %cst_11 = arith.constant dense<0.000000e+00> : vector<2x16xf32>
    %20 = vector.multi_reduction <add>, %12, %cst_11 [2] : vector<2x16x128xf32> to vector<2x16xf32>
    %21 = vector.shape_cast %20 : vector<2x16xf32> to vector<2x16x1xf32>
    %cst_12 = arith.constant 1.280000e+02 : f32
    %22 = vector.broadcast %cst_12 : f32 to vector<2x16x1xf32>
    %23 = arith.divf %21, %22 : vector<2x16x1xf32>
    %24 = arith.mulf %12, %12 : vector<2x16x128xf32>
    %cst_13 = arith.constant dense<0.000000e+00> : vector<2x16xf32>
    %25 = vector.multi_reduction <add>, %24, %cst_13 [2] : vector<2x16x128xf32> to vector<2x16xf32>
    %26 = vector.shape_cast %25 : vector<2x16xf32> to vector<2x16x1xf32>
    %cst_14 = arith.constant 1.280000e+02 : f32
    %27 = vector.broadcast %cst_14 : f32 to vector<2x16x1xf32>
    %28 = arith.divf %26, %27 : vector<2x16x1xf32>
    %29 = arith.mulf %23, %23 : vector<2x16x1xf32>
    %30 = arith.subf %28, %29 : vector<2x16x1xf32>
    %cst_15 = arith.constant 0.000000e+00 : f32
    %31 = vector.broadcast %cst_15 : f32 to vector<2x16x1xf32>
    %32 = arith.maximumf %30, %31 : vector<2x16x1xf32>
    %33 = vector.broadcast %23 : vector<2x16x1xf32> to vector<2x16x128xf32>
    %34 = arith.subf %12, %33 : vector<2x16x128xf32>
    %cst_16 = arith.constant 9.99999997E-7 : f32
    %35 = vector.broadcast %cst_16 : f32 to vector<2x16x1xf32>
    %36 = arith.addf %32, %35 : vector<2x16x1xf32>
    %37 = math.rsqrt %36 : vector<2x16x1xf32>
    %38 = vector.broadcast %37 : vector<2x16x1xf32> to vector<2x16x128xf32>
    %39 = arith.mulf %34, %38 : vector<2x16x128xf32>
    %cst_17 = arith.constant 1.000000e+00 : f32
    %40 = vector.broadcast %cst_17 : f32 to vector<2x1x128xf32>
    %41 = arith.addf %40, %15 : vector<2x1x128xf32>
    %42 = vector.broadcast %41 : vector<2x1x128xf32> to vector<2x16x128xf32>
    %43 = arith.mulf %39, %42 : vector<2x16x128xf32>
    %44 = vector.broadcast %14 : vector<2x1x128xf32> to vector<2x16x128xf32>
    %45 = arith.addf %43, %44 : vector<2x16x128xf32>
    %46 = vector.shape_cast %45 : vector<2x16x128xf32> to vector<32x128xf32>
    %47 = arith.truncf %46 : vector<32x128xf32> to vector<32x128xbf16>
    %c0_18 = arith.constant 0 : index
    %c0_19 = arith.constant 0 : index
    %48 = vector.load %arg7[%c0_18, %c0_19] : memref<128x1408xbf16, #tpu.memory_space<vmem>>, vector<128x384xbf16>
    %cst_20 = arith.constant dense<0.000000e+00> : vector<32x384xf32>
    %49 = tpu.matmul %47, %48, %cst_20 {dimension_numbers = #tpu.dot_dimension_numbers<[1], [0], [0], [1], [0, 0, 1, 1], [], []>} : vector<32x128xbf16>, vector<128x384xbf16>, vector<32x384xf32> -> vector<32x384xf32>
    %c0_21 = arith.constant 0 : index
    %c128 = arith.constant 128 : index
    %50 = vector.load %arg9[%c0_21, %c128] : memref<1x1664xf32, #tpu.memory_space<vmem>>, vector<1x384xf32>
    %51 = vector.broadcast %50 : vector<1x384xf32> to vector<32x384xf32>
    %52 = arith.addf %49, %51 : vector<32x384xf32>
    %53 = vector.extract_strided_slice %52 {offsets = [0, 0], sizes = [32, 128], strides = [1, 1]} : vector<32x384xf32> to vector<32x128xf32>
    %54 = vector.shape_cast %53 : vector<32x128xf32> to vector<2x16x128xf32>
    %55 = vector.extract_strided_slice %52 {offsets = [0, 128], sizes = [32, 128], strides = [1, 1]} : vector<32x384xf32> to vector<32x128xf32>
    %56 = vector.shape_cast %55 : vector<32x128xf32> to vector<2x16x128xf32>
    %57 = vector.extract_strided_slice %52 {offsets = [0, 256], sizes = [32, 128], strides = [1, 1]} : vector<32x384xf32> to vector<32x128xf32>
    %58 = vector.shape_cast %57 : vector<32x128xf32> to vector<2x16x128xf32>
    %59 = vector.extract_strided_slice %54 {offsets = [0, 0, 0], sizes = [2, 16, 64], strides = [1, 1, 1]} : vector<2x16x128xf32> to vector<2x16x64xf32>
    %cst_22 = arith.constant 1.250000e-01 : f32
    %60 = vector.broadcast %cst_22 : f32 to vector<2x16x64xf32>
    %61 = arith.mulf %59, %60 : vector<2x16x64xf32>
    %62 = arith.truncf %61 : vector<2x16x64xf32> to vector<2x16x64xbf16>
    %63 = vector.extract_strided_slice %56 {offsets = [0, 0, 0], sizes = [2, 16, 64], strides = [1, 1, 1]} : vector<2x16x128xf32> to vector<2x16x64xf32>
    %64 = arith.truncf %63 : vector<2x16x64xf32> to vector<2x16x64xbf16>
    %65 = vector.extract_strided_slice %58 {offsets = [0, 0, 0], sizes = [2, 16, 64], strides = [1, 1, 1]} : vector<2x16x128xf32> to vector<2x16x64xf32>
    %66 = arith.truncf %65 : vector<2x16x64xf32> to vector<2x16x64xbf16>
    "tpu.trace_start"() <{level = 10 : i32, message = "bqd,bkd->bqk"}> : () -> ()
    %cst_23 = arith.constant dense<0.000000e+00> : vector<2x16x16xf32>
    %67 = tpu.matmul %62, %64, %cst_23 {dimension_numbers = #tpu.dot_dimension_numbers<[2], [2], [1], [1], [0, 0, 0, 1, 1, 1], [0], [0]>} : vector<2x16x64xbf16>, vector<2x16x64xbf16>, vector<2x16x16xf32> -> vector<2x16x16xf32>
    "tpu.trace_stop"() : () -> ()
    %cst_24 = arith.constant dense<0xFF800000> : vector<2x16xf32>
    %68 = vector.multi_reduction <maximumf>, %67, %cst_24 [2] : vector<2x16x16xf32> to vector<2x16xf32>
    %69 = vector.shape_cast %68 : vector<2x16xf32> to vector<2x16x1xf32>
    %70 = vector.broadcast %69 : vector<2x16x1xf32> to vector<2x16x16xf32>
    %71 = arith.subf %67, %70 : vector<2x16x16xf32>
    %72 = math.exp %71 : vector<2x16x16xf32>
    %cst_25 = arith.constant dense<0.000000e+00> : vector<2x16xf32>
    %73 = vector.multi_reduction <add>, %72, %cst_25 [2] : vector<2x16x16xf32> to vector<2x16xf32>
    %74 = vector.shape_cast %73 : vector<2x16xf32> to vector<2x16x1xf32>
    %75 = tpu.reciprocal %74 {approx = true} : vector<2x16x1xf32> -> vector<2x16x1xf32>
    %76 = vector.broadcast %75 : vector<2x16x1xf32> to vector<2x16x16xf32>
    %77 = arith.mulf %72, %76 : vector<2x16x16xf32>
    %78 = arith.truncf %77 : vector<2x16x16xf32> to vector<2x16x16xbf16>
    "tpu.trace_start"() <{level = 10 : i32, message = "bqk,bkd->bqd"}> : () -> ()
    %cst_26 = arith.constant dense<0.000000e+00> : vector<2x16x64xf32>
    %79 = tpu.matmul %78, %66, %cst_26 {dimension_numbers = #tpu.dot_dimension_numbers<[2], [1], [1], [2], [0, 0, 0, 1, 1, 2], [0], [0]>} : vector<2x16x16xbf16>, vector<2x16x64xbf16>, vector<2x16x64xf32> -> vector<2x16x64xf32>
    "tpu.trace_stop"() : () -> ()
    %80 = vector.extract_strided_slice %54 {offsets = [0, 0, 64], sizes = [2, 16, 64], strides = [1, 1, 1]} : vector<2x16x128xf32> to vector<2x16x64xf32>
    %cst_27 = arith.constant 1.250000e-01 : f32
    %81 = vector.broadcast %cst_27 : f32 to vector<2x16x64xf32>
    %82 = arith.mulf %80, %81 : vector<2x16x64xf32>
    %83 = arith.truncf %82 : vector<2x16x64xf32> to vector<2x16x64xbf16>
    %84 = vector.extract_strided_slice %56 {offsets = [0, 0, 64], sizes = [2, 16, 64], strides = [1, 1, 1]} : vector<2x16x128xf32> to vector<2x16x64xf32>
    %85 = arith.truncf %84 : vector<2x16x64xf32> to vector<2x16x64xbf16>
    %86 = vector.extract_strided_slice %58 {offsets = [0, 0, 64], sizes = [2, 16, 64], strides = [1, 1, 1]} : vector<2x16x128xf32> to vector<2x16x64xf32>
    %87 = arith.truncf %86 : vector<2x16x64xf32> to vector<2x16x64xbf16>
    "tpu.trace_start"() <{level = 10 : i32, message = "bqd,bkd->bqk"}> : () -> ()
    %cst_28 = arith.constant dense<0.000000e+00> : vector<2x16x16xf32>
    %88 = tpu.matmul %83, %85, %cst_28 {dimension_numbers = #tpu.dot_dimension_numbers<[2], [2], [1], [1], [0, 0, 0, 1, 1, 1], [0], [0]>} : vector<2x16x64xbf16>, vector<2x16x64xbf16>, vector<2x16x16xf32> -> vector<2x16x16xf32>
    "tpu.trace_stop"() : () -> ()
    %cst_29 = arith.constant dense<0xFF800000> : vector<2x16xf32>
    %89 = vector.multi_reduction <maximumf>, %88, %cst_29 [2] : vector<2x16x16xf32> to vector<2x16xf32>
    %90 = vector.shape_cast %89 : vector<2x16xf32> to vector<2x16x1xf32>
    %91 = vector.broadcast %90 : vector<2x16x1xf32> to vector<2x16x16xf32>
    %92 = arith.subf %88, %91 : vector<2x16x16xf32>
    %93 = math.exp %92 : vector<2x16x16xf32>
    %cst_30 = arith.constant dense<0.000000e+00> : vector<2x16xf32>
    %94 = vector.multi_reduction <add>, %93, %cst_30 [2] : vector<2x16x16xf32> to vector<2x16xf32>
    %95 = vector.shape_cast %94 : vector<2x16xf32> to vector<2x16x1xf32>
    %96 = tpu.reciprocal %95 {approx = true} : vector<2x16x1xf32> -> vector<2x16x1xf32>
    %97 = vector.broadcast %96 : vector<2x16x1xf32> to vector<2x16x16xf32>
    %98 = arith.mulf %93, %97 : vector<2x16x16xf32>
    %99 = arith.truncf %98 : vector<2x16x16xf32> to vector<2x16x16xbf16>
    "tpu.trace_start"() <{level = 10 : i32, message = "bqk,bkd->bqd"}> : () -> ()
    %cst_31 = arith.constant dense<0.000000e+00> : vector<2x16x64xf32>
    %100 = tpu.matmul %99, %87, %cst_31 {dimension_numbers = #tpu.dot_dimension_numbers<[2], [1], [1], [2], [0, 0, 0, 1, 1, 2], [0], [0]>} : vector<2x16x16xbf16>, vector<2x16x64xbf16>, vector<2x16x64xf32> -> vector<2x16x64xf32>
    "tpu.trace_stop"() : () -> ()
    %101 = tpu.concatenate %79, %100 in 2 : vector<2x16x64xf32>, vector<2x16x64xf32> -> vector<2x16x128xf32>
    %102 = vector.shape_cast %101 : vector<2x16x128xf32> to vector<32x128xf32>
    %c0_32 = arith.constant 0 : index
    %c384 = arith.constant 384 : index
    %103 = vector.load %arg7[%c0_32, %c384] : memref<128x1408xbf16, #tpu.memory_space<vmem>>, vector<128x128xbf16>
    %104 = arith.truncf %102 : vector<32x128xf32> to vector<32x128xbf16>
    %cst_33 = arith.constant dense<0.000000e+00> : vector<32x128xf32>
    %105 = tpu.matmul %104, %103, %cst_33 {dimension_numbers = #tpu.dot_dimension_numbers<[1], [0], [0], [1], [0, 0, 1, 1], [], []>} : vector<32x128xbf16>, vector<128x128xbf16>, vector<32x128xf32> -> vector<32x128xf32>
    %106 = vector.shape_cast %105 : vector<32x128xf32> to vector<2x16x128xf32>
    %c0_34 = arith.constant 0 : index
    %c512 = arith.constant 512 : index
    %107 = vector.load %arg9[%c0_34, %c512] : memref<1x1664xf32, #tpu.memory_space<vmem>>, vector<1x128xf32>
    %108 = vector.shape_cast %107 : vector<1x128xf32> to vector<1x1x128xf32>
    %109 = vector.broadcast %108 : vector<1x1x128xf32> to vector<2x16x128xf32>
    %110 = arith.addf %106, %109 : vector<2x16x128xf32>
    %111 = vector.broadcast %16 : vector<2x1x128xf32> to vector<2x16x128xf32>
    %112 = arith.mulf %111, %110 : vector<2x16x128xf32>
    %113 = arith.addf %12, %112 : vector<2x16x128xf32>
    %c0_35 = arith.constant 0 : index
    %c0_36 = arith.constant 0 : index
    %c0_37 = arith.constant 0 : index
    %114 = vector.load %arg3[%c0_35, %c0_36, %c0_37] : memref<2x8x128xf32, #tpu.memory_space<vmem>>, vector<2x8x128xf32>
    %115 = vector.shape_cast %113 : vector<2x16x128xf32> to vector<32x128xf32>
    %116 = arith.truncf %115 : vector<32x128xf32> to vector<32x128xbf16>
    %c0_38 = arith.constant 0 : index
    %c512_39 = arith.constant 512 : index
    %117 = vector.load %arg7[%c0_38, %c512_39] : memref<128x1408xbf16, #tpu.memory_space<vmem>>, vector<128x128xbf16>
    %cst_40 = arith.constant dense<0.000000e+00> : vector<32x128xf32>
    %118 = tpu.matmul %116, %117, %cst_40 {dimension_numbers = #tpu.dot_dimension_numbers<[1], [0], [0], [1], [0, 0, 1, 1], [], []>} : vector<32x128xbf16>, vector<128x128xbf16>, vector<32x128xf32> -> vector<32x128xf32>
    %c0_41 = arith.constant 0 : index
    %c640 = arith.constant 640 : index
    %119 = vector.load %arg9[%c0_41, %c640] : memref<1x1664xf32, #tpu.memory_space<vmem>>, vector<1x128xf32>
    %120 = vector.broadcast %119 : vector<1x128xf32> to vector<32x128xf32>
    %121 = arith.addf %118, %120 : vector<32x128xf32>
    %122 = vector.shape_cast %121 : vector<32x128xf32> to vector<2x16x128xf32>
    %123 = vector.shape_cast %114 : vector<2x8x128xf32> to vector<16x128xf32>
    %124 = arith.truncf %123 : vector<16x128xf32> to vector<16x128xbf16>
    %c0_42 = arith.constant 0 : index
    %c640_43 = arith.constant 640 : index
    %125 = vector.load %arg7[%c0_42, %c640_43] : memref<128x1408xbf16, #tpu.memory_space<vmem>>, vector<128x256xbf16>
    %cst_44 = arith.constant dense<0.000000e+00> : vector<16x256xf32>
    %126 = tpu.matmul %124, %125, %cst_44 {dimension_numbers = #tpu.dot_dimension_numbers<[1], [0], [0], [1], [0, 0, 1, 1], [], []>} : vector<16x128xbf16>, vector<128x256xbf16>, vector<16x256xf32> -> vector<16x256xf32>
    %c0_45 = arith.constant 0 : index
    %c768 = arith.constant 768 : index
    %127 = vector.load %arg9[%c0_45, %c768] : memref<1x1664xf32, #tpu.memory_space<vmem>>, vector<1x256xf32>
    %128 = vector.broadcast %127 : vector<1x256xf32> to vector<16x256xf32>
    %129 = arith.addf %126, %128 : vector<16x256xf32>
    %130 = vector.extract_strided_slice %129 {offsets = [0, 0], sizes = [16, 128], strides = [1, 1]} : vector<16x256xf32> to vector<16x128xf32>
    %131 = vector.shape_cast %130 : vector<16x128xf32> to vector<2x8x128xf32>
    %132 = vector.extract_strided_slice %129 {offsets = [0, 128], sizes = [16, 128], strides = [1, 1]} : vector<16x256xf32> to vector<16x128xf32>
    %133 = vector.shape_cast %132 : vector<16x128xf32> to vector<2x8x128xf32>
    %134 = vector.extract_strided_slice %122 {offsets = [0, 0, 0], sizes = [2, 16, 64], strides = [1, 1, 1]} : vector<2x16x128xf32> to vector<2x16x64xf32>
    %cst_46 = arith.constant 1.250000e-01 : f32
    %135 = vector.broadcast %cst_46 : f32 to vector<2x16x64xf32>
    %136 = arith.mulf %134, %135 : vector<2x16x64xf32>
    %137 = arith.truncf %136 : vector<2x16x64xf32> to vector<2x16x64xbf16>
    %138 = vector.extract_strided_slice %131 {offsets = [0, 0, 0], sizes = [2, 8, 64], strides = [1, 1, 1]} : vector<2x8x128xf32> to vector<2x8x64xf32>
    %139 = arith.truncf %138 : vector<2x8x64xf32> to vector<2x8x64xbf16>
    %140 = vector.extract_strided_slice %133 {offsets = [0, 0, 0], sizes = [2, 8, 64], strides = [1, 1, 1]} : vector<2x8x128xf32> to vector<2x8x64xf32>
    %141 = arith.truncf %140 : vector<2x8x64xf32> to vector<2x8x64xbf16>
    "tpu.trace_start"() <{level = 10 : i32, message = "bqd,bkd->bqk"}> : () -> ()
    %cst_47 = arith.constant dense<0.000000e+00> : vector<2x16x8xf32>
    %142 = tpu.matmul %137, %139, %cst_47 {dimension_numbers = #tpu.dot_dimension_numbers<[2], [2], [1], [1], [0, 0, 0, 1, 1, 1], [0], [0]>} : vector<2x16x64xbf16>, vector<2x8x64xbf16>, vector<2x16x8xf32> -> vector<2x16x8xf32>
    "tpu.trace_stop"() : () -> ()
    %cst_48 = arith.constant dense<0xFF800000> : vector<2x16xf32>
    %143 = vector.multi_reduction <maximumf>, %142, %cst_48 [2] : vector<2x16x8xf32> to vector<2x16xf32>
    %144 = vector.shape_cast %143 : vector<2x16xf32> to vector<2x16x1xf32>
    %145 = vector.broadcast %144 : vector<2x16x1xf32> to vector<2x16x8xf32>
    %146 = arith.subf %142, %145 : vector<2x16x8xf32>
    %147 = math.exp %146 : vector<2x16x8xf32>
    %cst_49 = arith.constant dense<0.000000e+00> : vector<2x16xf32>
    %148 = vector.multi_reduction <add>, %147, %cst_49 [2] : vector<2x16x8xf32> to vector<2x16xf32>
    %149 = vector.shape_cast %148 : vector<2x16xf32> to vector<2x16x1xf32>
    %150 = tpu.reciprocal %149 {approx = true} : vector<2x16x1xf32> -> vector<2x16x1xf32>
    %151 = vector.broadcast %150 : vector<2x16x1xf32> to vector<2x16x8xf32>
    %152 = arith.mulf %147, %151 : vector<2x16x8xf32>
    %153 = arith.truncf %152 : vector<2x16x8xf32> to vector<2x16x8xbf16>
    "tpu.trace_start"() <{level = 10 : i32, message = "bqk,bkd->bqd"}> : () -> ()
    %cst_50 = arith.constant dense<0.000000e+00> : vector<2x16x64xf32>
    %154 = tpu.matmul %153, %141, %cst_50 {dimension_numbers = #tpu.dot_dimension_numbers<[2], [1], [1], [2], [0, 0, 0, 1, 1, 2], [0], [0]>} : vector<2x16x8xbf16>, vector<2x8x64xbf16>, vector<2x16x64xf32> -> vector<2x16x64xf32>
    "tpu.trace_stop"() : () -> ()
    %155 = vector.extract_strided_slice %122 {offsets = [0, 0, 64], sizes = [2, 16, 64], strides = [1, 1, 1]} : vector<2x16x128xf32> to vector<2x16x64xf32>
    %cst_51 = arith.constant 1.250000e-01 : f32
    %156 = vector.broadcast %cst_51 : f32 to vector<2x16x64xf32>
    %157 = arith.mulf %155, %156 : vector<2x16x64xf32>
    %158 = arith.truncf %157 : vector<2x16x64xf32> to vector<2x16x64xbf16>
    %159 = vector.extract_strided_slice %131 {offsets = [0, 0, 64], sizes = [2, 8, 64], strides = [1, 1, 1]} : vector<2x8x128xf32> to vector<2x8x64xf32>
    %160 = arith.truncf %159 : vector<2x8x64xf32> to vector<2x8x64xbf16>
    %161 = vector.extract_strided_slice %133 {offsets = [0, 0, 64], sizes = [2, 8, 64], strides = [1, 1, 1]} : vector<2x8x128xf32> to vector<2x8x64xf32>
    %162 = arith.truncf %161 : vector<2x8x64xf32> to vector<2x8x64xbf16>
    "tpu.trace_start"() <{level = 10 : i32, message = "bqd,bkd->bqk"}> : () -> ()
    %cst_52 = arith.constant dense<0.000000e+00> : vector<2x16x8xf32>
    %163 = tpu.matmul %158, %160, %cst_52 {dimension_numbers = #tpu.dot_dimension_numbers<[2], [2], [1], [1], [0, 0, 0, 1, 1, 1], [0], [0]>} : vector<2x16x64xbf16>, vector<2x8x64xbf16>, vector<2x16x8xf32> -> vector<2x16x8xf32>
    "tpu.trace_stop"() : () -> ()
    %cst_53 = arith.constant dense<0xFF800000> : vector<2x16xf32>
    %164 = vector.multi_reduction <maximumf>, %163, %cst_53 [2] : vector<2x16x8xf32> to vector<2x16xf32>
    %165 = vector.shape_cast %164 : vector<2x16xf32> to vector<2x16x1xf32>
    %166 = vector.broadcast %165 : vector<2x16x1xf32> to vector<2x16x8xf32>
    %167 = arith.subf %163, %166 : vector<2x16x8xf32>
    %168 = math.exp %167 : vector<2x16x8xf32>
    %cst_54 = arith.constant dense<0.000000e+00> : vector<2x16xf32>
    %169 = vector.multi_reduction <add>, %168, %cst_54 [2] : vector<2x16x8xf32> to vector<2x16xf32>
    %170 = vector.shape_cast %169 : vector<2x16xf32> to vector<2x16x1xf32>
    %171 = tpu.reciprocal %170 {approx = true} : vector<2x16x1xf32> -> vector<2x16x1xf32>
    %172 = vector.broadcast %171 : vector<2x16x1xf32> to vector<2x16x8xf32>
    %173 = arith.mulf %168, %172 : vector<2x16x8xf32>
    %174 = arith.truncf %173 : vector<2x16x8xf32> to vector<2x16x8xbf16>
    "tpu.trace_start"() <{level = 10 : i32, message = "bqk,bkd->bqd"}> : () -> ()
    %cst_55 = arith.constant dense<0.000000e+00> : vector<2x16x64xf32>
    %175 = tpu.matmul %174, %162, %cst_55 {dimension_numbers = #tpu.dot_dimension_numbers<[2], [1], [1], [2], [0, 0, 0, 1, 1, 2], [0], [0]>} : vector<2x16x8xbf16>, vector<2x8x64xbf16>, vector<2x16x64xf32> -> vector<2x16x64xf32>
    "tpu.trace_stop"() : () -> ()
    %176 = tpu.concatenate %154, %175 in 2 : vector<2x16x64xf32>, vector<2x16x64xf32> -> vector<2x16x128xf32>
    %177 = vector.shape_cast %176 : vector<2x16x128xf32> to vector<32x128xf32>
    %c0_56 = arith.constant 0 : index
    %c896 = arith.constant 896 : index
    %178 = vector.load %arg7[%c0_56, %c896] : memref<128x1408xbf16, #tpu.memory_space<vmem>>, vector<128x128xbf16>
    %179 = arith.truncf %177 : vector<32x128xf32> to vector<32x128xbf16>
    %cst_57 = arith.constant dense<0.000000e+00> : vector<32x128xf32>
    %180 = tpu.matmul %179, %178, %cst_57 {dimension_numbers = #tpu.dot_dimension_numbers<[1], [0], [0], [1], [0, 0, 1, 1], [], []>} : vector<32x128xbf16>, vector<128x128xbf16>, vector<32x128xf32> -> vector<32x128xf32>
    %181 = vector.shape_cast %180 : vector<32x128xf32> to vector<2x16x128xf32>
    %182 = arith.addf %113, %181 : vector<2x16x128xf32>
    %c0_58 = arith.constant 0 : index
    %c1024 = arith.constant 1024 : index
    %183 = vector.load %arg9[%c0_58, %c1024] : memref<1x1664xf32, #tpu.memory_space<vmem>>, vector<1x128xf32>
    %184 = vector.shape_cast %183 : vector<1x128xf32> to vector<1x1x128xf32>
    %185 = vector.broadcast %184 : vector<1x1x128xf32> to vector<2x16x128xf32>
    %186 = arith.addf %182, %185 : vector<2x16x128xf32>
    %cst_59 = arith.constant dense<0.000000e+00> : vector<2x16xf32>
    %187 = vector.multi_reduction <add>, %186, %cst_59 [2] : vector<2x16x128xf32> to vector<2x16xf32>
    %188 = vector.shape_cast %187 : vector<2x16xf32> to vector<2x16x1xf32>
    %cst_60 = arith.constant 1.280000e+02 : f32
    %189 = vector.broadcast %cst_60 : f32 to vector<2x16x1xf32>
    %190 = arith.divf %188, %189 : vector<2x16x1xf32>
    %191 = arith.mulf %186, %186 : vector<2x16x128xf32>
    %cst_61 = arith.constant dense<0.000000e+00> : vector<2x16xf32>
    %192 = vector.multi_reduction <add>, %191, %cst_61 [2] : vector<2x16x128xf32> to vector<2x16xf32>
    %193 = vector.shape_cast %192 : vector<2x16xf32> to vector<2x16x1xf32>
    %cst_62 = arith.constant 1.280000e+02 : f32
    %194 = vector.broadcast %cst_62 : f32 to vector<2x16x1xf32>
    %195 = arith.divf %193, %194 : vector<2x16x1xf32>
    %196 = arith.mulf %190, %190 : vector<2x16x1xf32>
    %197 = arith.subf %195, %196 : vector<2x16x1xf32>
    %cst_63 = arith.constant 0.000000e+00 : f32
    %198 = vector.broadcast %cst_63 : f32 to vector<2x16x1xf32>
    %199 = arith.maximumf %197, %198 : vector<2x16x1xf32>
    %200 = vector.broadcast %190 : vector<2x16x1xf32> to vector<2x16x128xf32>
    %201 = arith.subf %186, %200 : vector<2x16x128xf32>
    %cst_64 = arith.constant 9.99999997E-7 : f32
    %202 = vector.broadcast %cst_64 : f32 to vector<2x16x1xf32>
    %203 = arith.addf %199, %202 : vector<2x16x1xf32>
    %204 = math.rsqrt %203 : vector<2x16x1xf32>
    %205 = vector.broadcast %204 : vector<2x16x1xf32> to vector<2x16x128xf32>
    %206 = arith.mulf %201, %205 : vector<2x16x128xf32>
    %cst_65 = arith.constant 1.000000e+00 : f32
    %207 = vector.broadcast %cst_65 : f32 to vector<2x1x128xf32>
    %208 = arith.addf %207, %18 : vector<2x1x128xf32>
    %209 = vector.broadcast %208 : vector<2x1x128xf32> to vector<2x16x128xf32>
    %210 = arith.mulf %206, %209 : vector<2x16x128xf32>
    %211 = vector.broadcast %17 : vector<2x1x128xf32> to vector<2x16x128xf32>
    %212 = arith.addf %210, %211 : vector<2x16x128xf32>
    %213 = vector.shape_cast %212 : vector<2x16x128xf32> to vector<32x128xf32>
    %214 = arith.truncf %213 : vector<32x128xf32> to vector<32x128xbf16>
    %c0_66 = arith.constant 0 : index
    %c1024_67 = arith.constant 1024 : index
    %215 = vector.load %arg7[%c0_66, %c1024_67] : memref<128x1408xbf16, #tpu.memory_space<vmem>>, vector<128x256xbf16>
    %cst_68 = arith.constant dense<0.000000e+00> : vector<32x256xf32>
    %216 = tpu.matmul %214, %215, %cst_68 {dimension_numbers = #tpu.dot_dimension_numbers<[1], [0], [0], [1], [0, 0, 1, 1], [], []>} : vector<32x128xbf16>, vector<128x256xbf16>, vector<32x256xf32> -> vector<32x256xf32>
    %c0_69 = arith.constant 0 : index
    %c1152 = arith.constant 1152 : index
    %217 = vector.load %arg9[%c0_69, %c1152] : memref<1x1664xf32, #tpu.memory_space<vmem>>, vector<1x256xf32>
    %218 = vector.broadcast %217 : vector<1x256xf32> to vector<32x256xf32>
    %219 = arith.addf %216, %218 : vector<32x256xf32>
    %220 = arith.mulf %219, %219 : vector<32x256xf32>
    %221 = arith.mulf %219, %220 : vector<32x256xf32>
    %cst_70 = arith.constant 4.471500e-02 : f32
    %222 = vector.broadcast %cst_70 : f32 to vector<32x256xf32>
    %223 = arith.mulf %222, %221 : vector<32x256xf32>
    %224 = arith.addf %219, %223 : vector<32x256xf32>
    %cst_71 = arith.constant 0.797884583 : f32
    %225 = vector.broadcast %cst_71 : f32 to vector<32x256xf32>
    %226 = arith.mulf %225, %224 : vector<32x256xf32>
    %227 = math.tanh %226 : vector<32x256xf32>
    %cst_72 = arith.constant 1.000000e+00 : f32
    %228 = vector.broadcast %cst_72 : f32 to vector<32x256xf32>
    %229 = arith.addf %228, %227 : vector<32x256xf32>
    %cst_73 = arith.constant 5.000000e-01 : f32
    %230 = vector.broadcast %cst_73 : f32 to vector<32x256xf32>
    %231 = arith.mulf %230, %229 : vector<32x256xf32>
    %232 = arith.mulf %219, %231 : vector<32x256xf32>
    %233 = arith.truncf %232 : vector<32x256xf32> to vector<32x256xbf16>
    %c0_74 = arith.constant 0 : index
    %c0_75 = arith.constant 0 : index
    %234 = vector.load %arg8[%c0_74, %c0_75] : memref<256x128xbf16, #tpu.memory_space<vmem>>, vector<256x128xbf16>
    %cst_76 = arith.constant dense<0.000000e+00> : vector<32x128xf32>
    %235 = tpu.matmul %233, %234, %cst_76 {dimension_numbers = #tpu.dot_dimension_numbers<[1], [0], [0], [1], [0, 0, 1, 1], [], []>} : vector<32x256xbf16>, vector<256x128xbf16>, vector<32x128xf32> -> vector<32x128xf32>
    %c0_77 = arith.constant 0 : index
    %c1408 = arith.constant 1408 : index
    %236 = vector.load %arg9[%c0_77, %c1408] : memref<1x1664xf32, #tpu.memory_space<vmem>>, vector<1x128xf32>
    %237 = vector.broadcast %236 : vector<1x128xf32> to vector<32x128xf32>
    %238 = arith.addf %235, %237 : vector<32x128xf32>
    %239 = vector.shape_cast %238 : vector<32x128xf32> to vector<2x16x128xf32>
    %240 = vector.broadcast %19 : vector<2x1x128xf32> to vector<2x16x128xf32>
    %241 = arith.mulf %240, %239 : vector<2x16x128xf32>
    %242 = arith.addf %186, %241 : vector<2x16x128xf32>
    %c0_78 = arith.constant 0 : index
    %c0_79 = arith.constant 0 : index
    %c0_80 = arith.constant 0 : index
    %243 = vector.load %arg5[%c0_78, %c0_79, %c0_80] : memref<2x2x128xf32, #tpu.memory_space<vmem>>, vector<2x2x128xf32>
    %cst_81 = arith.constant dense<0.000000e+00> : vector<2x16xf32>
    %244 = vector.multi_reduction <add>, %242, %cst_81 [2] : vector<2x16x128xf32> to vector<2x16xf32>
    %245 = vector.shape_cast %244 : vector<2x16xf32> to vector<2x16x1xf32>
    %cst_82 = arith.constant 1.280000e+02 : f32
    %246 = vector.broadcast %cst_82 : f32 to vector<2x16x1xf32>
    %247 = arith.divf %245, %246 : vector<2x16x1xf32>
    %248 = arith.mulf %242, %242 : vector<2x16x128xf32>
    %cst_83 = arith.constant dense<0.000000e+00> : vector<2x16xf32>
    %249 = vector.multi_reduction <add>, %248, %cst_83 [2] : vector<2x16x128xf32> to vector<2x16xf32>
    %250 = vector.shape_cast %249 : vector<2x16xf32> to vector<2x16x1xf32>
    %cst_84 = arith.constant 1.280000e+02 : f32
    %251 = vector.broadcast %cst_84 : f32 to vector<2x16x1xf32>
    %252 = arith.divf %250, %251 : vector<2x16x1xf32>
    %253 = arith.mulf %247, %247 : vector<2x16x1xf32>
    %254 = arith.subf %252, %253 : vector<2x16x1xf32>
    %cst_85 = arith.constant 0.000000e+00 : f32
    %255 = vector.broadcast %cst_85 : f32 to vector<2x16x1xf32>
    %256 = arith.maximumf %254, %255 : vector<2x16x1xf32>
    %257 = vector.broadcast %247 : vector<2x16x1xf32> to vector<2x16x128xf32>
    %258 = arith.subf %242, %257 : vector<2x16x128xf32>
    %cst_86 = arith.constant 9.99999997E-7 : f32
    %259 = vector.broadcast %cst_86 : f32 to vector<2x16x1xf32>
    %260 = arith.addf %256, %259 : vector<2x16x1xf32>
    %261 = math.rsqrt %260 : vector<2x16x1xf32>
    %262 = vector.broadcast %261 : vector<2x16x1xf32> to vector<2x16x128xf32>
    %263 = arith.mulf %258, %262 : vector<2x16x128xf32>
    %264 = vector.extract_strided_slice %243 {offsets = [0, 1, 0], sizes = [2, 1, 128], strides = [1, 1, 1]} : vector<2x2x128xf32> to vector<2x1x128xf32>
    %cst_87 = arith.constant 1.000000e+00 : f32
    %265 = vector.broadcast %cst_87 : f32 to vector<2x1x128xf32>
    %266 = arith.addf %265, %264 : vector<2x1x128xf32>
    %267 = vector.broadcast %266 : vector<2x1x128xf32> to vector<2x16x128xf32>
    %268 = arith.mulf %263, %267 : vector<2x16x128xf32>
    %269 = vector.extract_strided_slice %243 {offsets = [0, 0, 0], sizes = [2, 1, 128], strides = [1, 1, 1]} : vector<2x2x128xf32> to vector<2x1x128xf32>
    %270 = vector.broadcast %269 : vector<2x1x128xf32> to vector<2x16x128xf32>
    %271 = arith.addf %268, %270 : vector<2x16x128xf32>
    %272 = vector.shape_cast %271 : vector<2x16x128xf32> to vector<32x128xf32>
    %273 = arith.truncf %272 : vector<32x128xf32> to vector<32x128xbf16>
    %c0_88 = arith.constant 0 : index
    %c1280 = arith.constant 1280 : index
    %274 = vector.load %arg7[%c0_88, %c1280] : memref<128x1408xbf16, #tpu.memory_space<vmem>>, vector<128x128xbf16>
    %cst_89 = arith.constant dense<0.000000e+00> : vector<32x128xf32>
    %275 = tpu.matmul %273, %274, %cst_89 {dimension_numbers = #tpu.dot_dimension_numbers<[1], [0], [0], [1], [0, 0, 1, 1], [], []>} : vector<32x128xbf16>, vector<128x128xbf16>, vector<32x128xf32> -> vector<32x128xf32>
    %c0_90 = arith.constant 0 : index
    %c1536 = arith.constant 1536 : index
    %276 = vector.load %arg9[%c0_90, %c1536] : memref<1x1664xf32, #tpu.memory_space<vmem>>, vector<1x128xf32>
    %277 = vector.broadcast %276 : vector<1x128xf32> to vector<32x128xf32>
    %278 = arith.addf %275, %277 : vector<32x128xf32>
    %279 = vector.shape_cast %278 : vector<32x128xf32> to vector<2x16x128xf32>
    %c0_91 = arith.constant 0 : index
    %c0_92 = arith.constant 0 : index
    %c0_93 = arith.constant 0 : index
    %280 = vector.load %arg10[%c0_91, %c0_92, %c0_93] : memref<2x16x128xf32, #tpu.memory_space<vmem>>, vector<2x16x128xf32>
    tpu.vector_store %arg10[%c0_91, %c0_92, %c0_93], %279 {strides = array<i32>} : memref<2x16x128xf32, #tpu.memory_space<vmem>>, vector<2x16x128xf32>,
    return
  }
  func.func @transform_0(%arg0: i32) -> (i32, i32, i32) {
    %c0_i32 = arith.constant 0 : i32
    %c0_i32_0 = arith.constant 0 : i32
    %c0_i32_1 = arith.constant 0 : i32
    %c0_i32_2 = arith.constant 0 : i32
    return %c0_i32, %c0_i32_0, %c0_i32_1 : i32, i32, i32
  }
  func.func @transform_1(%arg0: i32) -> (i32, i32) {
    %c0_i32 = arith.constant 0 : i32
    %c0_i32_0 = arith.constant 0 : i32
    %c0_i32_1 = arith.constant 0 : i32
    return %c0_i32, %c0_i32_0 : i32, i32
  }
  func.func @transform_2(%arg0: i32) -> (i32, i32, i32) {
    %c0_i32 = arith.constant 0 : i32
    %c0_i32_0 = arith.constant 0 : i32
    %c0_i32_1 = arith.constant 0 : i32
    %c0_i32_2 = arith.constant 0 : i32
    return %c0_i32, %c0_i32_0, %c0_i32_1 : i32, i32, i32
  }
  func.func @transform_3(%arg0: i32) -> (i32, i32, i32) {
    %c0_i32 = arith.constant 0 : i32
    %c0_i32_0 = arith.constant 0 : i32
    %c0_i32_1 = arith.constant 0 : i32
    %c0_i32_2 = arith.constant 0 : i32
    return %c0_i32, %c0_i32_0, %c0_i32_1 : i32, i32, i32
  }
  func.func @transform_4(%arg0: i32) -> (i32, i32, i32) {
    %c0_i32 = arith.constant 0 : i32
    %c0_i32_0 = arith.constant 0 : i32
    %c0_i32_1 = arith.constant 0 : i32
    %c0_i32_2 = arith.constant 0 : i32
    return %c0_i32, %c0_i32_0, %c0_i32_1 : i32, i32, i32
  }
  func.func @transform_5(%arg0: i32) -> (i32, i32) {
    %c0_i32 = arith.constant 0 : i32
    %c0_i32_0 = arith.constant 0 : i32
    %c0_i32_1 = arith.constant 0 : i32
    return %c0_i32, %c0_i32_0 : i32, i32
  }
  func.func @transform_6(%arg0: i32) -> (i32, i32) {
    %c0_i32 = arith.constant 0 : i32
    %c0_i32_0 = arith.constant 0 : i32
    %c0_i32_1 = arith.constant 0 : i32
    return %c0_i32, %c0_i32_0 : i32, i32
  }
  func.func @transform_7(%arg0: i32) -> (i32, i32) {
    %c0_i32 = arith.constant 0 : i32
    %c0_i32_0 = arith.constant 0 : i32
    %c0_i32_1 = arith.constant 0 : i32
    return %c0_i32, %c0_i32_0 : i32, i32
  }
  func.func @transform_8(%arg0: i32) -> (i32, i32) {
    %c0_i32 = arith.constant 0 : i32
    %c0_i32_0 = arith.constant 0 : i32
    %c0_i32_1 = arith.constant 0 : i32
    return %c0_i32, %c0_i32_0 : i32, i32
  }
  func.func @transform_9(%arg0: i32) -> (i32, i32, i32) {
    %c0_i32 = arith.constant 0 : i32
    %c0_i32_0 = arith.constant 0 : i32
    %c0_i32_1 = arith.constant 0 : i32
    %c0_i32_2 = arith.constant 0 : i32
    return %c0_i32, %c0_i32_0, %c0_i32_1 : i32, i32, i32
  }
}

</mosaic_0001>

<llo_original>
// kernel: custom-call
$region0: #{custom-call}
  %s0 = inlined_call_operand.vmem [shape: f32[1664], index: 0, kind: output, shape index: {}]

// kernel: _pixart_denoise.1
$region0: #{_pixart_denoise.1}
  #allocation0 [shape = 'u32[]', space=smem, size = 0x4, offset = 0x4, fixed_abs, tag = 'smem constant byte address 0x4 - core index']
  #allocation1 [shape = 'u32[144,128]{1,0:T(1,128)}', space=vmem, size = 0x12000, scoped, tag = 'internal scratch']
  %s0 = inlined_call_operand.vmem [shape: f32[2,16,128], index: 0, kind: input, shape index: {}]
  %s1 = inlined_call_operand.vmem [shape: f32[16,128], index: 1, kind: input, shape index: {}]
  %s2 = inlined_call_operand.vmem [shape: f32[2,8,128], index: 2, kind: input, shape index: {}]
  %s3 = inlined_call_operand.vmem [shape: f32[2,6,128], index: 3, kind: input, shape index: {}]
  %s4 = inlined_call_operand.vmem [shape: f32[2,2,128], index: 4, kind: input, shape index: {}]
  %s5 = inlined_call_operand.vmem [shape: bf16[128,128], index: 5, kind: input, shape index: {}]
  %s6 = inlined_call_operand.vmem [shape: bf16[128,1408], index: 6, kind: input, shape index: {}]
  %s7 = inlined_call_operand.vmem [shape: bf16[256,128], index: 7, kind: input, shape index: {}]
  %s8 = inlined_call_operand.vmem [shape: f32[1,1664], index: 8, kind: input, shape index: {}]
  %s9 = inlined_call_operand.vmem [shape: f32[2,16,128], index: 9, kind: output, shape index: {}]
  %s10 = sld [smem:[#allocation0]]
  $region46: #{_pixart_denoise.1} parent=0
    _
  %s12 = ssub.s32 1, %s10
  %s13 = scalar_select 0, %s12, %s10
  // Predicated region
  $region2: #{_pixart_denoise.1} parent=0 // pred_check
    _
  $region3: #{_pixart_denoise.1} parent=0 // pred_check_branch
    %15 = sbr.rel (0) target = $region5
  $region4: #{_pixart_denoise.1} parent=0 // pred_region
    _
  $region5: #{_pixart_denoise.1} parent=0 // pred_fallthru
    _
  // Predicated region
  $region6: #{_pixart_denoise.1} parent=0 // pred_check
    _
  $region7: #{_pixart_denoise.1} parent=0 // pred_check_branch
    %17 = sbr.rel (0) target = $region9
  $region8: #{_pixart_denoise.1} parent=0 // pred_region
    _
  $region9: #{_pixart_denoise.1} parent=0 // pred_fallthru
    _
  // Predicated region
  $region10: #{_pixart_denoise.1} parent=0 // pred_check
    _
  $region11: #{_pixart_denoise.1} parent=0 // pred_check_branch
    %19 = sbr.rel (0) target = $region13
  $region12: #{_pixart_denoise.1} parent=0 // pred_region
    _
  $region13: #{_pixart_denoise.1} parent=0 // pred_fallthru
    _
  // Predicated region
  $region14: #{_pixart_denoise.1} parent=0 // pred_check
    _
  $region15: #{_pixart_denoise.1} parent=0 // pred_check_branch
    %21 = sbr.rel (0) target = $region17
  $region16: #{_pixart_denoise.1} parent=0 // pred_region
    _
  $region17: #{_pixart_denoise.1} parent=0 // pred_fallthru
    _
  // Predicated region
  $region18: #{_pixart_denoise.1} parent=0 // pred_check
    _
  $region19: #{_pixart_denoise.1} parent=0 // pred_check_branch
    %23 = sbr.rel (0) target = $region21
  $region20: #{_pixart_denoise.1} parent=0 // pred_region
    _
  $region21: #{_pixart_denoise.1} parent=0 // pred_fallthru
    _
  // Predicated region
  $region22: #{_pixart_denoise.1} parent=0 // pred_check
    _
  $region23: #{_pixart_denoise.1} parent=0 // pred_check_branch
    %25 = sbr.rel (0) target = $region25
  $region24: #{_pixart_denoise.1} parent=0 // pred_region
    _
  $region25: #{_pixart_denoise.1} parent=0 // pred_fallthru
    _
  // Predicated region
  $region26: #{_pixart_denoise.1} parent=0 // pred_check
    _
  $region27: #{_pixart_denoise.1} parent=0 // pred_check_branch
    %27 = sbr.rel (0) target = $region29
  $region28: #{_pixart_denoise.1} parent=0 // pred_region
    _
  $region29: #{_pixart_denoise.1} parent=0 // pred_fallthru
    _
  // Predicated region
  $region30: #{_pixart_denoise.1} parent=0 // pred_check
    _
  $region31: #{_pixart_denoise.1} parent=0 // pred_check_branch
    %29 = sbr.rel (0) target = $region33
  $region32: #{_pixart_denoise.1} parent=0 // pred_region
    _
  $region33: #{_pixart_denoise.1} parent=0 // pred_fallthru
    _
  // Predicated region
  $region34: #{_pixart_denoise.1} parent=0 // pred_check
    _
  $region35: #{_pixart_denoise.1} parent=0 // pred_check_branch
    %31 = sbr.rel (0) target = $region37
  $region36: #{_pixart_denoise.1} parent=0 // pred_region
    _
  $region37: #{_pixart_denoise.1} parent=0 // pred_fallthru
    _
  %v33 = vld [vmem:[%s0] sm:$0xff]
  %v34 = vld [vmem:[%s0 + $0x8] sm:$0xff]
  %v35 = vld [vmem:[%s0 + $0x10] sm:$0xff]
  %v36 = vld [vmem:[%s0 + $0x18] sm:$0xff]
  %v37 = vpack.c.bf16 %v34, %v33
  %v38 = vpack.c.bf16 %v36, %v35
  %v39 = vld [vmem:[%s5] sm:$0xf]
  %v40 = vld [vmem:[%s5 + $0x4] sm:$0xf]
  %v41 = vld [vmem:[%s5 + $0x8] sm:$0xf]
  %v42 = vld [vmem:[%s5 + $0xc] sm:$0xf]
  %v43 = vld [vmem:[%s5 + $0x10] sm:$0xf]
  %v44 = vld [vmem:[%s5 + $0x14] sm:$0xf]
  %v45 = vld [vmem:[%s5 + $0x18] sm:$0xf]
  %v46 = vld [vmem:[%s5 + $0x1c] sm:$0xf]
  %v47 = vld [vmem:[%s5 + $0x20] sm:$0xf]
  %v48 = vld [vmem:[%s5 + $0x24] sm:$0xf]
  %v49 = vld [vmem:[%s5 + $0x28] sm:$0xf]
  %v50 = vld [vmem:[%s5 + $0x2c] sm:$0xf]
  %v51 = vld [vmem:[%s5 + $0x30] sm:$0xf]
  %v52 = vld [vmem:[%s5 + $0x34] sm:$0xf]
  %v53 = vld [vmem:[%s5 + $0x38] sm:$0xf]
  %v54 = vld [vmem:[%s5 + $0x3c] sm:$0xf]
  %v55 = vld [vmem:[%s8] sm:$0x1]
  %v57 = vlaneseq
  %v58 = vshrl.u32 %v57, 7
  %v59 = vsub.s32 0, %v58
  %v60 = vrot.slane %v55, %v59
  %v78 = vunpack.c.l.b16 %v39
  %v79 = vunpack.c.l.b16 %v40
  %v80 = vunpack.c.l.b16 %v41
  %v81 = vunpack.c.l.b16 %v42
  %v82 = vunpack.c.l.b16 %v43
  %v83 = vunpack.c.l.b16 %v44
  %v84 = vunpack.c.l.b16 %v45
  %v85 = vunpack.c.l.b16 %v46
  %v86 = vunpack.c.l.b16 %v47
  %v87 = vunpack.c.l.b16 %v48
  %v88 = vunpack.c.l.b16 %v49
  %v89 = vunpack.c.l.b16 %v50
  %v90 = vunpack.c.l.b16 %v51
  %v91 = vunpack.c.l.b16 %v52
  %v92 = vunpack.c.l.b16 %v53
  %v93 = vunpack.c.l.b16 %v54
  %v94 = vpack.c.b16 %v79, %v78
  %v95 = vpack.c.b16 %v81, %v80
  %v96 = vpack.c.b16 %v83, %v82
  %v97 = vpack.c.b16 %v85, %v84
  %v98 = vpack.c.b16 %v87, %v86
  %v99 = vpack.c.b16 %v89, %v88
  %v100 = vpack.c.b16 %v91, %v90
  %v101 = vpack.c.b16 %v93, %v92
  %110 = vmatprep.subr.bf16.mxu0 0
  %111 = vmatpush1.bf16.msra.mxu0 %v94
  %112 = vmatprep.subr.bf16.mxu0 0
  %113 = vmatpush1.bf16.msra.mxu0 %v95
  %114 = vmatprep.subr.bf16.mxu0 0
  %115 = vmatpush1.bf16.msra.mxu0 %v96
  %116 = vmatprep.subr.bf16.mxu0 0
  %117 = vmatpush1.bf16.msra.mxu0 %v97
  %118 = vmatprep.subr.bf16.mxu0 0
  %119 = vmatpush1.bf16.msra.mxu0 %v98
  %120 = vmatprep.subr.bf16.mxu0 0
  %121 = vmatpush1.bf16.msra.mxu0 %v99
  %122 = vmatprep.subr.bf16.mxu0 0
  %123 = vmatpush1.bf16.msra.mxu0 %v100
  %124 = vmatprep.subr.bf16.mxu0 0
  %125 = vmatpush1.bf16.msra.mxu0 %v101
  %126 = vmatprep.subr.bf16.mxu0 0
  %127 = vmatpush1.bf16.msra.mxu0 0
  %128 = vmatprep.subr.bf16.mxu0 0
  %129 = vmatpush1.bf16.msra.mxu0 0
  %130 = vmatprep.subr.bf16.mxu0 0
  %131 = vmatpush1.bf16.msra.mxu0 0
  %132 = vmatprep.subr.bf16.mxu0 0
  %133 = vmatpush1.bf16.msra.mxu0 0
  %134 = vmatprep.subr.bf16.mxu0 0
  %135 = vmatpush1.bf16.msra.mxu0 0
  %136 = vmatprep.subr.bf16.mxu0 0
  %137 = vmatpush1.bf16.msra.mxu0 0
  %138 = vmatprep.subr.bf16.mxu0 0
  %139 = vmatpush1.bf16.msra.mxu0 0
  %140 = vmatprep.subr.bf16.mxu0 0
  %141 = vmatpush1.bf16.msra.mxu0 0
  %142 = vmatprep.mubr.bf16.mxu0 0
  %143 = vmatmul.mubr.bf16.gmra.mrb[0].mxu0 %v37
  %v144 = vpop.f32.mrb[0].mxu0
  %v145 = vadd.f32 %v60, %v144
  %v146 = vpop.f32.mrb[0].mxu0
  %v147 = vpop.f32.mrb[0].mxu0
  %v148 = vadd.f32 %v60, %v147
  %v149 = vpop.f32.mrb[0].mxu0
  %150 = vmatprep.mubr.bf16.mxu0 0
  %151 = vmatmul.mubr.bf16.gmra.mrb[0].mxu0 %v38
  %v152 = vpop.f32.mrb[0].mxu0
  %v153 = vadd.f32 %v60, %v152
  %v154 = vpop.f32.mrb[0].mxu0
  %v155 = vpop.f32.mrb[0].mxu0
  %v156 = vadd.f32 %v60, %v155
  %v157 = vpop.f32.mrb[0].mxu0
  %158 = vdwg.mxu0
  %v159 = vld [vmem:[%s1] sm:$0xff]
  %v160 = vld [vmem:[%s1 + $0x8] sm:$0xff]
  %v161 = vadd.f32 %v145, %v159
  %v162 = vadd.f32 %v148, %v160
  %v163 = vadd.f32 %v153, %v159
  %v164 = vadd.f32 %v156, %v160
  %v165 = vld [vmem:[%s3] sm:$0x3f]
  %v166 = vld [vmem:[%s3 + $0x8] sm:$0x3f]
  %167 = vadd.xlane.f32.xlu0 %v161
  %v168 = vpop.xlane.xlu0 %167
  %169 = vadd.xlane.f32.xlu0 %v162
  %v170 = vpop.xlane.xlu0 %169
  %171 = vadd.xlane.f32.xlu0 %v163
  %v172 = vpop.xlane.xlu0 %171
  %173 = vadd.xlane.f32.xlu0 %v164
  %v174 = vpop.xlane.xlu0 %173
  %v175 = vrcp.pop 128.0
  %v176 = vmul.f32 %v168, %v175
  %v177 = vmul.f32 %v170, %v175
  %v178 = vmul.f32 %v172, %v175
  %v179 = vmul.f32 %v174, %v175
  %v180 = vmul.f32 %v161, %v161
  %v181 = vmul.f32 %v162, %v162
  %v182 = vmul.f32 %v163, %v163
  %v183 = vmul.f32 %v164, %v164
  %184 = vadd.xlane.f32.xlu0 %v180
  %v185 = vpop.xlane.xlu0 %184
  %186 = vadd.xlane.f32.xlu0 %v181
  %v187 = vpop.xlane.xlu0 %186
  %188 = vadd.xlane.f32.xlu0 %v182
  %v189 = vpop.xlane.xlu0 %188
  %190 = vadd.xlane.f32.xlu0 %v183
  %v191 = vpop.xlane.xlu0 %190
  %v192 = vmul.f32 %v185, %v175
  %v193 = vmul.f32 %v187, %v175
  %v194 = vmul.f32 %v189, %v175
  %v195 = vmul.f32 %v191, %v175
  %v196 = vmul.f32 %v176, %v176
  %v197 = vmul.f32 %v177, %v177
  %v198 = vmul.f32 %v178, %v178
  %v199 = vmul.f32 %v179, %v179
  %v200 = vsub.f32 %v192, %v196
  %v201 = vsub.f32 %v193, %v197
  %v202 = vsub.f32 %v194, %v198
  %v203 = vsub.f32 %v195, %v199
  %v204 = vmax.f32 %v200, 0.0
  %v205 = vmax.f32 %v201, 0.0
  %v206 = vmax.f32 %v202, 0.0
  %v207 = vmax.f32 %v203, 0.0
  %v208 = vsub.f32 %v161, %v176
  %v209 = vsub.f32 %v162, %v177
  %v210 = vsub.f32 %v163, %v178
  %v211 = vsub.f32 %v164, %v179
  %v212 = vadd.f32 %v204, 1e-06
  %v213 = vadd.f32 %v205, 1e-06
  %v214 = vadd.f32 %v206, 1e-06
  %v215 = vadd.f32 %v207, 1e-06
  %v216 = vrsqrt.pop %v212
  %v217 = vrsqrt.pop %v213
  %v218 = vrsqrt.pop %v214
  %v219 = vrsqrt.pop %v215
  %v220 = vmul.f32 %v208, %v216
  %v221 = vmul.f32 %v209, %v217
  %v222 = vmul.f32 %v210, %v218
  %v223 = vmul.f32 %v211, %v219
  %v224 = vadd.f32 %v165, 1.0
  %v225 = vadd.f32 %v166, 1.0
  %v226 = vlaneseq
  %v227 = vshrl.u32 %v226, 7
  %v228 = vsub.s32 1, %v227
  %v229 = vrot.slane %v224, %v228
  %v230 = vlaneseq
  %v231 = vshrl.u32 %v230, 7
  %v232 = vsub.s32 1, %v231
  %v233 = vrot.slane %v225, %v232
  %v234 = vmul.f32 %v220, %v229
  %v235 = vmul.f32 %v221, %v229
  %v236 = vmul.f32 %v222, %v233
  %v237 = vmul.f32 %v223, %v233
  %v238 = vlaneseq
  %v239 = vshrl.u32 %v238, 7
  %v240 = vsub.s32 0, %v239
  %v241 = vrot.slane %v165, %v240
  %v242 = vlaneseq
  %v243 = vshrl.u32 %v242, 7
  %v244 = vsub.s32 0, %v243
  %v245 = vrot.slane %v166, %v244
  %v246 = vadd.f32 %v234, %v241
  %v247 = vadd.f32 %v235, %v241
  %v248 = vadd.f32 %v236, %v245
  %v249 = vadd.f32 %v237, %v245
  %v250 = vpack.c.bf16 %v247, %v246
  %v251 = vpack.c.bf16 %v249, %v248
  %v252 = vld [vmem:[%s6] sm:$0xff]
  %v253 = vld [vmem:[%s6 + $0x8] sm:$0xf]
  %v254 = vld [vmem:[%s6 + $0x2c] sm:$0xff]
  %v255 = vld [vmem:[%s6 + $0x34] sm:$0xf]
  %v256 = vld [vmem:[%s6 + $0x58] sm:$0xff]
  %v257 = vld [vmem:[%s6 + $0x60] sm:$0xf]
  %v258 = vld [vmem:[%s6 + $0x84] sm:$0xff]
  %v259 = vld [vmem:[%s6 + $0x8c] sm:$0xf]
  %v260 = vld [vmem:[%s6 + $0xb0] sm:$0xff]
  %v261 = vld [vmem:[%s6 + $0xb8] sm:$0xf]
  %v262 = vld [vmem:[%s6 + $0xdc] sm:$0xff]
  %v263 = vld [vmem:[%s6 + $0xe4] sm:$0xf]
  %v264 = vld [vmem:[%s6 + $0x108] sm:$0xff]
  %v265 = vld [vmem:[%s6 + $0x110] sm:$0xf]
  %v266 = vld [vmem:[%s6 + $0x134] sm:$0xff]
  %v267 = vld [vmem:[%s6 + $0x13c] sm:$0xf]
  %v268 = vld [vmem:[%s6 + $0x160] sm:$0xff]
  %v269 = vld [vmem:[%s6 + $0x168] sm:$0xf]
  %v270 = vld [vmem:[%s6 + $0x18c] sm:$0xff]
  %v271 = vld [vmem:[%s6 + $0x194] sm:$0xf]
  %v272 = vld [vmem:[%s6 + $0x1b8] sm:$0xff]
  %v273 = vld [vmem:[%s6 + $0x1c0] sm:$0xf]
  %v274 = vld [vmem:[%s6 + $0x1e4] sm:$0xff]
  %v275 = vld [vmem:[%s6 + $0x1ec] sm:$0xf]
  %v276 = vld [vmem:[%s6 + $0x210] sm:$0xff]
  %v277 = vld [vmem:[%s6 + $0x218] sm:$0xf]
  %v278 = vld [vmem:[%s6 + $0x23c] sm:$0xff]
  %v279 = vld [vmem:[%s6 + $0x244] sm:$0xf]
  %v280 = vld [vmem:[%s6 + $0x268] sm:$0xff]
  %v281 = vld [vmem:[%s6 + $0x270] sm:$0xf]
  %v282 = vld [vmem:[%s6 + $0x294] sm:$0xff]
  %v283 = vld [vmem:[%s6 + $0x29c] sm:$0xf]
  %v284 = vld [vmem:[%s8 + $0x1] sm:$0x7]
  %v286 = vlaneseq
  %v287 = vshrl.u32 %v286, 7
  %v288 = vsub.s32 0, %v287
  %v289 = vrot.slane %v284, %v288
  %v290 = vlaneseq
  %v291 = vshrl.u32 %v290, 7
  %v292 = vsub.s32 1, %v291
  %v293 = vrot.slane %v284, %v292
  %v294 = vlaneseq
  %v295 = vshrl.u32 %v294, 7
  %v296 = vsub.s32 2, %v295
  %v297 = vrot.slane %v284, %v296
  %v333 = vunpack.c.l.b16 %v252
  %v334 = vunpack.c.h.b16 %v252
  %v335 = vunpack.c.l.b16 %v253
  %v336 = vunpack.c.l.b16 %v254
  %v337 = vunpack.c.h.b16 %v254
  %v338 = vunpack.c.l.b16 %v255
  %v339 = vunpack.c.l.b16 %v256
  %v340 = vunpack.c.h.b16 %v256
  %v341 = vunpack.c.l.b16 %v257
  %v342 = vunpack.c.l.b16 %v258
  %v343 = vunpack.c.h.b16 %v258
  %v344 = vunpack.c.l.b16 %v259
  %v345 = vunpack.c.l.b16 %v260
  %v346 = vunpack.c.h.b16 %v260
  %v347 = vunpack.c.l.b16 %v261
  %v348 = vunpack.c.l.b16 %v262
  %v349 = vunpack.c.h.b16 %v262
  %v350 = vunpack.c.l.b16 %v263
  %v351 = vunpack.c.l.b16 %v264
  %v352 = vunpack.c.h.b16 %v264
  %v353 = vunpack.c.l.b16 %v265
  %v354 = vunpack.c.l.b16 %v266
  %v355 = vunpack.c.h.b16 %v266
  %v356 = vunpack.c.l.b16 %v267
  %v357 = vunpack.c.l.b16 %v268
  %v358 = vunpack.c.h.b16 %v268
  %v359 = vunpack.c.l.b16 %v269
  %v360 = vunpack.c.l.b16 %v270
  %v361 = vunpack.c.h.b16 %v270
  %v362 = vunpack.c.l.b16 %v271
  %v363 = vunpack.c.l.b16 %v272
  %v364 = vunpack.c.h.b16 %v272
  %v365 = vunpack.c.l.b16 %v273
  %v366 = vunpack.c.l.b16 %v274
  %v367 = vunpack.c.h.b16 %v274
  %v368 = vunpack.c.l.b16 %v275
  %v369 = vunpack.c.l.b16 %v276
  %v370 = vunpack.c.h.b16 %v276
  %v371 = vunpack.c.l.b16 %v277
  %v372 = vunpack.c.l.b16 %v278
  %v373 = vunpack.c.h.b16 %v278
  %v374 = vunpack.c.l.b16 %v279
  %v375 = vunpack.c.l.b16 %v280
  %v376 = vunpack.c.h.b16 %v280
  %v377 = vunpack.c.l.b16 %v281
  %v378 = vunpack.c.l.b16 %v282
  %v379 = vunpack.c.h.b16 %v282
  %v380 = vunpack.c.l.b16 %v283
  %v381 = vpack.c.b16 %v336, %v333
  %v382 = vpack.c.b16 %v337, %v334
  %v383 = vpack.c.b16 %v338, %v335
  %v384 = vpack.c.b16 %v342, %v339
  %v385 = vpack.c.b16 %v343, %v340
  %v386 = vpack.c.b16 %v344, %v341
  %v387 = vpack.c.b16 %v348, %v345
  %v388 = vpack.c.b16 %v349, %v346
  %v389 = vpack.c.b16 %v350, %v347
  %v390 = vpack.c.b16 %v354, %v351
  %v391 = vpack.c.b16 %v355, %v352
  %v392 = vpack.c.b16 %v356, %v353
  %v393 = vpack.c.b16 %v360, %v357
  %v394 = vpack.c.b16 %v361, %v358
  %v395 = vpack.c.b16 %v362, %v359
  %v396 = vpack.c.b16 %v366, %v363
  %v397 = vpack.c.b16 %v367, %v364
  %v398 = vpack.c.b16 %v368, %v365
  %v399 = vpack.c.b16 %v372, %v369
  %v400 = vpack.c.b16 %v373, %v370
  %v401 = vpack.c.b16 %v374, %v371
  %v402 = vpack.c.b16 %v378, %v375
  %v403 = vpack.c.b16 %v379, %v376
  %v404 = vpack.c.b16 %v380, %v377
  %429 = vmatprep.subr.bf16.mxu0 %v382
  %430 = vmatpush1.bf16.msra.mxu0 %v381
  %431 = vmatprep.subr.bf16.mxu0 %v385
  %432 = vmatpush1.bf16.msra.mxu0 %v384
  %433 = vmatprep.subr.bf16.mxu0 %v388
  %434 = vmatpush1.bf16.msra.mxu0 %v387
  %435 = vmatprep.subr.bf16.mxu0 %v391
  %436 = vmatpush1.bf16.msra.mxu0 %v390
  %437 = vmatprep.subr.bf16.mxu0 %v394
  %438 = vmatpush1.bf16.msra.mxu0 %v393
  %439 = vmatprep.subr.bf16.mxu0 %v397
  %440 = vmatpush1.bf16.msra.mxu0 %v396
  %441 = vmatprep.subr.bf16.mxu0 %v400
  %442 = vmatpush1.bf16.msra.mxu0 %v399
  %443 = vmatprep.subr.bf16.mxu0 %v403
  %444 = vmatpush1.bf16.msra.mxu0 %v402
  %445 = vmatprep.subr.bf16.mxu0 0
  %446 = vmatpush1.bf16.msra.mxu0 0
  %447 = vmatprep.subr.bf16.mxu0 0
  %448 = vmatpush1.bf16.msra.mxu0 0
  %449 = vmatprep.subr.bf16.mxu0 0
  %450 = vmatpush1.bf16.msra.mxu0 0
  %451 = vmatprep.subr.bf16.mxu0 0
  %452 = vmatpush1.bf16.msra.mxu0 0
  %453 = vmatprep.subr.bf16.mxu0 0
  %454 = vmatpush1.bf16.msra.mxu0 0
  %455 = vmatprep.subr.bf16.mxu0 0
  %456 = vmatpush1.bf16.msra.mxu0 0
  %457 = vmatprep.subr.bf16.mxu0 0
  %458 = vmatpush1.bf16.msra.mxu0 0
  %459 = vmatprep.subr.bf16.mxu0 0
  %460 = vmatpush1.bf16.msra.mxu0 0
  %461 = vmatprep.mubr.bf16.mxu0 0
  %462 = vmatmul.mubr.bf16.gmra.mrb[0].mxu0 %v250
  %v463 = vpop.f32.mrb[0].mxu0
  %v464 = vadd.f32 %v289, %v463
  %v465 = vpop.f32.mrb[0].mxu0
  %v466 = vadd.f32 %v293, %v465
  %v467 = vpop.f32.mrb[0].mxu0
  %v468 = vadd.f32 %v289, %v467
  %v469 = vpop.f32.mrb[0].mxu0
  %v470 = vadd.f32 %v293, %v469
  %471 = vmatprep.mubr.bf16.mxu0 0
  %472 = vmatmul.mubr.bf16.gmra.mrb[0].mxu0 %v251
  %v473 = vpop.f32.mrb[0].mxu0
  %v474 = vadd.f32 %v289, %v473
  %v475 = vpop.f32.mrb[0].mxu0
  %v476 = vadd.f32 %v293, %v475
  %v477 = vpop.f32.mrb[0].mxu0
  %v478 = vadd.f32 %v289, %v477
  %v479 = vpop.f32.mrb[0].mxu0
  %v480 = vadd.f32 %v293, %v479
  %481 = vdwg.mxu0
  %482 = vmatprep.subr.bf16.mxu0 0
  %483 = vmatpush1.bf16.msra.mxu0 %v383
  %484 = vmatprep.subr.bf16.mxu0 0
  %485 = vmatpush1.bf16.msra.mxu0 %v386
  %486 = vmatprep.subr.bf16.mxu0 0
  %487 = vmatpush1.bf16.msra.mxu0 %v389
  %488 = vmatprep.subr.bf16.mxu0 0
  %489 = vmatpush1.bf16.msra.mxu0 %v392
  %490 = vmatprep.subr.bf16.mxu0 0
  %491 = vmatpush1.bf16.msra.mxu0 %v395
  %492 = vmatprep.subr.bf16.mxu0 0
  %493 = vmatpush1.bf16.msra.mxu0 %v398
  %494 = vmatprep.subr.bf16.mxu0 0
  %495 = vmatpush1.bf16.msra.mxu0 %v401
  %496 = vmatprep.subr.bf16.mxu0 0
  %497 = vmatpush1.bf16.msra.mxu0 %v404
  %498 = vmatprep.subr.bf16.mxu0 0
  %499 = vmatpush1.bf16.msra.mxu0 0
  %500 = vmatprep.subr.bf16.mxu0 0
  %501 = vmatpush1.bf16.msra.mxu0 0
  %502 = vmatprep.subr.bf16.mxu0 0
  %503 = vmatpush1.bf16.msra.mxu0 0
  %504 = vmatprep.subr.bf16.mxu0 0
  %505 = vmatpush1.bf16.msra.mxu0 0
  %506 = vmatprep.subr.bf16.mxu0 0
  %507 = vmatpush1.bf16.msra.mxu0 0
  %508 = vmatprep.subr.bf16.mxu0 0
  %509 = vmatpush1.bf16.msra.mxu0 0
  %510 = vmatprep.subr.bf16.mxu0 0
  %511 = vmatpush1.bf16.msra.mxu0 0
  %512 = vmatprep.subr.bf16.mxu0 0
  %513 = vmatpush1.bf16.msra.mxu0 0
  %514 = vmatprep.mubr.bf16.mxu0 0
  %515 = vmatmul.mubr.bf16.gmra.mrb[0].mxu0 %v250
  %v516 = vpop.f32.mrb[0].mxu0
  %v517 = vadd.f32 %v297, %v516
  %v518 = vpop.f32.mrb[0].mxu0
  %v519 = vpop.f32.mrb[0].mxu0
  %v520 = vadd.f32 %v297, %v519
  %v521 = vpop.f32.mrb[0].mxu0
  %522 = vmatprep.mubr.bf16.mxu0 0
  %523 = vmatmul.mubr.bf16.gmra.mrb[0].mxu0 %v251
  %v524 = vpop.f32.mrb[0].mxu0
  %v525 = vadd.f32 %v297, %v524
  %v526 = vpop.f32.mrb[0].mxu0
  %v527 = vpop.f32.mrb[0].mxu0
  %v528 = vadd.f32 %v297, %v527
  %v529 = vpop.f32.mrb[0].mxu0
  %530 = vdwg.mxu0
  %v531 = vmul.f32 %v464, 0.125
  %v532 = vmul.f32 %v468, 0.125
  %v533 = vmul.f32 %v474, 0.125
  %v534 = vmul.f32 %v478, 0.125
  %v535 = vpack.c.bf16 %v532, %v531
  %v536 = vpack.c.bf16 %v534, %v533
  %v537 = vpack.c.bf16 %v470, %v466
  %v538 = vpack.c.bf16 %v480, %v476
  %v539 = vpack.c.bf16 %v520, %v517
  %v540 = vpack.c.bf16 %v528, %v525
  %vm541 = vcmask 523264
  %v543 = vsel %vm541, %v535, 0
  %v546 = vsel %vm541, %v537, 0
  %548 = vmatprep.subr.bf16.mxu0 0
  %549 = vmatpush1.bf16.xpose.msra.mxu0 %v546
  %550 = vmatprep.subr.bf16.mxu0 0
  %551 = vmatpush1.bf16.xpose.msra.mxu0 0
  %552 = vmatprep.subr.bf16.mxu0 0
  %553 = vmatpush1.bf16.xpose.msra.mxu0 0
  %554 = vmatprep.subr.bf16.mxu0 0
  %555 = vmatpush1.bf16.xpose.msra.mxu0 0
  %556 = vmatprep.subr.bf16.mxu0 0
  %557 = vmatpush1.bf16.xpose.msra.mxu0 0
  %558 = vmatprep.subr.bf16.mxu0 0
  %559 = vmatpush1.bf16.xpose.msra.mxu0 0
  %560 = vmatprep.subr.bf16.mxu0 0
  %561 = vmatpush1.bf16.xpose.msra.mxu0 0
  %562 = vmatprep.subr.bf16.mxu0 0
  %563 = vmatpush1.bf16.xpose.msra.mxu0 0
  %564 = vmatprep.subr.bf16.mxu0 0
  %565 = vmatpush1.bf16.xpose.msra.mxu0 0
  %566 = vmatprep.subr.bf16.mxu0 0
  %567 = vmatpush1.bf16.xpose.msra.mxu0 0
  %568 = vmatprep.subr.bf16.mxu0 0
  %569 = vmatpush1.bf16.xpose.msra.mxu0 0
  %570 = vmatprep.subr.bf16.mxu0 0
  %571 = vmatpush1.bf16.xpose.msra.mxu0 0
  %572 = vmatprep.subr.bf16.mxu0 0
  %573 = vmatpush1.bf16.xpose.msra.mxu0 0
  %574 = vmatprep.subr.bf16.mxu0 0
  %575 = vmatpush1.bf16.xpose.msra.mxu0 0
  %576 = vmatprep.subr.bf16.mxu0 0
  %577 = vmatpush1.bf16.xpose.msra.mxu0 0
  %578 = vmatprep.subr.bf16.mxu0 0
  %579 = vmatpush1.bf16.xpose.msra.mxu0 0
  %580 = vmatprep.mubr.bf16.mxu0 0
  %581 = vmatmul.mubr.bf16.gmra.mrb[0].mxu0 %v543
  %v582 = vpop.f32.mrb[0].mxu0
  %v583 = vadd.f32 0.0, %v582
  %v584 = vpop.f32.mrb[0].mxu0
  %v585 = vpop.f32.mrb[0].mxu0
  %v586 = vadd.f32 0.0, %v585
  %v587 = vpop.f32.mrb[0].mxu0
  %588 = vdwg.mxu0
  %v590 = vsel %vm541, %v536, 0
  %v593 = vsel %vm541, %v538, 0
  %595 = vmatprep.subr.bf16.mxu0 0
  %596 = vmatpush1.bf16.xpose.msra.mxu0 %v593
  %597 = vmatprep.subr.bf16.mxu0 0
  %598 = vmatpush1.bf16.xpose.msra.mxu0 0
  %599 = vmatprep.subr.bf16.mxu0 0
  %600 = vmatpush1.bf16.xpose.msra.mxu0 0
  %601 = vmatprep.subr.bf16.mxu0 0
  %602 = vmatpush1.bf16.xpose.msra.mxu0 0
  %603 = vmatprep.subr.bf16.mxu0 0
  %604 = vmatpush1.bf16.xpose.msra.mxu0 0
  %605 = vmatprep.subr.bf16.mxu0 0
  %606 = vmatpush1.bf16.xpose.msra.mxu0 0
  %607 = vmatprep.subr.bf16.mxu0 0
  %608 = vmatpush1.bf16.xpose.msra.mxu0 0
  %609 = vmatprep.subr.bf16.mxu0 0
  %610 = vmatpush1.bf16.xpose.msra.mxu0 0
  %611 = vmatprep.subr.bf16.mxu0 0
  %612 = vmatpush1.bf16.xpose.msra.mxu0 0
  %613 = vmatprep.subr.bf16.mxu0 0
  %614 = vmatpush1.bf16.xpose.msra.mxu0 0
  %615 = vmatprep.subr.bf16.mxu0 0
  %616 = vmatpush1.bf16.xpose.msra.mxu0 0
  %617 = vmatprep.subr.bf16.mxu0 0
  %618 = vmatpush1.bf16.xpose.msra.mxu0 0
  %619 = vmatprep.subr.bf16.mxu0 0
  %620 = vmatpush1.bf16.xpose.msra.mxu0 0
  %621 = vmatprep.subr.bf16.mxu0 0
  %622 = vmatpush1.bf16.xpose.msra.mxu0 0
  %623 = vmatprep.subr.bf16.mxu0 0
  %624 = vmatpush1.bf16.xpose.msra.mxu0 0
  %625 = vmatprep.subr.bf16.mxu0 0
  %626 = vmatpush1.bf16.xpose.msra.mxu0 0
  %627 = vmatprep.mubr.bf16.mxu0 0
  %628 = vmatmul.mubr.bf16.gmra.mrb[0].mxu0 %v590
  %v629 = vpop.f32.mrb[0].mxu0
  %v630 = vadd.f32 0.0, %v629
  %v631 = vpop.f32.mrb[0].mxu0
  %v632 = vpop.f32.mrb[0].mxu0
  %v633 = vadd.f32 0.0, %v632
  %v634 = vpop.f32.mrb[0].mxu0
  %635 = vdwg.mxu0
  %vm636 = vcmask 130048
  %v637 = vsel %vm636, %v583, -inf
  %638 = vmax.xlane.f32.xlu0 %v637
  %v639 = vpop.xlane.xlu0 %638
  %v640 = vsel %vm636, %v586, -inf
  %641 = vmax.xlane.f32.xlu0 %v640
  %v642 = vpop.xlane.xlu0 %641
  %v643 = vsel %vm636, %v630, -inf
  %644 = vmax.xlane.f32.xlu0 %v643
  %v645 = vpop.xlane.xlu0 %644
  %v646 = vsel %vm636, %v633, -inf
  %647 = vmax.xlane.f32.xlu0 %v646
  %v648 = vpop.xlane.xlu0 %647
  %v649 = vsub.f32 %v583, %v639
  %v650 = vsub.f32 %v586, %v642
  %v651 = vsub.f32 %v630, %v645
  %v652 = vsub.f32 %v633, %v648
  %v653 = vmul.f32 %v649, 1.442695
  %v654 = vpow.pop %v653
  %v655 = vmul.f32 %v650, 1.442695
  %v656 = vpow.pop %v655
  %v657 = vmul.f32 %v651, 1.442695
  %v658 = vpow.pop %v657
  %v659 = vmul.f32 %v652, 1.442695
  %v660 = vpow.pop %v659
  %v661 = vsel %vm636, %v654, 0.0
  %662 = vadd.xlane.f32.xlu0 %v661
  %v663 = vpop.xlane.xlu0 %662
  %v664 = vsel %vm636, %v656, 0.0
  %665 = vadd.xlane.f32.xlu0 %v664
  %v666 = vpop.xlane.xlu0 %665
  %v667 = vsel %vm636, %v658, 0.0
  %668 = vadd.xlane.f32.xlu0 %v667
  %v669 = vpop.xlane.xlu0 %668
  %v670 = vsel %vm636, %v660, 0.0
  %671 = vadd.xlane.f32.xlu0 %v670
  %v672 = vpop.xlane.xlu0 %671
  %v673 = vrcp.pop %v663
  %v674 = vrcp.pop %v666
  %v675 = vrcp.pop %v669
  %v676 = vrcp.pop %v672
  %v677 = vmul.f32 %v654, %v673
  %v678 = vmul.f32 %v656, %v674
  %v679 = vmul.f32 %v658, %v675
  %v680 = vmul.f32 %v660, %v676
  %v681 = vpack.c.bf16 %v678, %v677
  %v682 = vpack.c.bf16 %v680, %v679
  %v684 = vsel %vm636, %v681, 0
  %686 = vmatprep.subr.bf16.mxu0 0
  %687 = vmatpush1.bf16.msra.mxu0 %v539
  %688 = vmatprep.subr.bf16.mxu0 0
  %689 = vmatpush1.bf16.msra.mxu0 0
  %690 = vmatprep.subr.bf16.mxu0 0
  %691 = vmatpush1.bf16.msra.mxu0 0
  %692 = vmatprep.subr.bf16.mxu0 0
  %693 = vmatpush1.bf16.msra.mxu0 0
  %694 = vmatprep.subr.bf16.mxu0 0
  %695 = vmatpush1.bf16.msra.mxu0 0
  %696 = vmatprep.subr.bf16.mxu0 0
  %697 = vmatpush1.bf16.msra.mxu0 0
  %698 = vmatprep.subr.bf16.mxu0 0
  %699 = vmatpush1.bf16.msra.mxu0 0
  %700 = vmatprep.subr.bf16.mxu0 0
  %701 = vmatpush1.bf16.msra.mxu0 0
  %702 = vmatprep.subr.bf16.mxu0 0
  %703 = vmatpush1.bf16.msra.mxu0 0
  %704 = vmatprep.subr.bf16.mxu0 0
  %705 = vmatpush1.bf16.msra.mxu0 0
  %706 = vmatprep.subr.bf16.mxu0 0
  %707 = vmatpush1.bf16.msra.mxu0 0
  %708 = vmatprep.subr.bf16.mxu0 0
  %709 = vmatpush1.bf16.msra.mxu0 0
  %710 = vmatprep.subr.bf16.mxu0 0
  %711 = vmatpush1.bf16.msra.mxu0 0
  %712 = vmatprep.subr.bf16.mxu0 0
  %713 = vmatpush1.bf16.msra.mxu0 0
  %714 = vmatprep.subr.bf16.mxu0 0
  %715 = vmatpush1.bf16.msra.mxu0 0
  %716 = vmatprep.subr.bf16.mxu0 0
  %717 = vmatpush1.bf16.msra.mxu0 0
  %718 = vmatprep.mubr.bf16.mxu0 0
  %719 = vmatmul.mubr.bf16.gmra.mrb[0].mxu0 %v684
  %v720 = vpop.f32.mrb[0].mxu0
  %v721 = vadd.f32 0.0, %v720
  %v722 = vpop.f32.mrb[0].mxu0
  %v723 = vpop.f32.mrb[0].mxu0
  %v724 = vadd.f32 0.0, %v723
  %v725 = vpop.f32.mrb[0].mxu0
  %726 = vdwg.mxu0
  %v728 = vsel %vm636, %v682, 0
  %730 = vmatprep.subr.bf16.mxu0 0
  %731 = vmatpush1.bf16.msra.mxu0 %v540
  %732 = vmatprep.subr.bf16.mxu0 0
  %733 = vmatpush1.bf16.msra.mxu0 0
  %734 = vmatprep.subr.bf16.mxu0 0
  %735 = vmatpush1.bf16.msra.mxu0 0
  %736 = vmatprep.subr.bf16.mxu0 0
  %737 = vmatpush1.bf16.msra.mxu0 0
  %738 = vmatprep.subr.bf16.mxu0 0
  %739 = vmatpush1.bf16.msra.mxu0 0
  %740 = vmatprep.subr.bf16.mxu0 0
  %741 = vmatpush1.bf16.msra.mxu0 0
  %742 = vmatprep.subr.bf16.mxu0 0
  %743 = vmatpush1.bf16.msra.mxu0 0
  %744 = vmatprep.subr.bf16.mxu0 0
  %745 = vmatpush1.bf16.msra.mxu0 0
  %746 = vmatprep.subr.bf16.mxu0 0
  %747 = vmatpush1.bf16.msra.mxu0 0
  %748 = vmatprep.subr.bf16.mxu0 0
  %749 = vmatpush1.bf16.msra.mxu0 0
  %750 = vmatprep.subr.bf16.mxu0 0
  %751 = vmatpush1.bf16.msra.mxu0 0
  %752 = vmatprep.subr.bf16.mxu0 0
  %753 = vmatpush1.bf16.msra.mxu0 0
  %754 = vmatprep.subr.bf16.mxu0 0
  %755 = vmatpush1.bf16.msra.mxu0 0
  %756 = vmatprep.subr.bf16.mxu0 0
  %757 = vmatpush1.bf16.msra.mxu0 0
  %758 = vmatprep.subr.bf16.mxu0 0
  %759 = vmatpush1.bf16.msra.mxu0 0
  %760 = vmatprep.subr.bf16.mxu0 0
  %761 = vmatpush1.bf16.msra.mxu0 0
  %762 = vmatprep.mubr.bf16.mxu0 0
  %763 = vmatmul.mubr.bf16.gmra.mrb[0].mxu0 %v728
  %v764 = vpop.f32.mrb[0].mxu0
  %v765 = vadd.f32 0.0, %v764
  %v766 = vpop.f32.mrb[0].mxu0
  %v767 = vpop.f32.mrb[0].mxu0
  %v768 = vadd.f32 0.0, %v767
  %v769 = vpop.f32.mrb[0].mxu0
  %770 = vdwg.mxu0
  %772 = vrot.lane.b32.xlu0 %v535, 64
  %v773 = vpop.permute.xlu0 %772
  %775 = vrot.lane.b32.xlu0 %v537, 64
  %v776 = vpop.permute.xlu0 %775
  %v778 = vsel %vm541, %v773, 0
  %v781 = vsel %vm541, %v776, 0
  %783 = vmatprep.subr.bf16.mxu0 0
  %784 = vmatpush1.bf16.xpose.msra.mxu0 %v781
  %785 = vmatprep.subr.bf16.mxu0 0
  %786 = vmatpush1.bf16.xpose.msra.mxu0 0
  %787 = vmatprep.subr.bf16.mxu0 0
  %788 = vmatpush1.bf16.xpose.msra.mxu0 0
  %789 = vmatprep.subr.bf16.mxu0 0
  %790 = vmatpush1.bf16.xpose.msra.mxu0 0
  %791 = vmatprep.subr.bf16.mxu0 0
  %792 = vmatpush1.bf16.xpose.msra.mxu0 0
  %793 = vmatprep.subr.bf16.mxu0 0
  %794 = vmatpush1.bf16.xpose.msra.mxu0 0
  %795 = vmatprep.subr.bf16.mxu0 0
  %796 = vmatpush1.bf16.xpose.msra.mxu0 0
  %797 = vmatprep.subr.bf16.mxu0 0
  %798 = vmatpush1.bf16.xpose.msra.mxu0 0
  %799 = vmatprep.subr.bf16.mxu0 0
  %800 = vmatpush1.bf16.xpose.msra.mxu0 0
  %801 = vmatprep.subr.bf16.mxu0 0
  %802 = vmatpush1.bf16.xpose.msra.mxu0 0
  %803 = vmatprep.subr.bf16.mxu0 0
  %804 = vmatpush1.bf16.xpose.msra.mxu0 0
  %805 = vmatprep.subr.bf16.mxu0 0
  %806 = vmatpush1.bf16.xpose.msra.mxu0 0
  %807 = vmatprep.subr.bf16.mxu0 0
  %808 = vmatpush1.bf16.xpose.msra.mxu0 0
  %809 = vmatprep.subr.bf16.mxu0 0
  %810 = vmatpush1.bf16.xpose.msra.mxu0 0
  %811 = vmatprep.subr.bf16.mxu0 0
  %812 = vmatpush1.bf16.xpose.msra.mxu0 0
  %813 = vmatprep.subr.bf16.mxu0 0
  %814 = vmatpush1.bf16.xpose.msra.mxu0 0
  %815 = vmatprep.mubr.bf16.mxu0 0
  %816 = vmatmul.mubr.bf16.gmra.mrb[0].mxu0 %v778
  %v817 = vpop.f32.mrb[0].mxu0
  %v818 = vadd.f32 0.0, %v817
  %v819 = vpop.f32.mrb[0].mxu0
  %v820 = vpop.f32.mrb[0].mxu0
  %v821 = vadd.f32 0.0, %v820
  %v822 = vpop.f32.mrb[0].mxu0
  %823 = vdwg.mxu0
  %825 = vrot.lane.b32.xlu0 %v536, 64
  %v826 = vpop.permute.xlu0 %825
  %828 = vrot.lane.b32.xlu0 %v538, 64
  %v829 = vpop.permute.xlu0 %828
  %v831 = vsel %vm541, %v826, 0
  %v834 = vsel %vm541, %v829, 0
  %836 = vmatprep.subr.bf16.mxu0 0
  %837 = vmatpush1.bf16.xpose.msra.mxu0 %v834
  %838 = vmatprep.subr.bf16.mxu0 0
  %839 = vmatpush1.bf16.xpose.msra.mxu0 0
  %840 = vmatprep.subr.bf16.mxu0 0
  %841 = vmatpush1.bf16.xpose.msra.mxu0 0
  %842 = vmatprep.subr.bf16.mxu0 0
  %843 = vmatpush1.bf16.xpose.msra.mxu0 0
  %844 = vmatprep.subr.bf16.mxu0 0
  %845 = vmatpush1.bf16.xpose.msra.mxu0 0
  %846 = vmatprep.subr.bf16.mxu0 0
  %847 = vmatpush1.bf16.xpose.msra.mxu0 0
  %848 = vmatprep.subr.bf16.mxu0 0
  %849 = vmatpush1.bf16.xpose.msra.mxu0 0
  %850 = vmatprep.subr.bf16.mxu0 0
  %851 = vmatpush1.bf16.xpose.msra.mxu0 0
  %852 = vmatprep.subr.bf16.mxu0 0
  %853 = vmatpush1.bf16.xpose.msra.mxu0 0
  %854 = vmatprep.subr.bf16.mxu0 0
  %855 = vmatpush1.bf16.xpose.msra.mxu0 0
  %856 = vmatprep.subr.bf16.mxu0 0
  %857 = vmatpush1.bf16.xpose.msra.mxu0 0
  %858 = vmatprep.subr.bf16.mxu0 0
  %859 = vmatpush1.bf16.xpose.msra.mxu0 0
  %860 = vmatprep.subr.bf16.mxu0 0
  %861 = vmatpush1.bf16.xpose.msra.mxu0 0
  %862 = vmatprep.subr.bf16.mxu0 0
  %863 = vmatpush1.bf16.xpose.msra.mxu0 0
  %864 = vmatprep.subr.bf16.mxu0 0
  %865 = vmatpush1.bf16.xpose.msra.mxu0 0
  %866 = vmatprep.subr.bf16.mxu0 0
  %867 = vmatpush1.bf16.xpose.msra.mxu0 0
  %868 = vmatprep.mubr.bf16.mxu0 0
  %869 = vmatmul.mubr.bf16.gmra.mrb[0].mxu0 %v831
  %v870 = vpop.f32.mrb[0].mxu0
  %v871 = vadd.f32 0.0, %v870
  %v872 = vpop.f32.mrb[0].mxu0
  %v873 = vpop.f32.mrb[0].mxu0
  %v874 = vadd.f32 0.0, %v873
  %v875 = vpop.f32.mrb[0].mxu0
  %876 = vdwg.mxu0
  %v877 = vsel %vm636, %v818, -inf
  %878 = vmax.xlane.f32.xlu0 %v877
  %v879 = vpop.xlane.xlu0 %878
  %v880 = vsel %vm636, %v821, -inf
  %881 = vmax.xlane.f32.xlu0 %v880
  %v882 = vpop.xlane.xlu0 %881
  %v883 = vsel %vm636, %v871, -inf
  %884 = vmax.xlane.f32.xlu0 %v883
  %v885 = vpop.xlane.xlu0 %884
  %v886 = vsel %vm636, %v874, -inf
  %887 = vmax.xlane.f32.xlu0 %v886
  %v888 = vpop.xlane.xlu0 %887
  %v889 = vsub.f32 %v818, %v879
  %v890 = vsub.f32 %v821, %v882
  %v891 = vsub.f32 %v871, %v885
  %v892 = vsub.f32 %v874, %v888
  %v893 = vmul.f32 %v889, 1.442695
  %v894 = vpow.pop %v893
  %v895 = vmul.f32 %v890, 1.442695
  %v896 = vpow.pop %v895
  %v897 = vmul.f32 %v891, 1.442695
  %v898 = vpow.pop %v897
  %v899 = vmul.f32 %v892, 1.442695
  %v900 = vpow.pop %v899
  %v901 = vsel %vm636, %v894, 0.0
  %902 = vadd.xlane.f32.xlu0 %v901
  %v903 = vpop.xlane.xlu0 %902
  %v904 = vsel %vm636, %v896, 0.0
  %905 = vadd.xlane.f32.xlu0 %v904
  %v906 = vpop.xlane.xlu0 %905
  %v907 = vsel %vm636, %v898, 0.0
  %908 = vadd.xlane.f32.xlu0 %v907
  %v909 = vpop.xlane.xlu0 %908
  %v910 = vsel %vm636, %v900, 0.0
  %911 = vadd.xlane.f32.xlu0 %v910
  %v912 = vpop.xlane.xlu0 %911
  %v913 = vrcp.pop %v903
  %v914 = vrcp.pop %v906
  %v915 = vrcp.pop %v909
  %v916 = vrcp.pop %v912
  %v917 = vmul.f32 %v894, %v913
  %v918 = vmul.f32 %v896, %v914
  %v919 = vmul.f32 %v898, %v915
  %v920 = vmul.f32 %v900, %v916
  %v921 = vpack.c.bf16 %v918, %v917
  %v922 = vpack.c.bf16 %v920, %v919
  %924 = vrot.lane.b32.xlu0 %v539, 64
  %v925 = vpop.permute.xlu0 %924
  %v928 = vsel %vm636, %v921, 0
  %930 = vmatprep.subr.bf16.mxu0 0
  %931 = vmatpush1.bf16.msra.mxu0 %v925
  %932 = vmatprep.subr.bf16.mxu0 0
  %933 = vmatpush1.bf16.msra.mxu0 0
  %934 = vmatprep.subr.bf16.mxu0 0
  %935 = vmatpush1.bf16.msra.mxu0 0
  %936 = vmatprep.subr.bf16.mxu0 0
  %937 = vmatpush1.bf16.msra.mxu0 0
  %938 = vmatprep.subr.bf16.mxu0 0
  %939 = vmatpush1.bf16.msra.mxu0 0
  %940 = vmatprep.subr.bf16.mxu0 0
  %941 = vmatpush1.bf16.msra.mxu0 0
  %942 = vmatprep.subr.bf16.mxu0 0
  %943 = vmatpush1.bf16.msra.mxu0 0
  %944 = vmatprep.subr.bf16.mxu0 0
  %945 = vmatpush1.bf16.msra.mxu0 0
  %946 = vmatprep.subr.bf16.mxu0 0
  %947 = vmatpush1.bf16.msra.mxu0 0
  %948 = vmatprep.subr.bf16.mxu0 0
  %949 = vmatpush1.bf16.msra.mxu0 0
  %950 = vmatprep.subr.bf16.mxu0 0
  %951 = vmatpush1.bf16.msra.mxu0 0
  %952 = vmatprep.subr.bf16.mxu0 0
  %953 = vmatpush1.bf16.msra.mxu0 0
  %954 = vmatprep.subr.bf16.mxu0 0
  %955 = vmatpush1.bf16.msra.mxu0 0
  %956 = vmatprep.subr.bf16.mxu0 0
  %957 = vmatpush1.bf16.msra.mxu0 0
  %958 = vmatprep.subr.bf16.mxu0 0
  %959 = vmatpush1.bf16.msra.mxu0 0
  %960 = vmatprep.subr.bf16.mxu0 0
  %961 = vmatpush1.bf16.msra.mxu0 0
  %962 = vmatprep.mubr.bf16.mxu0 0
  %963 = vmatmul.mubr.bf16.gmra.mrb[0].mxu0 %v928
  %v964 = vpop.f32.mrb[0].mxu0
  %v965 = vadd.f32 0.0, %v964
  %v966 = vpop.f32.mrb[0].mxu0
  %v967 = vpop.f32.mrb[0].mxu0
  %v968 = vadd.f32 0.0, %v967
  %v969 = vpop.f32.mrb[0].mxu0
  %970 = vdwg.mxu0
  %972 = vrot.lane.b32.xlu0 %v540, 64
  %v973 = vpop.permute.xlu0 %972
  %v976 = vsel %vm636, %v922, 0
  %978 = vmatprep.subr.bf16.mxu0 0
  %979 = vmatpush1.bf16.msra.mxu0 %v973
  %980 = vmatprep.subr.bf16.mxu0 0
  %981 = vmatpush1.bf16.msra.mxu0 0
  %982 = vmatprep.subr.bf16.mxu0 0
  %983 = vmatpush1.bf16.msra.mxu0 0
  %984 = vmatprep.subr.bf16.mxu0 0
  %985 = vmatpush1.bf16.msra.mxu0 0
  %986 = vmatprep.subr.bf16.mxu0 0
  %987 = vmatpush1.bf16.msra.mxu0 0
  %988 = vmatprep.subr.bf16.mxu0 0
  %989 = vmatpush1.bf16.msra.mxu0 0
  %990 = vmatprep.subr.bf16.mxu0 0
  %991 = vmatpush1.bf16.msra.mxu0 0
  %992 = vmatprep.subr.bf16.mxu0 0
  %993 = vmatpush1.bf16.msra.mxu0 0
  %994 = vmatprep.subr.bf16.mxu0 0
  %995 = vmatpush1.bf16.msra.mxu0 0
  %996 = vmatprep.subr.bf16.mxu0 0
  %997 = vmatpush1.bf16.msra.mxu0 0
  %998 = vmatprep.subr.bf16.mxu0 0
  %999 = vmatpush1.bf16.msra.mxu0 0
  %1000 = vmatprep.subr.bf16.mxu0 0
  %1001 = vmatpush1.bf16.msra.mxu0 0
  %1002 = vmatprep.subr.bf16.mxu0 0
  %1003 = vmatpush1.bf16.msra.mxu0 0
  %1004 = vmatprep.subr.bf16.mxu0 0
  %1005 = vmatpush1.bf16.msra.mxu0 0
  %1006 = vmatprep.subr.bf16.mxu0 0
  %1007 = vmatpush1.bf16.msra.mxu0 0
  %1008 = vmatprep.subr.bf16.mxu0 0
  %1009 = vmatpush1.bf16.msra.mxu0 0
  %1010 = vmatprep.mubr.bf16.mxu0 0
  %1011 = vmatmul.mubr.bf16.gmra.mrb[0].mxu0 %v976
  %v1012 = vpop.f32.mrb[0].mxu0
  %v1013 = vadd.f32 0.0, %v1012
  %v1014 = vpop.f32.mrb[0].mxu0
  %v1015 = vpop.f32.mrb[0].mxu0
  %v1016 = vadd.f32 0.0, %v1015
  %v1017 = vpop.f32.mrb[0].mxu0
  %1018 = vdwg.mxu0
  %1023 = vrot.lane.b32.xlu0 %v965, 64
  %v1024 = vpop.permute.xlu0 %1023
  %1025 = vrot.lane.b32.xlu0 %v968, 64
  %v1026 = vpop.permute.xlu0 %1025
  %1027 = vrot.lane.b32.xlu0 %v1013, 64
  %v1028 = vpop.permute.xlu0 %1027
  %1029 = vrot.lane.b32.xlu0 %v1016, 64
  %v1030 = vpop.permute.xlu0 %1029
  %v1035 = vsel %vm541, %v721, %v1024
  %v1036 = vsel %vm541, %v724, %v1026
  %v1037 = vsel %vm541, %v765, %v1028
  %v1038 = vsel %vm541, %v768, %v1030
  %v1039 = vld [vmem:[%s6 + $0xc] sm:$0xf]
  %v1040 = vld [vmem:[%s6 + $0x38] sm:$0xf]
  %v1041 = vld [vmem:[%s6 + $0x64] sm:$0xf]
  %v1042 = vld [vmem:[%s6 + $0x90] sm:$0xf]
  %v1043 = vld [vmem:[%s6 + $0xbc] sm:$0xf]
  %v1044 = vld [vmem:[%s6 + $0xe8] sm:$0xf]
  %v1045 = vld [vmem:[%s6 + $0x114] sm:$0xf]
  %v1046 = vld [vmem:[%s6 + $0x140] sm:$0xf]
  %v1047 = vld [vmem:[%s6 + $0x16c] sm:$0xf]
  %v1048 = vld [vmem:[%s6 + $0x198] sm:$0xf]
  %v1049 = vld [vmem:[%s6 + $0x1c4] sm:$0xf]
  %v1050 = vld [vmem:[%s6 + $0x1f0] sm:$0xf]
  %v1051 = vld [vmem:[%s6 + $0x21c] sm:$0xf]
  %v1052 = vld [vmem:[%s6 + $0x248] sm:$0xf]
  %v1053 = vld [vmem:[%s6 + $0x274] sm:$0xf]
  %v1054 = vld [vmem:[%s6 + $0x2a0] sm:$0xf]
  %v1055 = vpack.c.bf16 %v1036, %v1035
  %v1056 = vpack.c.bf16 %v1038, %v1037
  %v1073 = vunpack.c.l.b16 %v1039
  %v1074 = vunpack.c.l.b16 %v1040
  %v1075 = vunpack.c.l.b16 %v1041
  %v1076 = vunpack.c.l.b16 %v1042
  %v1077 = vunpack.c.l.b16 %v1043
  %v1078 = vunpack.c.l.b16 %v1044
  %v1079 = vunpack.c.l.b16 %v1045
  %v1080 = vunpack.c.l.b16 %v1046
  %v1081 = vunpack.c.l.b16 %v1047
  %v1082 = vunpack.c.l.b16 %v1048
  %v1083 = vunpack.c.l.b16 %v1049
  %v1084 = vunpack.c.l.b16 %v1050
  %v1085 = vunpack.c.l.b16 %v1051
  %v1086 = vunpack.c.l.b16 %v1052
  %v1087 = vunpack.c.l.b16 %v1053
  %v1088 = vunpack.c.l.b16 %v1054
  %v1089 = vpack.c.b16 %v1074, %v1073
  %v1090 = vpack.c.b16 %v1076, %v1075
  %v1091 = vpack.c.b16 %v1078, %v1077
  %v1092 = vpack.c.b16 %v1080, %v1079
  %v1093 = vpack.c.b16 %v1082, %v1081
  %v1094 = vpack.c.b16 %v1084, %v1083
  %v1095 = vpack.c.b16 %v1086, %v1085
  %v1096 = vpack.c.b16 %v1088, %v1087
  %1105 = vmatprep.subr.bf16.mxu0 0
  %1106 = vmatpush1.bf16.msra.mxu0 %v1089
  %1107 = vmatprep.subr.bf16.mxu0 0
  %1108 = vmatpush1.bf16.msra.mxu0 %v1090
  %1109 = vmatprep.subr.bf16.mxu0 0
  %1110 = vmatpush1.bf16.msra.mxu0 %v1091
  %1111 = vmatprep.subr.bf16.mxu0 0
  %1112 = vmatpush1.bf16.msra.mxu0 %v1092
  %1113 = vmatprep.subr.bf16.mxu0 0
  %1114 = vmatpush1.bf16.msra.mxu0 %v1093
  %1115 = vmatprep.subr.bf16.mxu0 0
  %1116 = vmatpush1.bf16.msra.mxu0 %v1094
  %1117 = vmatprep.subr.bf16.mxu0 0
  %1118 = vmatpush1.bf16.msra.mxu0 %v1095
  %1119 = vmatprep.subr.bf16.mxu0 0
  %1120 = vmatpush1.bf16.msra.mxu0 %v1096
  %1121 = vmatprep.subr.bf16.mxu0 0
  %1122 = vmatpush1.bf16.msra.mxu0 0
  %1123 = vmatprep.subr.bf16.mxu0 0
  %1124 = vmatpush1.bf16.msra.mxu0 0
  %1125 = vmatprep.subr.bf16.mxu0 0
  %1126 = vmatpush1.bf16.msra.mxu0 0
  %1127 = vmatprep.subr.bf16.mxu0 0
  %1128 = vmatpush1.bf16.msra.mxu0 0
  %1129 = vmatprep.subr.bf16.mxu0 0
  %1130 = vmatpush1.bf16.msra.mxu0 0
  %1131 = vmatprep.subr.bf16.mxu0 0
  %1132 = vmatpush1.bf16.msra.mxu0 0
  %1133 = vmatprep.subr.bf16.mxu0 0
  %1134 = vmatpush1.bf16.msra.mxu0 0
  %1135 = vmatprep.subr.bf16.mxu0 0
  %1136 = vmatpush1.bf16.msra.mxu0 0
  %1137 = vmatprep.mubr.bf16.mxu0 0
  %1138 = vmatmul.mubr.bf16.gmra.mrb[0].mxu0 %v1055
  %v1139 = vpop.f32.mrb[0].mxu0
  %v1140 = vadd.f32 0.0, %v1139
  %v1141 = vpop.f32.mrb[0].mxu0
  %v1142 = vpop.f32.mrb[0].mxu0
  %v1143 = vadd.f32 0.0, %v1142
  %v1144 = vpop.f32.mrb[0].mxu0
  %1145 = vmatprep.mubr.bf16.mxu0 0
  %1146 = vmatmul.mubr.bf16.gmra.mrb[0].mxu0 %v1056
  %v1147 = vpop.f32.mrb[0].mxu0
  %v1148 = vadd.f32 0.0, %v1147
  %v1149 = vpop.f32.mrb[0].mxu0
  %v1150 = vpop.f32.mrb[0].mxu0
  %v1151 = vadd.f32 0.0, %v1150
  %v1152 = vpop.f32.mrb[0].mxu0
  %1153 = vdwg.mxu0
  %v1154 = vld [vmem:[%s8 + $0x4] sm:$0x1]
  %v1156 = vlaneseq
  %v1157 = vshrl.u32 %v1156, 7
  %v1158 = vsub.s32 0, %v1157
  %v1159 = vrot.slane %v1154, %v1158
  %v1161 = vadd.f32 %v1140, %v1159
  %v1162 = vadd.f32 %v1143, %v1159
  %v1163 = vadd.f32 %v1148, %v1159
  %v1164 = vadd.f32 %v1151, %v1159
  %v1165 = vlaneseq
  %v1166 = vshrl.u32 %v1165, 7
  %v1167 = vsub.s32 2, %v1166
  %v1168 = vrot.slane %v165, %v1167
  %v1169 = vlaneseq
  %v1170 = vshrl.u32 %v1169, 7
  %v1171 = vsub.s32 2, %v1170
  %v1172 = vrot.slane %v166, %v1171
  %v1173 = vmul.f32 %v1168, %v1161
  %v1174 = vmul.f32 %v1168, %v1162
  %v1175 = vmul.f32 %v1172, %v1163
  %v1176 = vmul.f32 %v1172, %v1164
  %v1177 = vadd.f32 %v161, %v1173
  %v1178 = vadd.f32 %v162, %v1174
  %v1179 = vadd.f32 %v163, %v1175
  %v1180 = vadd.f32 %v164, %v1176
  %v1181 = vld [vmem:[%s2] sm:$0xff]
  %v1182 = vld [vmem:[%s2 + $0x8] sm:$0xff]
  %v1183 = vpack.c.bf16 %v1178, %v1177
  %v1184 = vpack.c.bf16 %v1180, %v1179
  %v1185 = vld [vmem:[%s6 + $0x10] sm:$0xf]
  %v1186 = vld [vmem:[%s6 + $0x3c] sm:$0xf]
  %v1187 = vld [vmem:[%s6 + $0x68] sm:$0xf]
  %v1188 = vld [vmem:[%s6 + $0x94] sm:$0xf]
  %v1189 = vld [vmem:[%s6 + $0xc0] sm:$0xf]
  %v1190 = vld [vmem:[%s6 + $0xec] sm:$0xf]
  %v1191 = vld [vmem:[%s6 + $0x118] sm:$0xf]
  %v1192 = vld [vmem:[%s6 + $0x144] sm:$0xf]
  %v1193 = vld [vmem:[%s6 + $0x170] sm:$0xf]
  %v1194 = vld [vmem:[%s6 + $0x19c] sm:$0xf]
  %v1195 = vld [vmem:[%s6 + $0x1c8] sm:$0xf]
  %v1196 = vld [vmem:[%s6 + $0x1f4] sm:$0xf]
  %v1197 = vld [vmem:[%s6 + $0x220] sm:$0xf]
  %v1198 = vld [vmem:[%s6 + $0x24c] sm:$0xf]
  %v1199 = vld [vmem:[%s6 + $0x278] sm:$0xf]
  %v1200 = vld [vmem:[%s6 + $0x2a4] sm:$0xf]
  %v1201 = vld [vmem:[%s8 + $0x5] sm:$0x1]
  %v1203 = vlaneseq
  %v1204 = vshrl.u32 %v1203, 7
  %v1205 = vsub.s32 0, %v1204
  %v1206 = vrot.slane %v1201, %v1205
  %v1224 = vunpack.c.l.b16 %v1185
  %v1225 = vunpack.c.l.b16 %v1186
  %v1226 = vunpack.c.l.b16 %v1187
  %v1227 = vunpack.c.l.b16 %v1188
  %v1228 = vunpack.c.l.b16 %v1189
  %v1229 = vunpack.c.l.b16 %v1190
  %v1230 = vunpack.c.l.b16 %v1191
  %v1231 = vunpack.c.l.b16 %v1192
  %v1232 = vunpack.c.l.b16 %v1193
  %v1233 = vunpack.c.l.b16 %v1194
  %v1234 = vunpack.c.l.b16 %v1195
  %v1235 = vunpack.c.l.b16 %v1196
  %v1236 = vunpack.c.l.b16 %v1197
  %v1237 = vunpack.c.l.b16 %v1198
  %v1238 = vunpack.c.l.b16 %v1199
  %v1239 = vunpack.c.l.b16 %v1200
  %v1240 = vpack.c.b16 %v1225, %v1224
  %v1241 = vpack.c.b16 %v1227, %v1226
  %v1242 = vpack.c.b16 %v1229, %v1228
  %v1243 = vpack.c.b16 %v1231, %v1230
  %v1244 = vpack.c.b16 %v1233, %v1232
  %v1245 = vpack.c.b16 %v1235, %v1234
  %v1246 = vpack.c.b16 %v1237, %v1236
  %v1247 = vpack.c.b16 %v1239, %v1238
  %1256 = vmatprep.subr.bf16.mxu0 0
  %1257 = vmatpush1.bf16.msra.mxu0 %v1240
  %1258 = vmatprep.subr.bf16.mxu0 0
  %1259 = vmatpush1.bf16.msra.mxu0 %v1241
  %1260 = vmatprep.subr.bf16.mxu0 0
  %1261 = vmatpush1.bf16.msra.mxu0 %v1242
  %1262 = vmatprep.subr.bf16.mxu0 0
  %1263 = vmatpush1.bf16.msra.mxu0 %v1243
  %1264 = vmatprep.subr.bf16.mxu0 0
  %1265 = vmatpush1.bf16.msra.mxu0 %v1244
  %1266 = vmatprep.subr.bf16.mxu0 0
  %1267 = vmatpush1.bf16.msra.mxu0 %v1245
  %1268 = vmatprep.subr.bf16.mxu0 0
  %1269 = vmatpush1.bf16.msra.mxu0 %v1246
  %1270 = vmatprep.subr.bf16.mxu0 0
  %1271 = vmatpush1.bf16.msra.mxu0 %v1247
  %1272 = vmatprep.subr.bf16.mxu0 0
  %1273 = vmatpush1.bf16.msra.mxu0 0
  %1274 = vmatprep.subr.bf16.mxu0 0
  %1275 = vmatpush1.bf16.msra.mxu0 0
  %1276 = vmatprep.subr.bf16.mxu0 0
  %1277 = vmatpush1.bf16.msra.mxu0 0
  %1278 = vmatprep.subr.bf16.mxu0 0
  %1279 = vmatpush1.bf16.msra.mxu0 0
  %1280 = vmatprep.subr.bf16.mxu0 0
  %1281 = vmatpush1.bf16.msra.mxu0 0
  %1282 = vmatprep.subr.bf16.mxu0 0
  %1283 = vmatpush1.bf16.msra.mxu0 0
  %1284 = vmatprep.subr.bf16.mxu0 0
  %1285 = vmatpush1.bf16.msra.mxu0 0
  %1286 = vmatprep.subr.bf16.mxu0 0
  %1287 = vmatpush1.bf16.msra.mxu0 0
  %1288 = vmatprep.mubr.bf16.mxu0 0
  %1289 = vmatmul.mubr.bf16.gmra.mrb[0].mxu0 %v1183
  %v1290 = vpop.f32.mrb[0].mxu0
  %v1291 = vadd.f32 %v1206, %v1290
  %v1292 = vpop.f32.mrb[0].mxu0
  %v1293 = vpop.f32.mrb[0].mxu0
  %v1294 = vadd.f32 %v1206, %v1293
  %v1295 = vpop.f32.mrb[0].mxu0
  %1296 = vmatprep.mubr.bf16.mxu0 0
  %1297 = vmatmul.mubr.bf16.gmra.mrb[0].mxu0 %v1184
  %v1298 = vpop.f32.mrb[0].mxu0
  %v1299 = vadd.f32 %v1206, %v1298
  %v1300 = vpop.f32.mrb[0].mxu0
  %v1301 = vpop.f32.mrb[0].mxu0
  %v1302 = vadd.f32 %v1206, %v1301
  %v1303 = vpop.f32.mrb[0].mxu0
  %1304 = vdwg.mxu0
  %v1305 = vpack.c.bf16 %v1182, %v1181
  %v1306 = vld [vmem:[%s6 + $0x14] sm:$0xff]
  %v1307 = vld [vmem:[%s6 + $0x40] sm:$0xff]
  %v1308 = vld [vmem:[%s6 + $0x6c] sm:$0xff]
  %v1309 = vld [vmem:[%s6 + $0x98] sm:$0xff]
  %v1310 = vld [vmem:[%s6 + $0xc4] sm:$0xff]
  %v1311 = vld [vmem:[%s6 + $0xf0] sm:$0xff]
  %v1312 = vld [vmem:[%s6 + $0x11c] sm:$0xff]
  %v1313 = vld [vmem:[%s6 + $0x148] sm:$0xff]
  %v1314 = vld [vmem:[%s6 + $0x174] sm:$0xff]
  %v1315 = vld [vmem:[%s6 + $0x1a0] sm:$0xff]
  %v1316 = vld [vmem:[%s6 + $0x1cc] sm:$0xff]
  %v1317 = vld [vmem:[%s6 + $0x1f8] sm:$0xff]
  %v1318 = vld [vmem:[%s6 + $0x224] sm:$0xff]
  %v1319 = vld [vmem:[%s6 + $0x250] sm:$0xff]
  %v1320 = vld [vmem:[%s6 + $0x27c] sm:$0xff]
  %v1321 = vld [vmem:[%s6 + $0x2a8] sm:$0xff]
  %v1322 = vld [vmem:[%s8 + $0x6] sm:$0x3]
  %v1324 = vlaneseq
  %v1325 = vshrl.u32 %v1324, 7
  %v1326 = vsub.s32 0, %v1325
  %v1327 = vrot.slane %v1322, %v1326
  %v1328 = vlaneseq
  %v1329 = vshrl.u32 %v1328, 7
  %v1330 = vsub.s32 1, %v1329
  %v1331 = vrot.slane %v1322, %v1330
  %v1350 = vunpack.c.l.b16 %v1306
  %v1351 = vunpack.c.h.b16 %v1306
  %v1352 = vunpack.c.l.b16 %v1307
  %v1353 = vunpack.c.h.b16 %v1307
  %v1354 = vunpack.c.l.b16 %v1308
  %v1355 = vunpack.c.h.b16 %v1308
  %v1356 = vunpack.c.l.b16 %v1309
  %v1357 = vunpack.c.h.b16 %v1309
  %v1358 = vunpack.c.l.b16 %v1310
  %v1359 = vunpack.c.h.b16 %v1310
  %v1360 = vunpack.c.l.b16 %v1311
  %v1361 = vunpack.c.h.b16 %v1311
  %v1362 = vunpack.c.l.b16 %v1312
  %v1363 = vunpack.c.h.b16 %v1312
  %v1364 = vunpack.c.l.b16 %v1313
  %v1365 = vunpack.c.h.b16 %v1313
  %v1366 = vunpack.c.l.b16 %v1314
  %v1367 = vunpack.c.h.b16 %v1314
  %v1368 = vunpack.c.l.b16 %v1315
  %v1369 = vunpack.c.h.b16 %v1315
  %v1370 = vunpack.c.l.b16 %v1316
  %v1371 = vunpack.c.h.b16 %v1316
  %v1372 = vunpack.c.l.b16 %v1317
  %v1373 = vunpack.c.h.b16 %v1317
  %v1374 = vunpack.c.l.b16 %v1318
  %v1375 = vunpack.c.h.b16 %v1318
  %v1376 = vunpack.c.l.b16 %v1319
  %v1377 = vunpack.c.h.b16 %v1319
  %v1378 = vunpack.c.l.b16 %v1320
  %v1379 = vunpack.c.h.b16 %v1320
  %v1380 = vunpack.c.l.b16 %v1321
  %v1381 = vunpack.c.h.b16 %v1321
  %v1382 = vpack.c.b16 %v1352, %v1350
  %v1383 = vpack.c.b16 %v1353, %v1351
  %v1384 = vpack.c.b16 %v1356, %v1354
  %v1385 = vpack.c.b16 %v1357, %v1355
  %v1386 = vpack.c.b16 %v1360, %v1358
  %v1387 = vpack.c.b16 %v1361, %v1359
  %v1388 = vpack.c.b16 %v1364, %v1362
  %v1389 = vpack.c.b16 %v1365, %v1363
  %v1390 = vpack.c.b16 %v1368, %v1366
  %v1391 = vpack.c.b16 %v1369, %v1367
  %v1392 = vpack.c.b16 %v1372, %v1370
  %v1393 = vpack.c.b16 %v1373, %v1371
  %v1394 = vpack.c.b16 %v1376, %v1374
  %v1395 = vpack.c.b16 %v1377, %v1375
  %v1396 = vpack.c.b16 %v1380, %v1378
  %v1397 = vpack.c.b16 %v1381, %v1379
  %1414 = vmatprep.subr.bf16.mxu0 %v1383
  %1415 = vmatpush1.bf16.msra.mxu0 %v1382
  %1416 = vmatprep.subr.bf16.mxu0 %v1385
  %1417 = vmatpush1.bf16.msra.mxu0 %v1384
  %1418 = vmatprep.subr.bf16.mxu0 %v1387
  %1419 = vmatpush1.bf16.msra.mxu0 %v1386
  %1420 = vmatprep.subr.bf16.mxu0 %v1389
  %1421 = vmatpush1.bf16.msra.mxu0 %v1388
  %1422 = vmatprep.subr.bf16.mxu0 %v1391
  %1423 = vmatpush1.bf16.msra.mxu0 %v1390
  %1424 = vmatprep.subr.bf16.mxu0 %v1393
  %1425 = vmatpush1.bf16.msra.mxu0 %v1392
  %1426 = vmatprep.subr.bf16.mxu0 %v1395
  %1427 = vmatpush1.bf16.msra.mxu0 %v1394
  %1428 = vmatprep.subr.bf16.mxu0 %v1397
  %1429 = vmatpush1.bf16.msra.mxu0 %v1396
  %1430 = vmatprep.subr.bf16.mxu0 0
  %1431 = vmatpush1.bf16.msra.mxu0 0
  %1432 = vmatprep.subr.bf16.mxu0 0
  %1433 = vmatpush1.bf16.msra.mxu0 0
  %1434 = vmatprep.subr.bf16.mxu0 0
  %1435 = vmatpush1.bf16.msra.mxu0 0
  %1436 = vmatprep.subr.bf16.mxu0 0
  %1437 = vmatpush1.bf16.msra.mxu0 0
  %1438 = vmatprep.subr.bf16.mxu0 0
  %1439 = vmatpush1.bf16.msra.mxu0 0
  %1440 = vmatprep.subr.bf16.mxu0 0
  %1441 = vmatpush1.bf16.msra.mxu0 0
  %1442 = vmatprep.subr.bf16.mxu0 0
  %1443 = vmatpush1.bf16.msra.mxu0 0
  %1444 = vmatprep.subr.bf16.mxu0 0
  %1445 = vmatpush1.bf16.msra.mxu0 0
  %1446 = vmatprep.mubr.bf16.mxu0 0
  %1447 = vmatmul.mubr.bf16.gmra.mrb[0].mxu0 %v1305
  %v1448 = vpop.f32.mrb[0].mxu0
  %v1449 = vadd.f32 %v1327, %v1448
  %v1450 = vpop.f32.mrb[0].mxu0
  %v1451 = vadd.f32 %v1331, %v1450
  %v1452 = vpop.f32.mrb[0].mxu0
  %v1453 = vadd.f32 %v1327, %v1452
  %v1454 = vpop.f32.mrb[0].mxu0
  %v1455 = vadd.f32 %v1331, %v1454
  %1456 = vdwg.mxu0
  %v1457 = vmul.f32 %v1291, 0.125
  %v1458 = vmul.f32 %v1294, 0.125
  %v1459 = vmul.f32 %v1299, 0.125
  %v1460 = vmul.f32 %v1302, 0.125
  %v1461 = vpack.c.bf16 %v1458, %v1457
  %v1462 = vpack.c.bf16 %v1460, %v1459
  %v1463 = vpack.c.bf16 %v1449, %v1449
  %v1464 = vpack.c.bf16 %v1453, %v1453
  %v1465 = vpack.c.bf16 %v1451, %v1451
  %v1466 = vpack.c.bf16 %v1455, %v1455
  %v1468 = vsel %vm541, %v1461, 0
  %v1471 = vsel %vm541, %v1463, 0
  %1473 = vmatprep.subr.bf16.mxu0 0
  %1474 = vmatpush1.bf16.xpose.msra.mxu0 %v1471
  %1475 = vmatprep.subr.bf16.mxu0 0
  %1476 = vmatpush1.bf16.xpose.msra.mxu0 0
  %1477 = vmatprep.subr.bf16.mxu0 0
  %1478 = vmatpush1.bf16.xpose.msra.mxu0 0
  %1479 = vmatprep.subr.bf16.mxu0 0
  %1480 = vmatpush1.bf16.xpose.msra.mxu0 0
  %1481 = vmatprep.subr.bf16.mxu0 0
  %1482 = vmatpush1.bf16.xpose.msra.mxu0 0
  %1483 = vmatprep.subr.bf16.mxu0 0
  %1484 = vmatpush1.bf16.xpose.msra.mxu0 0
  %1485 = vmatprep.subr.bf16.mxu0 0
  %1486 = vmatpush1.bf16.xpose.msra.mxu0 0
  %1487 = vmatprep.subr.bf16.mxu0 0
  %1488 = vmatpush1.bf16.xpose.msra.mxu0 0
  %1489 = vmatprep.subr.bf16.mxu0 0
  %1490 = vmatpush1.bf16.xpose.msra.mxu0 0
  %1491 = vmatprep.subr.bf16.mxu0 0
  %1492 = vmatpush1.bf16.xpose.msra.mxu0 0
  %1493 = vmatprep.subr.bf16.mxu0 0
  %1494 = vmatpush1.bf16.xpose.msra.mxu0 0
  %1495 = vmatprep.subr.bf16.mxu0 0
  %1496 = vmatpush1.bf16.xpose.msra.mxu0 0
  %1497 = vmatprep.subr.bf16.mxu0 0
  %1498 = vmatpush1.bf16.xpose.msra.mxu0 0
  %1499 = vmatprep.subr.bf16.mxu0 0
  %1500 = vmatpush1.bf16.xpose.msra.mxu0 0
  %1501 = vmatprep.subr.bf16.mxu0 0
  %1502 = vmatpush1.bf16.xpose.msra.mxu0 0
  %1503 = vmatprep.subr.bf16.mxu0 0
  %1504 = vmatpush1.bf16.xpose.msra.mxu0 0
  %1505 = vmatprep.mubr.bf16.mxu0 0
  %1506 = vmatmul.mubr.bf16.gmra.mrb[0].mxu0 %v1468
  %v1507 = vpop.f32.mrb[0].mxu0
  %v1508 = vadd.f32 0.0, %v1507
  %v1509 = vpop.f32.mrb[0].mxu0
  %v1510 = vpop.f32.mrb[0].mxu0
  %v1511 = vadd.f32 0.0, %v1510
  %v1512 = vpop.f32.mrb[0].mxu0
  %1513 = vdwg.mxu0
  %v1515 = vsel %vm541, %v1462, 0
  %v1518 = vsel %vm541, %v1464, 0
  %1520 = vmatprep.subr.bf16.mxu0 0
  %1521 = vmatpush1.bf16.xpose.msra.mxu0 %v1518
  %1522 = vmatprep.subr.bf16.mxu0 0
  %1523 = vmatpush1.bf16.xpose.msra.mxu0 0
  %1524 = vmatprep.subr.bf16.mxu0 0
  %1525 = vmatpush1.bf16.xpose.msra.mxu0 0
  %1526 = vmatprep.subr.bf16.mxu0 0
  %1527 = vmatpush1.bf16.xpose.msra.mxu0 0
  %1528 = vmatprep.subr.bf16.mxu0 0
  %1529 = vmatpush1.bf16.xpose.msra.mxu0 0
  %1530 = vmatprep.subr.bf16.mxu0 0
  %1531 = vmatpush1.bf16.xpose.msra.mxu0 0
  %1532 = vmatprep.subr.bf16.mxu0 0
  %1533 = vmatpush1.bf16.xpose.msra.mxu0 0
  %1534 = vmatprep.subr.bf16.mxu0 0
  %1535 = vmatpush1.bf16.xpose.msra.mxu0 0
  %1536 = vmatprep.subr.bf16.mxu0 0
  %1537 = vmatpush1.bf16.xpose.msra.mxu0 0
  %1538 = vmatprep.subr.bf16.mxu0 0
  %1539 = vmatpush1.bf16.xpose.msra.mxu0 0
  %1540 = vmatprep.subr.bf16.mxu0 0
  %1541 = vmatpush1.bf16.xpose.msra.mxu0 0
  %1542 = vmatprep.subr.bf16.mxu0 0
  %1543 = vmatpush1.bf16.xpose.msra.mxu0 0
  %1544 = vmatprep.subr.bf16.mxu0 0
  %1545 = vmatpush1.bf16.xpose.msra.mxu0 0
  %1546 = vmatprep.subr.bf16.mxu0 0
  %1547 = vmatpush1.bf16.xpose.msra.mxu0 0
  %1548 = vmatprep.subr.bf16.mxu0 0
  %1549 = vmatpush1.bf16.xpose.msra.mxu0 0
  %1550 = vmatprep.subr.bf16.mxu0 0
  %1551 = vmatpush1.bf16.xpose.msra.mxu0 0
  %1552 = vmatprep.mubr.bf16.mxu0 0
  %1553 = vmatmul.mubr.bf16.gmra.mrb[0].mxu0 %v1515
  %v1554 = vpop.f32.mrb[0].mxu0
  %v1555 = vadd.f32 0.0, %v1554
  %v1556 = vpop.f32.mrb[0].mxu0
  %v1557 = vpop.f32.mrb[0].mxu0
  %v1558 = vadd.f32 0.0, %v1557
  %v1559 = vpop.f32.mrb[0].mxu0
  %1560 = vdwg.mxu0
  %vm1561 = vcmask 64512
  %v1562 = vsel %vm1561, %v1508, -inf
  %1563 = vmax.xlane.f32.xlu0 %v1562
  %v1564 = vpop.xlane.xlu0 %1563
  %v1565 = vsel %vm1561, %v1511, -inf
  %1566 = vmax.xlane.f32.xlu0 %v1565
  %v1567 = vpop.xlane.xlu0 %1566
  %v1568 = vsel %vm1561, %v1555, -inf
  %1569 = vmax.xlane.f32.xlu0 %v1568
  %v1570 = vpop.xlane.xlu0 %1569
  %v1571 = vsel %vm1561, %v1558, -inf
  %1572 = vmax.xlane.f32.xlu0 %v1571
  %v1573 = vpop.xlane.xlu0 %1572
  %v1574 = vsub.f32 %v1508, %v1564
  %v1575 = vsub.f32 %v1511, %v1567
  %v1576 = vsub.f32 %v1555, %v1570
  %v1577 = vsub.f32 %v1558, %v1573
  %v1578 = vmul.f32 %v1574, 1.442695
  %v1579 = vpow.pop %v1578
  %v1580 = vmul.f32 %v1575, 1.442695
  %v1581 = vpow.pop %v1580
  %v1582 = vmul.f32 %v1576, 1.442695
  %v1583 = vpow.pop %v1582
  %v1584 = vmul.f32 %v1577, 1.442695
  %v1585 = vpow.pop %v1584
  %v1586 = vsel %vm1561, %v1579, 0.0
  %1587 = vadd.xlane.f32.xlu0 %v1586
  %v1588 = vpop.xlane.xlu0 %1587
  %v1589 = vsel %vm1561, %v1581, 0.0
  %1590 = vadd.xlane.f32.xlu0 %v1589
  %v1591 = vpop.xlane.xlu0 %1590
  %v1592 = vsel %vm1561, %v1583, 0.0
  %1593 = vadd.xlane.f32.xlu0 %v1592
  %v1594 = vpop.xlane.xlu0 %1593
  %v1595 = vsel %vm1561, %v1585, 0.0
  %1596 = vadd.xlane.f32.xlu0 %v1595
  %v1597 = vpop.xlane.xlu0 %1596
  %v1598 = vrcp.pop %v1588
  %v1599 = vrcp.pop %v1591
  %v1600 = vrcp.pop %v1594
  %v1601 = vrcp.pop %v1597
  %v1602 = vmul.f32 %v1579, %v1598
  %v1603 = vmul.f32 %v1581, %v1599
  %v1604 = vmul.f32 %v1583, %v1600
  %v1605 = vmul.f32 %v1585, %v1601
  %v1606 = vpack.c.bf16 %v1603, %v1602
  %v1607 = vpack.c.bf16 %v1605, %v1604
  %v1609 = vsel %vm1561, %v1606, 0
  %vm1611 = vcmask 1043456
  %v1613 = vsel %vm1611, %v1465, 0
  %1615 = vmatprep.subr.bf16.mxu0 0
  %1616 = vmatpush1.bf16.msra.mxu0 %v1613
  %1617 = vmatprep.subr.bf16.mxu0 0
  %1618 = vmatpush1.bf16.msra.mxu0 0
  %1619 = vmatprep.subr.bf16.mxu0 0
  %1620 = vmatpush1.bf16.msra.mxu0 0
  %1621 = vmatprep.subr.bf16.mxu0 0
  %1622 = vmatpush1.bf16.msra.mxu0 0
  %1623 = vmatprep.subr.bf16.mxu0 0
  %1624 = vmatpush1.bf16.msra.mxu0 0
  %1625 = vmatprep.subr.bf16.mxu0 0
  %1626 = vmatpush1.bf16.msra.mxu0 0
  %1627 = vmatprep.subr.bf16.mxu0 0
  %1628 = vmatpush1.bf16.msra.mxu0 0
  %1629 = vmatprep.subr.bf16.mxu0 0
  %1630 = vmatpush1.bf16.msra.mxu0 0
  %1631 = vmatprep.subr.bf16.mxu0 0
  %1632 = vmatpush1.bf16.msra.mxu0 0
  %1633 = vmatprep.subr.bf16.mxu0 0
  %1634 = vmatpush1.bf16.msra.mxu0 0
  %1635 = vmatprep.subr.bf16.mxu0 0
  %1636 = vmatpush1.bf16.msra.mxu0 0
  %1637 = vmatprep.subr.bf16.mxu0 0
  %1638 = vmatpush1.bf16.msra.mxu0 0
  %1639 = vmatprep.subr.bf16.mxu0 0
  %1640 = vmatpush1.bf16.msra.mxu0 0
  %1641 = vmatprep.subr.bf16.mxu0 0
  %1642 = vmatpush1.bf16.msra.mxu0 0
  %1643 = vmatprep.subr.bf16.mxu0 0
  %1644 = vmatpush1.bf16.msra.mxu0 0
  %1645 = vmatprep.subr.bf16.mxu0 0
  %1646 = vmatpush1.bf16.msra.mxu0 0
  %1647 = vmatprep.mubr.bf16.mxu0 0
  %1648 = vmatmul.mubr.bf16.gmra.mrb[0].mxu0 %v1609
  %v1649 = vpop.f32.mrb[0].mxu0
  %v1650 = vadd.f32 0.0, %v1649
  %v1651 = vpop.f32.mrb[0].mxu0
  %v1652 = vpop.f32.mrb[0].mxu0
  %v1653 = vadd.f32 0.0, %v1652
  %v1654 = vpop.f32.mrb[0].mxu0
  %1655 = vdwg.mxu0
  %v1657 = vsel %vm1561, %v1607, 0
  %v1660 = vsel %vm1611, %v1466, 0
  %1662 = vmatprep.subr.bf16.mxu0 0
  %1663 = vmatpush1.bf16.msra.mxu0 %v1660
  %1664 = vmatprep.subr.bf16.mxu0 0
  %1665 = vmatpush1.bf16.msra.mxu0 0
  %1666 = vmatprep.subr.bf16.mxu0 0
  %1667 = vmatpush1.bf16.msra.mxu0 0
  %1668 = vmatprep.subr.bf16.mxu0 0
  %1669 = vmatpush1.bf16.msra.mxu0 0
  %1670 = vmatprep.subr.bf16.mxu0 0
  %1671 = vmatpush1.bf16.msra.mxu0 0
  %1672 = vmatprep.subr.bf16.mxu0 0
  %1673 = vmatpush1.bf16.msra.mxu0 0
  %1674 = vmatprep.subr.bf16.mxu0 0
  %1675 = vmatpush1.bf16.msra.mxu0 0
  %1676 = vmatprep.subr.bf16.mxu0 0
  %1677 = vmatpush1.bf16.msra.mxu0 0
  %1678 = vmatprep.subr.bf16.mxu0 0
  %1679 = vmatpush1.bf16.msra.mxu0 0
  %1680 = vmatprep.subr.bf16.mxu0 0
  %1681 = vmatpush1.bf16.msra.mxu0 0
  %1682 = vmatprep.subr.bf16.mxu0 0
  %1683 = vmatpush1.bf16.msra.mxu0 0
  %1684 = vmatprep.subr.bf16.mxu0 0
  %1685 = vmatpush1.bf16.msra.mxu0 0
  %1686 = vmatprep.subr.bf16.mxu0 0
  %1687 = vmatpush1.bf16.msra.mxu0 0
  %1688 = vmatprep.subr.bf16.mxu0 0
  %1689 = vmatpush1.bf16.msra.mxu0 0
  %1690 = vmatprep.subr.bf16.mxu0 0
  %1691 = vmatpush1.bf16.msra.mxu0 0
  %1692 = vmatprep.subr.bf16.mxu0 0
  %1693 = vmatpush1.bf16.msra.mxu0 0
  %1694 = vmatprep.mubr.bf16.mxu0 0
  %1695 = vmatmul.mubr.bf16.gmra.mrb[0].mxu0 %v1657
  %v1696 = vpop.f32.mrb[0].mxu0
  %v1697 = vadd.f32 0.0, %v1696
  %v1698 = vpop.f32.mrb[0].mxu0
  %v1699 = vpop.f32.mrb[0].mxu0
  %v1700 = vadd.f32 0.0, %v1699
  %v1701 = vpop.f32.mrb[0].mxu0
  %1702 = vdwg.mxu0
  %1704 = vrot.lane.b32.xlu0 %v1461, 64
  %v1705 = vpop.permute.xlu0 %1704
  %1707 = vrot.lane.b32.xlu0 %v1463, 64
  %v1708 = vpop.permute.xlu0 %1707
  %v1710 = vsel %vm541, %v1705, 0
  %v1713 = vsel %vm541, %v1708, 0
  %1715 = vmatprep.subr.bf16.mxu0 0
  %1716 = vmatpush1.bf16.xpose.msra.mxu0 %v1713
  %1717 = vmatprep.subr.bf16.mxu0 0
  %1718 = vmatpush1.bf16.xpose.msra.mxu0 0
  %1719 = vmatprep.subr.bf16.mxu0 0
  %1720 = vmatpush1.bf16.xpose.msra.mxu0 0
  %1721 = vmatprep.subr.bf16.mxu0 0
  %1722 = vmatpush1.bf16.xpose.msra.mxu0 0
  %1723 = vmatprep.subr.bf16.mxu0 0
  %1724 = vmatpush1.bf16.xpose.msra.mxu0 0
  %1725 = vmatprep.subr.bf16.mxu0 0
  %1726 = vmatpush1.bf16.xpose.msra.mxu0 0
  %1727 = vmatprep.subr.bf16.mxu0 0
  %1728 = vmatpush1.bf16.xpose.msra.mxu0 0
  %1729 = vmatprep.subr.bf16.mxu0 0
  %1730 = vmatpush1.bf16.xpose.msra.mxu0 0
  %1731 = vmatprep.subr.bf16.mxu0 0
  %1732 = vmatpush1.bf16.xpose.msra.mxu0 0
  %1733 = vmatprep.subr.bf16.mxu0 0
  %1734 = vmatpush1.bf16.xpose.msra.mxu0 0
  %1735 = vmatprep.subr.bf16.mxu0 0
  %1736 = vmatpush1.bf16.xpose.msra.mxu0 0
  %1737 = vmatprep.subr.bf16.mxu0 0
  %1738 = vmatpush1.bf16.xpose.msra.mxu0 0
  %1739 = vmatprep.subr.bf16.mxu0 0
  %1740 = vmatpush1.bf16.xpose.msra.mxu0 0
  %1741 = vmatprep.subr.bf16.mxu0 0
  %1742 = vmatpush1.bf16.xpose.msra.mxu0 0
  %1743 = vmatprep.subr.bf16.mxu0 0
  %1744 = vmatpush1.bf16.xpose.msra.mxu0 0
  %1745 = vmatprep.subr.bf16.mxu0 0
  %1746 = vmatpush1.bf16.xpose.msra.mxu0 0
  %1747 = vmatprep.mubr.bf16.mxu0 0
  %1748 = vmatmul.mubr.bf16.gmra.mrb[0].mxu0 %v1710
  %v1749 = vpop.f32.mrb[0].mxu0
  %v1750 = vadd.f32 0.0, %v1749
  %v1751 = vpop.f32.mrb[0].mxu0
  %v1752 = vpop.f32.mrb[0].mxu0
  %v1753 = vadd.f32 0.0, %v1752
  %v1754 = vpop.f32.mrb[0].mxu0
  %1755 = vdwg.mxu0
  %1757 = vrot.lane.b32.xlu0 %v1462, 64
  %v1758 = vpop.permute.xlu0 %1757
  %1760 = vrot.lane.b32.xlu0 %v1464, 64
  %v1761 = vpop.permute.xlu0 %1760
  %v1763 = vsel %vm541, %v1758, 0
  %v1766 = vsel %vm541, %v1761, 0
  %1768 = vmatprep.subr.bf16.mxu0 0
  %1769 = vmatpush1.bf16.xpose.msra.mxu0 %v1766
  %1770 = vmatprep.subr.bf16.mxu0 0
  %1771 = vmatpush1.bf16.xpose.msra.mxu0 0
  %1772 = vmatprep.subr.bf16.mxu0 0
  %1773 = vmatpush1.bf16.xpose.msra.mxu0 0
  %1774 = vmatprep.subr.bf16.mxu0 0
  %1775 = vmatpush1.bf16.xpose.msra.mxu0 0
  %1776 = vmatprep.subr.bf16.mxu0 0
  %1777 = vmatpush1.bf16.xpose.msra.mxu0 0
  %1778 = vmatprep.subr.bf16.mxu0 0
  %1779 = vmatpush1.bf16.xpose.msra.mxu0 0
  %1780 = vmatprep.subr.bf16.mxu0 0
  %1781 = vmatpush1.bf16.xpose.msra.mxu0 0
  %1782 = vmatprep.subr.bf16.mxu0 0
  %1783 = vmatpush1.bf16.xpose.msra.mxu0 0
  %1784 = vmatprep.subr.bf16.mxu0 0
  %1785 = vmatpush1.bf16.xpose.msra.mxu0 0
  %1786 = vmatprep.subr.bf16.mxu0 0
  %1787 = vmatpush1.bf16.xpose.msra.mxu0 0
  %1788 = vmatprep.subr.bf16.mxu0 0
  %1789 = vmatpush1.bf16.xpose.msra.mxu0 0
  %1790 = vmatprep.subr.bf16.mxu0 0
  %1791 = vmatpush1.bf16.xpose.msra.mxu0 0
  %1792 = vmatprep.subr.bf16.mxu0 0
  %1793 = vmatpush1.bf16.xpose.msra.mxu0 0
  %1794 = vmatprep.subr.bf16.mxu0 0
  %1795 = vmatpush1.bf16.xpose.msra.mxu0 0
  %1796 = vmatprep.subr.bf16.mxu0 0
  %1797 = vmatpush1.bf16.xpose.msra.mxu0 0
  %1798 = vmatprep.subr.bf16.mxu0 0
  %1799 = vmatpush1.bf16.xpose.msra.mxu0 0
  %1800 = vmatprep.mubr.bf16.mxu0 0
  %1801 = vmatmul.mubr.bf16.gmra.mrb[0].mxu0 %v1763
  %v1802 = vpop.f32.mrb[0].mxu0
  %v1803 = vadd.f32 0.0, %v1802
  %v1804 = vpop.f32.mrb[0].mxu0
  %v1805 = vpop.f32.mrb[0].mxu0
  %v1806 = vadd.f32 0.0, %v1805
  %v1807 = vpop.f32.mrb[0].mxu0
  %1808 = vdwg.mxu0
  %v1809 = vsel %vm1561, %v1750, -inf
  %1810 = vmax.xlane.f32.xlu0 %v1809
  %v1811 = vpop.xlane.xlu0 %1810
  %v1812 = vsel %vm1561, %v1753, -inf
  %1813 = vmax.xlane.f32.xlu0 %v1812
  %v1814 = vpop.xlane.xlu0 %1813
  %v1815 = vsel %vm1561, %v1803, -inf
  %1816 = vmax.xlane.f32.xlu0 %v1815
  %v1817 = vpop.xlane.xlu0 %1816
  %v1818 = vsel %vm1561, %v1806, -inf
  %1819 = vmax.xlane.f32.xlu0 %v1818
  %v1820 = vpop.xlane.xlu0 %1819
  %v1821 = vsub.f32 %v1750, %v1811
  %v1822 = vsub.f32 %v1753, %v1814
  %v1823 = vsub.f32 %v1803, %v1817
  %v1824 = vsub.f32 %v1806, %v1820
  %v1825 = vmul.f32 %v1821, 1.442695
  %v1826 = vpow.pop %v1825
  %v1827 = vmul.f32 %v1822, 1.442695
  %v1828 = vpow.pop %v1827
  %v1829 = vmul.f32 %v1823, 1.442695
  %v1830 = vpow.pop %v1829
  %v1831 = vmul.f32 %v1824, 1.442695
  %v1832 = vpow.pop %v1831
  %v1833 = vsel %vm1561, %v1826, 0.0
  %1834 = vadd.xlane.f32.xlu0 %v1833
  %v1835 = vpop.xlane.xlu0 %1834
  %v1836 = vsel %vm1561, %v1828, 0.0
  %1837 = vadd.xlane.f32.xlu0 %v1836
  %v1838 = vpop.xlane.xlu0 %1837
  %v1839 = vsel %vm1561, %v1830, 0.0
  %1840 = vadd.xlane.f32.xlu0 %v1839
  %v1841 = vpop.xlane.xlu0 %1840
  %v1842 = vsel %vm1561, %v1832, 0.0
  %1843 = vadd.xlane.f32.xlu0 %v1842
  %v1844 = vpop.xlane.xlu0 %1843
  %v1845 = vrcp.pop %v1835
  %v1846 = vrcp.pop %v1838
  %v1847 = vrcp.pop %v1841
  %v1848 = vrcp.pop %v1844
  %v1849 = vmul.f32 %v1826, %v1845
  %v1850 = vmul.f32 %v1828, %v1846
  %v1851 = vmul.f32 %v1830, %v1847
  %v1852 = vmul.f32 %v1832, %v1848
  %v1853 = vpack.c.bf16 %v1850, %v1849
  %v1854 = vpack.c.bf16 %v1852, %v1851
  %1856 = vrot.lane.b32.xlu0 %v1465, 64
  %v1857 = vpop.permute.xlu0 %1856
  %v1859 = vsel %vm1561, %v1853, 0
  %v1862 = vsel %vm1611, %v1857, 0
  %1864 = vmatprep.subr.bf16.mxu0 0
  %1865 = vmatpush1.bf16.msra.mxu0 %v1862
  %1866 = vmatprep.subr.bf16.mxu0 0
  %1867 = vmatpush1.bf16.msra.mxu0 0
  %1868 = vmatprep.subr.bf16.mxu0 0
  %1869 = vmatpush1.bf16.msra.mxu0 0
  %1870 = vmatprep.subr.bf16.mxu0 0
  %1871 = vmatpush1.bf16.msra.mxu0 0
  %1872 = vmatprep.subr.bf16.mxu0 0
  %1873 = vmatpush1.bf16.msra.mxu0 0
  %1874 = vmatprep.subr.bf16.mxu0 0
  %1875 = vmatpush1.bf16.msra.mxu0 0
  %1876 = vmatprep.subr.bf16.mxu0 0
  %1877 = vmatpush1.bf16.msra.mxu0 0
  %1878 = vmatprep.subr.bf16.mxu0 0
  %1879 = vmatpush1.bf16.msra.mxu0 0
  %1880 = vmatprep.subr.bf16.mxu0 0
  %1881 = vmatpush1.bf16.msra.mxu0 0
  %1882 = vmatprep.subr.bf16.mxu0 0
  %1883 = vmatpush1.bf16.msra.mxu0 0
  %1884 = vmatprep.subr.bf16.mxu0 0
  %1885 = vmatpush1.bf16.msra.mxu0 0
  %1886 = vmatprep.subr.bf16.mxu0 0
  %1887 = vmatpush1.bf16.msra.mxu0 0
  %1888 = vmatprep.subr.bf16.mxu0 0
  %1889 = vmatpush1.bf16.msra.mxu0 0
  %1890 = vmatprep.subr.bf16.mxu0 0
  %1891 = vmatpush1.bf16.msra.mxu0 0
  %1892 = vmatprep.subr.bf16.mxu0 0
  %1893 = vmatpush1.bf16.msra.mxu0 0
  %1894 = vmatprep.subr.bf16.mxu0 0
  %1895 = vmatpush1.bf16.msra.mxu0 0
  %1896 = vmatprep.mubr.bf16.mxu0 0
  %1897 = vmatmul.mubr.bf16.gmra.mrb[0].mxu0 %v1859
  %v1898 = vpop.f32.mrb[0].mxu0
  %v1899 = vadd.f32 0.0, %v1898
  %v1900 = vpop.f32.mrb[0].mxu0
  %v1901 = vpop.f32.mrb[0].mxu0
  %v1902 = vadd.f32 0.0, %v1901
  %v1903 = vpop.f32.mrb[0].mxu0
  %1904 = vdwg.mxu0
  %1906 = vrot.lane.b32.xlu0 %v1466, 64
  %v1907 = vpop.permute.xlu0 %1906
  %v1909 = vsel %vm1561, %v1854, 0
  %v1912 = vsel %vm1611, %v1907, 0
  %1914 = vmatprep.subr.bf16.mxu0 0
  %1915 = vmatpush1.bf16.msra.mxu0 %v1912
  %1916 = vmatprep.subr.bf16.mxu0 0
  %1917 = vmatpush1.bf16.msra.mxu0 0
  %1918 = vmatprep.subr.bf16.mxu0 0
  %1919 = vmatpush1.bf16.msra.mxu0 0
  %1920 = vmatprep.subr.bf16.mxu0 0
  %1921 = vmatpush1.bf16.msra.mxu0 0
  %1922 = vmatprep.subr.bf16.mxu0 0
  %1923 = vmatpush1.bf16.msra.mxu0 0
  %1924 = vmatprep.subr.bf16.mxu0 0
  %1925 = vmatpush1.bf16.msra.mxu0 0
  %1926 = vmatprep.subr.bf16.mxu0 0
  %1927 = vmatpush1.bf16.msra.mxu0 0
  %1928 = vmatprep.subr.bf16.mxu0 0
  %1929 = vmatpush1.bf16.msra.mxu0 0
  %1930 = vmatprep.subr.bf16.mxu0 0
  %1931 = vmatpush1.bf16.msra.mxu0 0
  %1932 = vmatprep.subr.bf16.mxu0 0
  %1933 = vmatpush1.bf16.msra.mxu0 0
  %1934 = vmatprep.subr.bf16.mxu0 0
  %1935 = vmatpush1.bf16.msra.mxu0 0
  %1936 = vmatprep.subr.bf16.mxu0 0
  %1937 = vmatpush1.bf16.msra.mxu0 0
  %1938 = vmatprep.subr.bf16.mxu0 0
  %1939 = vmatpush1.bf16.msra.mxu0 0
  %1940 = vmatprep.subr.bf16.mxu0 0
  %1941 = vmatpush1.bf16.msra.mxu0 0
  %1942 = vmatprep.subr.bf16.mxu0 0
  %1943 = vmatpush1.bf16.msra.mxu0 0
  %1944 = vmatprep.subr.bf16.mxu0 0
  %1945 = vmatpush1.bf16.msra.mxu0 0
  %1946 = vmatprep.mubr.bf16.mxu0 0
  %1947 = vmatmul.mubr.bf16.gmra.mrb[0].mxu0 %v1909
  %v1948 = vpop.f32.mrb[0].mxu0
  %v1949 = vadd.f32 0.0, %v1948
  %v1950 = vpop.f32.mrb[0].mxu0
  %v1951 = vpop.f32.mrb[0].mxu0
  %v1952 = vadd.f32 0.0, %v1951
  %v1953 = vpop.f32.mrb[0].mxu0
  %1954 = vdwg.mxu0
  %1959 = vrot.lane.b32.xlu0 %v1899, 64
  %v1960 = vpop.permute.xlu0 %1959
  %1961 = vrot.lane.b32.xlu0 %v1902, 64
  %v1962 = vpop.permute.xlu0 %1961
  %1963 = vrot.lane.b32.xlu0 %v1949, 64
  %v1964 = vpop.permute.xlu0 %1963
  %1965 = vrot.lane.b32.xlu0 %v1952, 64
  %v1966 = vpop.permute.xlu0 %1965
  %v1971 = vsel %vm541, %v1650, %v1960
  %v1972 = vsel %vm541, %v1653, %v1962
  %v1973 = vsel %vm541, %v1697, %v1964
  %v1974 = vsel %vm541, %v1700, %v1966
  %v1975 = vld [vmem:[%s6 + $0x1c] sm:$0xf]
  %v1976 = vld [vmem:[%s6 + $0x48] sm:$0xf]
  %v1977 = vld [vmem:[%s6 + $0x74] sm:$0xf]
  %v1978 = vld [vmem:[%s6 + $0xa0] sm:$0xf]
  %v1979 = vld [vmem:[%s6 + $0xcc] sm:$0xf]
  %v1980 = vld [vmem:[%s6 + $0xf8] sm:$0xf]
  %v1981 = vld [vmem:[%s6 + $0x124] sm:$0xf]
  %v1982 = vld [vmem:[%s6 + $0x150] sm:$0xf]
  %v1983 = vld [vmem:[%s6 + $0x17c] sm:$0xf]
  %v1984 = vld [vmem:[%s6 + $0x1a8] sm:$0xf]
  %v1985 = vld [vmem:[%s6 + $0x1d4] sm:$0xf]
  %v1986 = vld [vmem:[%s6 + $0x200] sm:$0xf]
  %v1987 = vld [vmem:[%s6 + $0x22c] sm:$0xf]
  %v1988 = vld [vmem:[%s6 + $0x258] sm:$0xf]
  %v1989 = vld [vmem:[%s6 + $0x284] sm:$0xf]
  %v1990 = vld [vmem:[%s6 + $0x2b0] sm:$0xf]
  %v1991 = vpack.c.bf16 %v1972, %v1971
  %v1992 = vpack.c.bf16 %v1974, %v1973
  %v2009 = vunpack.c.l.b16 %v1975
  %v2010 = vunpack.c.l.b16 %v1976
  %v2011 = vunpack.c.l.b16 %v1977
  %v2012 = vunpack.c.l.b16 %v1978
  %v2013 = vunpack.c.l.b16 %v1979
  %v2014 = vunpack.c.l.b16 %v1980
  %v2015 = vunpack.c.l.b16 %v1981
  %v2016 = vunpack.c.l.b16 %v1982
  %v2017 = vunpack.c.l.b16 %v1983
  %v2018 = vunpack.c.l.b16 %v1984
  %v2019 = vunpack.c.l.b16 %v1985
  %v2020 = vunpack.c.l.b16 %v1986
  %v2021 = vunpack.c.l.b16 %v1987
  %v2022 = vunpack.c.l.b16 %v1988
  %v2023 = vunpack.c.l.b16 %v1989
  %v2024 = vunpack.c.l.b16 %v1990
  %v2025 = vpack.c.b16 %v2010, %v2009
  %v2026 = vpack.c.b16 %v2012, %v2011
  %v2027 = vpack.c.b16 %v2014, %v2013
  %v2028 = vpack.c.b16 %v2016, %v2015
  %v2029 = vpack.c.b16 %v2018, %v2017
  %v2030 = vpack.c.b16 %v2020, %v2019
  %v2031 = vpack.c.b16 %v2022, %v2021
  %v2032 = vpack.c.b16 %v2024, %v2023
  %2041 = vmatprep.subr.bf16.mxu0 0
  %2042 = vmatpush1.bf16.msra.mxu0 %v2025
  %2043 = vmatprep.subr.bf16.mxu0 0
  %2044 = vmatpush1.bf16.msra.mxu0 %v2026
  %2045 = vmatprep.subr.bf16.mxu0 0
  %2046 = vmatpush1.bf16.msra.mxu0 %v2027
  %2047 = vmatprep.subr.bf16.mxu0 0
  %2048 = vmatpush1.bf16.msra.mxu0 %v2028
  %2049 = vmatprep.subr.bf16.mxu0 0
  %2050 = vmatpush1.bf16.msra.mxu0 %v2029
  %2051 = vmatprep.subr.bf16.mxu0 0
  %2052 = vmatpush1.bf16.msra.mxu0 %v2030
  %2053 = vmatprep.subr.bf16.mxu0 0
  %2054 = vmatpush1.bf16.msra.mxu0 %v2031
  %2055 = vmatprep.subr.bf16.mxu0 0
  %2056 = vmatpush1.bf16.msra.mxu0 %v2032
  %2057 = vmatprep.subr.bf16.mxu0 0
  %2058 = vmatpush1.bf16.msra.mxu0 0
  %2059 = vmatprep.subr.bf16.mxu0 0
  %2060 = vmatpush1.bf16.msra.mxu0 0
  %2061 = vmatprep.subr.bf16.mxu0 0
  %2062 = vmatpush1.bf16.msra.mxu0 0
  %2063 = vmatprep.subr.bf16.mxu0 0
  %2064 = vmatpush1.bf16.msra.mxu0 0
  %2065 = vmatprep.subr.bf16.mxu0 0
  %2066 = vmatpush1.bf16.msra.mxu0 0
  %2067 = vmatprep.subr.bf16.mxu0 0
  %2068 = vmatpush1.bf16.msra.mxu0 0
  %2069 = vmatprep.subr.bf16.mxu0 0
  %2070 = vmatpush1.bf16.msra.mxu0 0
  %2071 = vmatprep.subr.bf16.mxu0 0
  %2072 = vmatpush1.bf16.msra.mxu0 0
  %2073 = vmatprep.mubr.bf16.mxu0 0
  %2074 = vmatmul.mubr.bf16.gmra.mrb[0].mxu0 %v1991
  %v2075 = vpop.f32.mrb[0].mxu0
  %v2076 = vadd.f32 0.0, %v2075
  %v2077 = vpop.f32.mrb[0].mxu0
  %v2078 = vpop.f32.mrb[0].mxu0
  %v2079 = vadd.f32 0.0, %v2078
  %v2080 = vpop.f32.mrb[0].mxu0
  %2081 = vmatprep.mubr.bf16.mxu0 0
  %2082 = vmatmul.mubr.bf16.gmra.mrb[0].mxu0 %v1992
  %v2083 = vpop.f32.mrb[0].mxu0
  %v2084 = vadd.f32 0.0, %v2083
  %v2085 = vpop.f32.mrb[0].mxu0
  %v2086 = vpop.f32.mrb[0].mxu0
  %v2087 = vadd.f32 0.0, %v2086
  %v2088 = vpop.f32.mrb[0].mxu0
  %2089 = vdwg.mxu0
  %v2090 = vadd.f32 %v1177, %v2076
  %v2091 = vadd.f32 %v1178, %v2079
  %v2092 = vadd.f32 %v1179, %v2084
  %v2093 = vadd.f32 %v1180, %v2087
  %v2094 = vld [vmem:[%s8 + $0x8] sm:$0x1]
  %v2096 = vlaneseq
  %v2097 = vshrl.u32 %v2096, 7
  %v2098 = vsub.s32 0, %v2097
  %v2099 = vrot.slane %v2094, %v2098
  %v2101 = vadd.f32 %v2090, %v2099
  %v2102 = vadd.f32 %v2091, %v2099
  %v2103 = vadd.f32 %v2092, %v2099
  %v2104 = vadd.f32 %v2093, %v2099
  %2105 = vadd.xlane.f32.xlu0 %v2101
  %v2106 = vpop.xlane.xlu0 %2105
  %2107 = vadd.xlane.f32.xlu0 %v2102
  %v2108 = vpop.xlane.xlu0 %2107
  %2109 = vadd.xlane.f32.xlu0 %v2103
  %v2110 = vpop.xlane.xlu0 %2109
  %2111 = vadd.xlane.f32.xlu0 %v2104
  %v2112 = vpop.xlane.xlu0 %2111
  %v2113 = vmul.f32 %v2106, %v175
  %v2114 = vmul.f32 %v2108, %v175
  %v2115 = vmul.f32 %v2110, %v175
  %v2116 = vmul.f32 %v2112, %v175
  %v2117 = vmul.f32 %v2101, %v2101
  %v2118 = vmul.f32 %v2102, %v2102
  %v2119 = vmul.f32 %v2103, %v2103
  %v2120 = vmul.f32 %v2104, %v2104
  %2121 = vadd.xlane.f32.xlu0 %v2117
  %v2122 = vpop.xlane.xlu0 %2121
  %2123 = vadd.xlane.f32.xlu0 %v2118
  %v2124 = vpop.xlane.xlu0 %2123
  %2125 = vadd.xlane.f32.xlu0 %v2119
  %v2126 = vpop.xlane.xlu0 %2125
  %2127 = vadd.xlane.f32.xlu0 %v2120
  %v2128 = vpop.xlane.xlu0 %2127
  %v2129 = vmul.f32 %v2122, %v175
  %v2130 = vmul.f32 %v2124, %v175
  %v2131 = vmul.f32 %v2126, %v175
  %v2132 = vmul.f32 %v2128, %v175
  %v2133 = vmul.f32 %v2113, %v2113
  %v2134 = vmul.f32 %v2114, %v2114
  %v2135 = vmul.f32 %v2115, %v2115
  %v2136 = vmul.f32 %v2116, %v2116
  %v2137 = vsub.f32 %v2129, %v2133
  %v2138 = vsub.f32 %v2130, %v2134
  %v2139 = vsub.f32 %v2131, %v2135
  %v2140 = vsub.f32 %v2132, %v2136
  %v2141 = vmax.f32 %v2137, 0.0
  %v2142 = vmax.f32 %v2138, 0.0
  %v2143 = vmax.f32 %v2139, 0.0
  %v2144 = vmax.f32 %v2140, 0.0
  %v2145 = vsub.f32 %v2101, %v2113
  %v2146 = vsub.f32 %v2102, %v2114
  %v2147 = vsub.f32 %v2103, %v2115
  %v2148 = vsub.f32 %v2104, %v2116
  %v2149 = vadd.f32 %v2141, 1e-06
  %v2150 = vadd.f32 %v2142, 1e-06
  %v2151 = vadd.f32 %v2143, 1e-06
  %v2152 = vadd.f32 %v2144, 1e-06
  %v2153 = vrsqrt.pop %v2149
  %v2154 = vrsqrt.pop %v2150
  %v2155 = vrsqrt.pop %v2151
  %v2156 = vrsqrt.pop %v2152
  %v2157 = vmul.f32 %v2145, %v2153
  %v2158 = vmul.f32 %v2146, %v2154
  %v2159 = vmul.f32 %v2147, %v2155
  %v2160 = vmul.f32 %v2148, %v2156
  %v2161 = vlaneseq
  %v2162 = vshrl.u32 %v2161, 7
  %v2163 = vsub.s32 4, %v2162
  %v2164 = vrot.slane %v224, %v2163
  %v2165 = vlaneseq
  %v2166 = vshrl.u32 %v2165, 7
  %v2167 = vsub.s32 4, %v2166
  %v2168 = vrot.slane %v225, %v2167
  %v2169 = vmul.f32 %v2157, %v2164
  %v2170 = vmul.f32 %v2158, %v2164
  %v2171 = vmul.f32 %v2159, %v2168
  %v2172 = vmul.f32 %v2160, %v2168
  %v2173 = vlaneseq
  %v2174 = vshrl.u32 %v2173, 7
  %v2175 = vsub.s32 3, %v2174
  %v2176 = vrot.slane %v165, %v2175
  %v2177 = vlaneseq
  %v2178 = vshrl.u32 %v2177, 7
  %v2179 = vsub.s32 3, %v2178
  %v2180 = vrot.slane %v166, %v2179
  %v2181 = vadd.f32 %v2169, %v2176
  %v2182 = vadd.f32 %v2170, %v2176
  %v2183 = vadd.f32 %v2171, %v2180
  %v2184 = vadd.f32 %v2172, %v2180
  %v2185 = vpack.c.bf16 %v2182, %v2181
  %v2186 = vpack.c.bf16 %v2184, %v2183
  %v2187 = vld [vmem:[%s6 + $0x20] sm:$0xff]
  %v2188 = vld [vmem:[%s6 + $0x4c] sm:$0xff]
  %v2189 = vld [vmem:[%s6 + $0x78] sm:$0xff]
  %v2190 = vld [vmem:[%s6 + $0xa4] sm:$0xff]
  %v2191 = vld [vmem:[%s6 + $0xd0] sm:$0xff]
  %v2192 = vld [vmem:[%s6 + $0xfc] sm:$0xff]
  %v2193 = vld [vmem:[%s6 + $0x128] sm:$0xff]
  %v2194 = vld [vmem:[%s6 + $0x154] sm:$0xff]
  %v2195 = vld [vmem:[%s6 + $0x180] sm:$0xff]
  %v2196 = vld [vmem:[%s6 + $0x1ac] sm:$0xff]
  %v2197 = vld [vmem:[%s6 + $0x1d8] sm:$0xff]
  %v2198 = vld [vmem:[%s6 + $0x204] sm:$0xff]
  %v2199 = vld [vmem:[%s6 + $0x230] sm:$0xff]
  %v2200 = vld [vmem:[%s6 + $0x25c] sm:$0xff]
  %v2201 = vld [vmem:[%s6 + $0x288] sm:$0xff]
  %v2202 = vld [vmem:[%s6 + $0x2b4] sm:$0xff]
  %v2203 = vld [vmem:[%s8 + $0x9] sm:$0x3]
  %v2205 = vlaneseq
  %v2206 = vshrl.u32 %v2205, 7
  %v2207 = vsub.s32 0, %v2206
  %v2208 = vrot.slane %v2203, %v2207
  %v2209 = vlaneseq
  %v2210 = vshrl.u32 %v2209, 7
  %v2211 = vsub.s32 1, %v2210
  %v2212 = vrot.slane %v2203, %v2211
  %v2231 = vunpack.c.l.b16 %v2187
  %v2232 = vunpack.c.h.b16 %v2187
  %v2233 = vunpack.c.l.b16 %v2188
  %v2234 = vunpack.c.h.b16 %v2188
  %v2235 = vunpack.c.l.b16 %v2189
  %v2236 = vunpack.c.h.b16 %v2189
  %v2237 = vunpack.c.l.b16 %v2190
  %v2238 = vunpack.c.h.b16 %v2190
  %v2239 = vunpack.c.l.b16 %v2191
  %v2240 = vunpack.c.h.b16 %v2191
  %v2241 = vunpack.c.l.b16 %v2192
  %v2242 = vunpack.c.h.b16 %v2192
  %v2243 = vunpack.c.l.b16 %v2193
  %v2244 = vunpack.c.h.b16 %v2193
  %v2245 = vunpack.c.l.b16 %v2194
  %v2246 = vunpack.c.h.b16 %v2194
  %v2247 = vunpack.c.l.b16 %v2195
  %v2248 = vunpack.c.h.b16 %v2195
  %v2249 = vunpack.c.l.b16 %v2196
  %v2250 = vunpack.c.h.b16 %v2196
  %v2251 = vunpack.c.l.b16 %v2197
  %v2252 = vunpack.c.h.b16 %v2197
  %v2253 = vunpack.c.l.b16 %v2198
  %v2254 = vunpack.c.h.b16 %v2198
  %v2255 = vunpack.c.l.b16 %v2199
  %v2256 = vunpack.c.h.b16 %v2199
  %v2257 = vunpack.c.l.b16 %v2200
  %v2258 = vunpack.c.h.b16 %v2200
  %v2259 = vunpack.c.l.b16 %v2201
  %v2260 = vunpack.c.h.b16 %v2201
  %v2261 = vunpack.c.l.b16 %v2202
  %v2262 = vunpack.c.h.b16 %v2202
  %v2263 = vpack.c.b16 %v2233, %v2231
  %v2264 = vpack.c.b16 %v2234, %v2232
  %v2265 = vpack.c.b16 %v2237, %v2235
  %v2266 = vpack.c.b16 %v2238, %v2236
  %v2267 = vpack.c.b16 %v2241, %v2239
  %v2268 = vpack.c.b16 %v2242, %v2240
  %v2269 = vpack.c.b16 %v2245, %v2243
  %v2270 = vpack.c.b16 %v2246, %v2244
  %v2271 = vpack.c.b16 %v2249, %v2247
  %v2272 = vpack.c.b16 %v2250, %v2248
  %v2273 = vpack.c.b16 %v2253, %v2251
  %v2274 = vpack.c.b16 %v2254, %v2252
  %v2275 = vpack.c.b16 %v2257, %v2255
  %v2276 = vpack.c.b16 %v2258, %v2256
  %v2277 = vpack.c.b16 %v2261, %v2259
  %v2278 = vpack.c.b16 %v2262, %v2260
  %2295 = vmatprep.subr.bf16.mxu0 %v2264
  %2296 = vmatpush1.bf16.msra.mxu0 %v2263
  %2297 = vmatprep.subr.bf16.mxu0 %v2266
  %2298 = vmatpush1.bf16.msra.mxu0 %v2265
  %2299 = vmatprep.subr.bf16.mxu0 %v2268
  %2300 = vmatpush1.bf16.msra.mxu0 %v2267
  %2301 = vmatprep.subr.bf16.mxu0 %v2270
  %2302 = vmatpush1.bf16.msra.mxu0 %v2269
  %2303 = vmatprep.subr.bf16.mxu0 %v2272
  %2304 = vmatpush1.bf16.msra.mxu0 %v2271
  %2305 = vmatprep.subr.bf16.mxu0 %v2274
  %2306 = vmatpush1.bf16.msra.mxu0 %v2273
  %2307 = vmatprep.subr.bf16.mxu0 %v2276
  %2308 = vmatpush1.bf16.msra.mxu0 %v2275
  %2309 = vmatprep.subr.bf16.mxu0 %v2278
  %2310 = vmatpush1.bf16.msra.mxu0 %v2277
  %2311 = vmatprep.subr.bf16.mxu0 0
  %2312 = vmatpush1.bf16.msra.mxu0 0
  %2313 = vmatprep.subr.bf16.mxu0 0
  %2314 = vmatpush1.bf16.msra.mxu0 0
  %2315 = vmatprep.subr.bf16.mxu0 0
  %2316 = vmatpush1.bf16.msra.mxu0 0
  %2317 = vmatprep.subr.bf16.mxu0 0
  %2318 = vmatpush1.bf16.msra.mxu0 0
  %2319 = vmatprep.subr.bf16.mxu0 0
  %2320 = vmatpush1.bf16.msra.mxu0 0
  %2321 = vmatprep.subr.bf16.mxu0 0
  %2322 = vmatpush1.bf16.msra.mxu0 0
  %2323 = vmatprep.subr.bf16.mxu0 0
  %2324 = vmatpush1.bf16.msra.mxu0 0
  %2325 = vmatprep.subr.bf16.mxu0 0
  %2326 = vmatpush1.bf16.msra.mxu0 0
  %2327 = vmatprep.mubr.bf16.mxu0 0
  %2328 = vmatmul.mubr.bf16.gmra.mrb[0].mxu0 %v2185
  %v2329 = vpop.f32.mrb[0].mxu0
  %v2330 = vadd.f32 %v2208, %v2329
  %v2331 = vpop.f32.mrb[0].mxu0
  %v2332 = vadd.f32 %v2212, %v2331
  %v2333 = vpop.f32.mrb[0].mxu0
  %v2334 = vadd.f32 %v2208, %v2333
  %v2335 = vpop.f32.mrb[0].mxu0
  %v2336 = vadd.f32 %v2212, %v2335
  %2337 = vmatprep.mubr.bf16.mxu0 0
  %2338 = vmatmul.mubr.bf16.gmra.mrb[0].mxu0 %v2186
  %v2339 = vpop.f32.mrb[0].mxu0
  %v2340 = vadd.f32 %v2208, %v2339
  %v2341 = vpop.f32.mrb[0].mxu0
  %v2342 = vadd.f32 %v2212, %v2341
  %v2343 = vpop.f32.mrb[0].mxu0
  %v2344 = vadd.f32 %v2208, %v2343
  %v2345 = vpop.f32.mrb[0].mxu0
  %v2346 = vadd.f32 %v2212, %v2345
  %2347 = vdwg.mxu0
  %v2348 = vmul.f32 %v2330, %v2330
  %v2349 = vmul.f32 %v2332, %v2332
  %v2350 = vmul.f32 %v2334, %v2334
  %v2351 = vmul.f32 %v2336, %v2336
  %v2352 = vmul.f32 %v2340, %v2340
  %v2353 = vmul.f32 %v2342, %v2342
  %v2354 = vmul.f32 %v2344, %v2344
  %v2355 = vmul.f32 %v2346, %v2346
  %v2356 = vmul.f32 %v2330, %v2348
  %v2357 = vmul.f32 %v2332, %v2349
  %v2358 = vmul.f32 %v2334, %v2350
  %v2359 = vmul.f32 %v2336, %v2351
  %v2360 = vmul.f32 %v2340, %v2352
  %v2361 = vmul.f32 %v2342, %v2353
  %v2362 = vmul.f32 %v2344, %v2354
  %v2363 = vmul.f32 %v2346, %v2355
  %v2364 = vmul.f32 %v2356, 0.044715
  %v2365 = vmul.f32 %v2357, 0.044715
  %v2366 = vmul.f32 %v2358, 0.044715
  %v2367 = vmul.f32 %v2359, 0.044715
  %v2368 = vmul.f32 %v2360, 0.044715
  %v2369 = vmul.f32 %v2361, 0.044715
  %v2370 = vmul.f32 %v2362, 0.044715
  %v2371 = vmul.f32 %v2363, 0.044715
  %v2372 = vadd.f32 %v2330, %v2364
  %v2373 = vadd.f32 %v2332, %v2365
  %v2374 = vadd.f32 %v2334, %v2366
  %v2375 = vadd.f32 %v2336, %v2367
  %v2376 = vadd.f32 %v2340, %v2368
  %v2377 = vadd.f32 %v2342, %v2369
  %v2378 = vadd.f32 %v2344, %v2370
  %v2379 = vadd.f32 %v2346, %v2371
  %v2380 = vmul.f32 %v2372, 0.7978846
  %v2381 = vmul.f32 %v2373, 0.7978846
  %v2382 = vmul.f32 %v2374, 0.7978846
  %v2383 = vmul.f32 %v2375, 0.7978846
  %v2384 = vmul.f32 %v2376, 0.7978846
  %v2385 = vmul.f32 %v2377, 0.7978846
  %v2386 = vmul.f32 %v2378, 0.7978846
  %v2387 = vmul.f32 %v2379, 0.7978846
  %v2388 = vtanh.pop %v2380
  %v2389 = vtanh.pop %v2381
  %v2390 = vtanh.pop %v2382
  %v2391 = vtanh.pop %v2383
  %v2392 = vtanh.pop %v2384
  %v2393 = vtanh.pop %v2385
  %v2394 = vtanh.pop %v2386
  %v2395 = vtanh.pop %v2387
  %v2396 = vadd.f32 %v2388, 1.0
  %v2397 = vadd.f32 %v2389, 1.0
  %v2398 = vadd.f32 %v2390, 1.0
  %v2399 = vadd.f32 %v2391, 1.0
  %v2400 = vadd.f32 %v2392, 1.0
  %v2401 = vadd.f32 %v2393, 1.0
  %v2402 = vadd.f32 %v2394, 1.0
  %v2403 = vadd.f32 %v2395, 1.0
  %v2404 = vmul.f32 %v2396, 0.5
  %v2405 = vmul.f32 %v2397, 0.5
  %v2406 = vmul.f32 %v2398, 0.5
  %v2407 = vmul.f32 %v2399, 0.5
  %v2408 = vmul.f32 %v2400, 0.5
  %v2409 = vmul.f32 %v2401, 0.5
  %v2410 = vmul.f32 %v2402, 0.5
  %v2411 = vmul.f32 %v2403, 0.5
  %v2412 = vmul.f32 %v2330, %v2404
  %v2413 = vmul.f32 %v2332, %v2405
  %v2414 = vmul.f32 %v2334, %v2406
  %v2415 = vmul.f32 %v2336, %v2407
  %v2416 = vmul.f32 %v2340, %v2408
  %v2417 = vmul.f32 %v2342, %v2409
  %v2418 = vmul.f32 %v2344, %v2410
  %v2419 = vmul.f32 %v2346, %v2411
  %v2420 = vpack.c.bf16 %v2414, %v2412
  %v2421 = vpack.c.bf16 %v2415, %v2413
  %v2422 = vpack.c.bf16 %v2418, %v2416
  %v2423 = vpack.c.bf16 %v2419, %v2417
  %v2424 = vld [vmem:[%s7] sm:$0xf]
  %v2425 = vld [vmem:[%s7 + $0x4] sm:$0xf]
  %v2426 = vld [vmem:[%s7 + $0x8] sm:$0xf]
  %v2427 = vld [vmem:[%s7 + $0xc] sm:$0xf]
  %v2428 = vld [vmem:[%s7 + $0x10] sm:$0xf]
  %v2429 = vld [vmem:[%s7 + $0x14] sm:$0xf]
  %v2430 = vld [vmem:[%s7 + $0x18] sm:$0xf]
  %v2431 = vld [vmem:[%s7 + $0x1c] sm:$0xf]
  %v2432 = vld [vmem:[%s7 + $0x20] sm:$0xf]
  %v2433 = vld [vmem:[%s7 + $0x24] sm:$0xf]
  %v2434 = vld [vmem:[%s7 + $0x28] sm:$0xf]
  %v2435 = vld [vmem:[%s7 + $0x2c] sm:$0xf]
  %v2436 = vld [vmem:[%s7 + $0x30] sm:$0xf]
  %v2437 = vld [vmem:[%s7 + $0x34] sm:$0xf]
  %v2438 = vld [vmem:[%s7 + $0x38] sm:$0xf]
  %v2439 = vld [vmem:[%s7 + $0x3c] sm:$0xf]
  %v2440 = vld [vmem:[%s7 + $0x40] sm:$0xf]
  %v2441 = vld [vmem:[%s7 + $0x44] sm:$0xf]
  %v2442 = vld [vmem:[%s7 + $0x48] sm:$0xf]
  %v2443 = vld [vmem:[%s7 + $0x4c] sm:$0xf]
  %v2444 = vld [vmem:[%s7 + $0x50] sm:$0xf]
  %v2445 = vld [vmem:[%s7 + $0x54] sm:$0xf]
  %v2446 = vld [vmem:[%s7 + $0x58] sm:$0xf]
  %v2447 = vld [vmem:[%s7 + $0x5c] sm:$0xf]
  %v2448 = vld [vmem:[%s7 + $0x60] sm:$0xf]
  %v2449 = vld [vmem:[%s7 + $0x64] sm:$0xf]
  %v2450 = vld [vmem:[%s7 + $0x68] sm:$0xf]
  %v2451 = vld [vmem:[%s7 + $0x6c] sm:$0xf]
  %v2452 = vld [vmem:[%s7 + $0x70] sm:$0xf]
  %v2453 = vld [vmem:[%s7 + $0x74] sm:$0xf]
  %v2454 = vld [vmem:[%s7 + $0x78] sm:$0xf]
  %v2455 = vld [vmem:[%s7 + $0x7c] sm:$0xf]
  %v2456 = vld [vmem:[%s8 + $0xb] sm:$0x1]
  %v2458 = vlaneseq
  %v2459 = vshrl.u32 %v2458, 7
  %v2460 = vsub.s32 0, %v2459
  %v2461 = vrot.slane %v2456, %v2460
  %v2495 = vunpack.c.l.b16 %v2424
  %v2496 = vunpack.c.l.b16 %v2425
  %v2497 = vunpack.c.l.b16 %v2426
  %v2498 = vunpack.c.l.b16 %v2427
  %v2499 = vunpack.c.l.b16 %v2428
  %v2500 = vunpack.c.l.b16 %v2429
  %v2501 = vunpack.c.l.b16 %v2430
  %v2502 = vunpack.c.l.b16 %v2431
  %v2503 = vunpack.c.l.b16 %v2432
  %v2504 = vunpack.c.l.b16 %v2433
  %v2505 = vunpack.c.l.b16 %v2434
  %v2506 = vunpack.c.l.b16 %v2435
  %v2507 = vunpack.c.l.b16 %v2436
  %v2508 = vunpack.c.l.b16 %v2437
  %v2509 = vunpack.c.l.b16 %v2438
  %v2510 = vunpack.c.l.b16 %v2439
  %v2511 = vunpack.c.l.b16 %v2440
  %v2512 = vunpack.c.l.b16 %v2441
  %v2513 = vunpack.c.l.b16 %v2442
  %v2514 = vunpack.c.l.b16 %v2443
  %v2515 = vunpack.c.l.b16 %v2444
  %v2516 = vunpack.c.l.b16 %v2445
  %v2517 = vunpack.c.l.b16 %v2446
  %v2518 = vunpack.c.l.b16 %v2447
  %v2519 = vunpack.c.l.b16 %v2448
  %v2520 = vunpack.c.l.b16 %v2449
  %v2521 = vunpack.c.l.b16 %v2450
  %v2522 = vunpack.c.l.b16 %v2451
  %v2523 = vunpack.c.l.b16 %v2452
  %v2524 = vunpack.c.l.b16 %v2453
  %v2525 = vunpack.c.l.b16 %v2454
  %v2526 = vunpack.c.l.b16 %v2455
  %v2527 = vpack.c.b16 %v2496, %v2495
  %v2528 = vpack.c.b16 %v2498, %v2497
  %v2529 = vpack.c.b16 %v2500, %v2499
  %v2530 = vpack.c.b16 %v2502, %v2501
  %v2531 = vpack.c.b16 %v2504, %v2503
  %v2532 = vpack.c.b16 %v2506, %v2505
  %v2533 = vpack.c.b16 %v2508, %v2507
  %v2534 = vpack.c.b16 %v2510, %v2509
  %v2535 = vpack.c.b16 %v2512, %v2511
  %v2536 = vpack.c.b16 %v2514, %v2513
  %v2537 = vpack.c.b16 %v2516, %v2515
  %v2538 = vpack.c.b16 %v2518, %v2517
  %v2539 = vpack.c.b16 %v2520, %v2519
  %v2540 = vpack.c.b16 %v2522, %v2521
  %v2541 = vpack.c.b16 %v2524, %v2523
  %v2542 = vpack.c.b16 %v2526, %v2525
  %2559 = vmatprep.subr.bf16.mxu0 0
  %2560 = vmatpush1.bf16.msra.mxu0 %v2527
  %2561 = vmatprep.subr.bf16.mxu0 0
  %2562 = vmatpush1.bf16.msra.mxu0 %v2528
  %2563 = vmatprep.subr.bf16.mxu0 0
  %2564 = vmatpush1.bf16.msra.mxu0 %v2529
  %2565 = vmatprep.subr.bf16.mxu0 0
  %2566 = vmatpush1.bf16.msra.mxu0 %v2530
  %2567 = vmatprep.subr.bf16.mxu0 0
  %2568 = vmatpush1.bf16.msra.mxu0 %v2531
  %2569 = vmatprep.subr.bf16.mxu0 0
  %2570 = vmatpush1.bf16.msra.mxu0 %v2532
  %2571 = vmatprep.subr.bf16.mxu0 0
  %2572 = vmatpush1.bf16.msra.mxu0 %v2533
  %2573 = vmatprep.subr.bf16.mxu0 0
  %2574 = vmatpush1.bf16.msra.mxu0 %v2534
  %2575 = vmatprep.subr.bf16.mxu0 0
  %2576 = vmatpush1.bf16.msra.mxu0 %v2535
  %2577 = vmatprep.subr.bf16.mxu0 0
  %2578 = vmatpush1.bf16.msra.mxu0 %v2536
  %2579 = vmatprep.subr.bf16.mxu0 0
  %2580 = vmatpush1.bf16.msra.mxu0 %v2537
  %2581 = vmatprep.subr.bf16.mxu0 0
  %2582 = vmatpush1.bf16.msra.mxu0 %v2538
  %2583 = vmatprep.subr.bf16.mxu0 0
  %2584 = vmatpush1.bf16.msra.mxu0 %v2539
  %2585 = vmatprep.subr.bf16.mxu0 0
  %2586 = vmatpush1.bf16.msra.mxu0 %v2540
  %2587 = vmatprep.subr.bf16.mxu0 0
  %2588 = vmatpush1.bf16.msra.mxu0 %v2541
  %2589 = vmatprep.subr.bf16.mxu0 0
  %2590 = vmatpush1.bf16.msra.mxu0 %v2542
  %2591 = vmatprep.mubr.bf16.mxu0 %v2421
  %2592 = vmatmul.mubr.bf16.gmra.mrb[0].mxu0 %v2420
  %v2593 = vpop.f32.mrb[0].mxu0
  %v2594 = vadd.f32 %v2461, %v2593
  %v2595 = vpop.f32.mrb[0].mxu0
  %v2596 = vpop.f32.mrb[0].mxu0
  %v2597 = vadd.f32 %v2461, %v2596
  %v2598 = vpop.f32.mrb[0].mxu0
  %2599 = vmatprep.mubr.bf16.mxu0 %v2423
  %2600 = vmatmul.mubr.bf16.gmra.mrb[0].mxu0 %v2422
  %v2601 = vpop.f32.mrb[0].mxu0
  %v2602 = vadd.f32 %v2461, %v2601
  %v2603 = vpop.f32.mrb[0].mxu0
  %v2604 = vpop.f32.mrb[0].mxu0
  %v2605 = vadd.f32 %v2461, %v2604
  %v2606 = vpop.f32.mrb[0].mxu0
  %2607 = vdwg.mxu0
  %v2608 = vlaneseq
  %v2609 = vshrl.u32 %v2608, 7
  %v2610 = vsub.s32 5, %v2609
  %v2611 = vrot.slane %v165, %v2610
  %v2612 = vlaneseq
  %v2613 = vshrl.u32 %v2612, 7
  %v2614 = vsub.s32 5, %v2613
  %v2615 = vrot.slane %v166, %v2614
  %v2616 = vmul.f32 %v2611, %v2594
  %v2617 = vmul.f32 %v2611, %v2597
  %v2618 = vmul.f32 %v2615, %v2602
  %v2619 = vmul.f32 %v2615, %v2605
  %v2620 = vadd.f32 %v2101, %v2616
  %v2621 = vadd.f32 %v2102, %v2617
  %v2622 = vadd.f32 %v2103, %v2618
  %v2623 = vadd.f32 %v2104, %v2619
  %v2624 = vld [vmem:[%s4] sm:$0x3]
  %v2625 = vld [vmem:[%s4 + $0x2] sm:$0x3]
  %2626 = vadd.xlane.f32.xlu0 %v2620
  %v2627 = vpop.xlane.xlu0 %2626
  %2628 = vadd.xlane.f32.xlu0 %v2621
  %v2629 = vpop.xlane.xlu0 %2628
  %2630 = vadd.xlane.f32.xlu0 %v2622
  %v2631 = vpop.xlane.xlu0 %2630
  %2632 = vadd.xlane.f32.xlu0 %v2623
  %v2633 = vpop.xlane.xlu0 %2632
  %v2634 = vmul.f32 %v2627, %v175
  %v2635 = vmul.f32 %v2629, %v175
  %v2636 = vmul.f32 %v2631, %v175
  %v2637 = vmul.f32 %v2633, %v175
  %v2638 = vmul.f32 %v2620, %v2620
  %v2639 = vmul.f32 %v2621, %v2621
  %v2640 = vmul.f32 %v2622, %v2622
  %v2641 = vmul.f32 %v2623, %v2623
  %2642 = vadd.xlane.f32.xlu0 %v2638
  %v2643 = vpop.xlane.xlu0 %2642
  %2644 = vadd.xlane.f32.xlu0 %v2639
  %v2645 = vpop.xlane.xlu0 %2644
  %2646 = vadd.xlane.f32.xlu0 %v2640
  %v2647 = vpop.xlane.xlu0 %2646
  %2648 = vadd.xlane.f32.xlu0 %v2641
  %v2649 = vpop.xlane.xlu0 %2648
  %v2650 = vmul.f32 %v2643, %v175
  %v2651 = vmul.f32 %v2645, %v175
  %v2652 = vmul.f32 %v2647, %v175
  %v2653 = vmul.f32 %v2649, %v175
  %v2654 = vmul.f32 %v2634, %v2634
  %v2655 = vmul.f32 %v2635, %v2635
  %v2656 = vmul.f32 %v2636, %v2636
  %v2657 = vmul.f32 %v2637, %v2637
  %v2658 = vsub.f32 %v2650, %v2654
  %v2659 = vsub.f32 %v2651, %v2655
  %v2660 = vsub.f32 %v2652, %v2656
  %v2661 = vsub.f32 %v2653, %v2657
  %v2662 = vmax.f32 %v2658, 0.0
  %v2663 = vmax.f32 %v2659, 0.0
  %v2664 = vmax.f32 %v2660, 0.0
  %v2665 = vmax.f32 %v2661, 0.0
  %v2666 = vsub.f32 %v2620, %v2634
  %v2667 = vsub.f32 %v2621, %v2635
  %v2668 = vsub.f32 %v2622, %v2636
  %v2669 = vsub.f32 %v2623, %v2637
  %v2670 = vadd.f32 %v2662, 1e-06
  %v2671 = vadd.f32 %v2663, 1e-06
  %v2672 = vadd.f32 %v2664, 1e-06
  %v2673 = vadd.f32 %v2665, 1e-06
  %v2674 = vrsqrt.pop %v2670
  %v2675 = vrsqrt.pop %v2671
  %v2676 = vrsqrt.pop %v2672
  %v2677 = vrsqrt.pop %v2673
  %v2678 = vmul.f32 %v2666, %v2674
  %v2679 = vmul.f32 %v2667, %v2675
  %v2680 = vmul.f32 %v2668, %v2676
  %v2681 = vmul.f32 %v2669, %v2677
  %v2682 = vadd.f32 %v2624, 1.0
  %v2683 = vadd.f32 %v2625, 1.0
  %v2684 = vlaneseq
  %v2685 = vshrl.u32 %v2684, 7
  %v2686 = vsub.s32 1, %v2685
  %v2687 = vrot.slane %v2682, %v2686
  %v2688 = vlaneseq
  %v2689 = vshrl.u32 %v2688, 7
  %v2690 = vsub.s32 1, %v2689
  %v2691 = vrot.slane %v2683, %v2690
  %v2692 = vmul.f32 %v2678, %v2687
  %v2693 = vmul.f32 %v2679, %v2687
  %v2694 = vmul.f32 %v2680, %v2691
  %v2695 = vmul.f32 %v2681, %v2691
  %v2696 = vlaneseq
  %v2697 = vshrl.u32 %v2696, 7
  %v2698 = vsub.s32 0, %v2697
  %v2699 = vrot.slane %v2624, %v2698
  %v2700 = vlaneseq
  %v2701 = vshrl.u32 %v2700, 7
  %v2702 = vsub.s32 0, %v2701
  %v2703 = vrot.slane %v2625, %v2702
  %v2704 = vadd.f32 %v2692, %v2699
  %v2705 = vadd.f32 %v2693, %v2699
  %v2706 = vadd.f32 %v2694, %v2703
  %v2707 = vadd.f32 %v2695, %v2703
  %v2708 = vpack.c.bf16 %v2705, %v2704
  %v2709 = vpack.c.bf16 %v2707, %v2706
  %v2710 = vld [vmem:[%s6 + $0x28] sm:$0xf]
  %v2711 = vld [vmem:[%s6 + $0x54] sm:$0xf]
  %v2712 = vld [vmem:[%s6 + $0x80] sm:$0xf]
  %v2713 = vld [vmem:[%s6 + $0xac] sm:$0xf]
  %v2714 = vld [vmem:[%s6 + $0xd8] sm:$0xf]
  %v2715 = vld [vmem:[%s6 + $0x104] sm:$0xf]
  %v2716 = vld [vmem:[%s6 + $0x130] sm:$0xf]
  %v2717 = vld [vmem:[%s6 + $0x15c] sm:$0xf]
  %v2718 = vld [vmem:[%s6 + $0x188] sm:$0xf]
  %v2719 = vld [vmem:[%s6 + $0x1b4] sm:$0xf]
  %v2720 = vld [vmem:[%s6 + $0x1e0] sm:$0xf]
  %v2721 = vld [vmem:[%s6 + $0x20c] sm:$0xf]
  %v2722 = vld [vmem:[%s6 + $0x238] sm:$0xf]
  %v2723 = vld [vmem:[%s6 + $0x264] sm:$0xf]
  %v2724 = vld [vmem:[%s6 + $0x290] sm:$0xf]
  %v2725 = vld [vmem:[%s6 + $0x2bc] sm:$0xf]
  %v2726 = vld [vmem:[%s8 + $0xc] sm:$0x1]
  %v2728 = vlaneseq
  %v2729 = vshrl.u32 %v2728, 7
  %v2730 = vsub.s32 0, %v2729
  %v2731 = vrot.slane %v2726, %v2730
  %v2749 = vunpack.c.l.b16 %v2710
  %v2750 = vunpack.c.l.b16 %v2711
  %v2751 = vunpack.c.l.b16 %v2712
  %v2752 = vunpack.c.l.b16 %v2713
  %v2753 = vunpack.c.l.b16 %v2714
  %v2754 = vunpack.c.l.b16 %v2715
  %v2755 = vunpack.c.l.b16 %v2716
  %v2756 = vunpack.c.l.b16 %v2717
  %v2757 = vunpack.c.l.b16 %v2718
  %v2758 = vunpack.c.l.b16 %v2719
  %v2759 = vunpack.c.l.b16 %v2720
  %v2760 = vunpack.c.l.b16 %v2721
  %v2761 = vunpack.c.l.b16 %v2722
  %v2762 = vunpack.c.l.b16 %v2723
  %v2763 = vunpack.c.l.b16 %v2724
  %v2764 = vunpack.c.l.b16 %v2725
  %v2765 = vpack.c.b16 %v2750, %v2749
  %v2766 = vpack.c.b16 %v2752, %v2751
  %v2767 = vpack.c.b16 %v2754, %v2753
  %v2768 = vpack.c.b16 %v2756, %v2755
  %v2769 = vpack.c.b16 %v2758, %v2757
  %v2770 = vpack.c.b16 %v2760, %v2759
  %v2771 = vpack.c.b16 %v2762, %v2761
  %v2772 = vpack.c.b16 %v2764, %v2763
  %2781 = vmatprep.subr.bf16.mxu0 0
  %2782 = vmatpush1.bf16.msra.mxu0 %v2765
  %2783 = vmatprep.subr.bf16.mxu0 0
  %2784 = vmatpush1.bf16.msra.mxu0 %v2766
  %2785 = vmatprep.subr.bf16.mxu0 0
  %2786 = vmatpush1.bf16.msra.mxu0 %v2767
  %2787 = vmatprep.subr.bf16.mxu0 0
  %2788 = vmatpush1.bf16.msra.mxu0 %v2768
  %2789 = vmatprep.subr.bf16.mxu0 0
  %2790 = vmatpush1.bf16.msra.mxu0 %v2769
  %2791 = vmatprep.subr.bf16.mxu0 0
  %2792 = vmatpush1.bf16.msra.mxu0 %v2770
  %2793 = vmatprep.subr.bf16.mxu0 0
  %2794 = vmatpush1.bf16.msra.mxu0 %v2771
  %2795 = vmatprep.subr.bf16.mxu0 0
  %2796 = vmatpush1.bf16.msra.mxu0 %v2772
  %2797 = vmatprep.subr.bf16.mxu0 0
  %2798 = vmatpush1.bf16.msra.mxu0 0
  %2799 = vmatprep.subr.bf16.mxu0 0
  %2800 = vmatpush1.bf16.msra.mxu0 0
  %2801 = vmatprep.subr.bf16.mxu0 0
  %2802 = vmatpush1.bf16.msra.mxu0 0
  %2803 = vmatprep.subr.bf16.mxu0 0
  %2804 = vmatpush1.bf16.msra.mxu0 0
  %2805 = vmatprep.subr.bf16.mxu0 0
  %2806 = vmatpush1.bf16.msra.mxu0 0
  %2807 = vmatprep.subr.bf16.mxu0 0
  %2808 = vmatpush1.bf16.msra.mxu0 0
  %2809 = vmatprep.subr.bf16.mxu0 0
  %2810 = vmatpush1.bf16.msra.mxu0 0
  %2811 = vmatprep.subr.bf16.mxu0 0
  %2812 = vmatpush1.bf16.msra.mxu0 0
  %2813 = vmatprep.mubr.bf16.mxu0 0
  %2814 = vmatmul.mubr.bf16.gmra.mrb[0].mxu0 %v2708
  %v2815 = vpop.f32.mrb[0].mxu0
  %v2816 = vadd.f32 %v2731, %v2815
  %v2817 = vpop.f32.mrb[0].mxu0
  %v2818 = vpop.f32.mrb[0].mxu0
  %v2819 = vadd.f32 %v2731, %v2818
  %v2820 = vpop.f32.mrb[0].mxu0
  %2821 = vmatprep.mubr.bf16.mxu0 0
  %2822 = vmatmul.mubr.bf16.gmra.mrb[0].mxu0 %v2709
  %v2823 = vpop.f32.mrb[0].mxu0
  %v2824 = vadd.f32 %v2731, %v2823
  %v2825 = vpop.f32.mrb[0].mxu0
  %v2826 = vpop.f32.mrb[0].mxu0
  %v2827 = vadd.f32 %v2731, %v2826
  %v2828 = vpop.f32.mrb[0].mxu0
  %2829 = vdwg.mxu0
  %2830 = vst [vmem:[%s9] sm:$0xff] %v2816
  %2831 = vst [vmem:[%s9 + $0x8] sm:$0xff] %v2819
  %2832 = vst [vmem:[%s9 + $0x10] sm:$0xff] %v2824
  %2833 = vst [vmem:[%s9 + $0x18] sm:$0xff] %v2827
  // Predicated region
  $region38: #{_pixart_denoise.1} parent=0 // pred_check
    _
  $region39: #{_pixart_denoise.1} parent=0 // pred_check_branch
    %2835 = sbr.rel (0) target = $region41
  $region40: #{_pixart_denoise.1} parent=0 // pred_region
    _
  $region41: #{_pixart_denoise.1} parent=0 // pred_fallthru
    _
  // Predicated region
  $region42: #{_pixart_denoise.1} parent=0 // pred_check
    _
  $region43: #{_pixart_denoise.1} parent=0 // pred_check_branch
    %2837 = sbr.rel (0) target = $region45
  $region44: #{_pixart_denoise.1} parent=0 // pred_region
    _
  $region45: #{_pixart_denoise.1} parent=0 // pred_fallthru
    _

</llo_original>
